<compile_context>
chip_gen: v7x
topology: tpu7x:2x2x1
jax: 0.10.0
libtpu: 0.0.40
codegen_flags: <defaults>
</compile_context>

<pallas_src>
import functools
import math

import jax
import jax.numpy as jnp
from jax import lax
from jax.experimental import pallas as pl
from jax.experimental.pallas import tpu as pltpu

WDT = jnp.bfloat16  # weight / MXU-input dtype (f32 also works if substituted)


def _layernorm(v, g, b, eps):
    mu = jnp.mean(v, axis=-1, keepdims=True)
    d = v - mu
    var = jnp.mean(d * d, axis=-1, keepdims=True)
    return d * lax.rsqrt(var + eps) * g + b


def _gelu_tanh(x):
    # tanh-approx GELU: bulk of the work goes to the EUP slot.
    c = jnp.float32(0.7978845608028654)  # sqrt(2/pi)
    return 0.5 * x * (1.0 + jnp.tanh(c * (x + 0.044715 * (x * x * x))))


def sasrec_kernel(x_ref, cand_ref,
                  fln_g_ref, fln_b_ref,
                  ln1_g_ref, ln1_b_ref, in_w_ref, in_b_ref,
                  out_w_ref, out_b_ref,
                  ln2_g_ref, ln2_b_ref, ff1_w_ref, ff1_b_ref,
                  ff2_w_ref, ff2_b_ref,
                  scores_ref,
                  *, num_blocks, num_heads):
    Bt, L, E = x_ref.shape
    _, T, N, _ = cand_ref.shape
    H = num_heads
    Dh = E // H
    M = Bt * L
    wdt = in_w_ref.dtype

    # ---- embed block: rows = Bt*L, E on lanes ----
    x = x_ref[...].astype(jnp.float32).reshape(M, E)

    # first_layernorm (eps=1e-8); dropout is identity at inference.
    x = _layernorm(x, fln_g_ref[0], fln_b_ref[0], 1e-8)

    # additive causal mask shared by every block / head (0 where allowed,
    # -1e30 where j > i).
    row = lax.broadcasted_iota(jnp.int32, (L, L), 0)
    col = lax.broadcasted_iota(jnp.int32, (L, L), 1)
    causal_add = jnp.where(col > row, jnp.float32(-1e30),
                           jnp.float32(0.0))[None]          # (1, L, L)
    scale = jnp.float32(1.0 / math.sqrt(Dh))

    # One TransformerEncoderLayer (norm_first=True, GELU, batch_first).
    def block_fn(blk, x):
        # ---- self-attention sub-block ----
        h = _layernorm(x, ln1_g_ref[blk], ln1_b_ref[blk], 1e-5)
        # Fused QKV projection: single (M,E)x(E,3E) matmul, lane-dense result.
        qkv = (jnp.dot(h.astype(wdt), in_w_ref[blk],
                       preferred_element_type=jnp.float32)
               + in_b_ref[blk])                              # (M, 3E)

        ctx_heads = []
        for hh in range(H):
            q = qkv[:, hh * Dh:(hh + 1) * Dh]                # static lane slice
            k = qkv[:, E + hh * Dh:E + (hh + 1) * Dh]
            v = qkv[:, 2 * E + hh * Dh:2 * E + (hh + 1) * Dh]

            q3 = (q * scale).reshape(Bt, L, Dh).astype(wdt)
            k3 = k.reshape(Bt, L, Dh).astype(wdt)
            v3 = v.reshape(Bt, L, Dh).astype(wdt)

            # 'bqd,bkd->bqk'
            s = lax.dot_general(q3, k3, (((2,), (2,)), ((0,), (0,))),
                                preferred_element_type=jnp.float32)
            s = s + causal_add
            s = s - jnp.max(s, axis=-1, keepdims=True)
            p = jnp.exp(s)
            p = p * pl.reciprocal(jnp.sum(p, axis=-1, keepdims=True),
                                  approx=True)

            # 'bqk,bkd->bqd'
            ctx = lax.dot_general(p.astype(wdt), v3,
                                  (((2,), (1,)), ((0,), (0,))),
                                  preferred_element_type=jnp.float32)
            ctx_heads.append(ctx.reshape(M, Dh))

        # Heads merged on lanes -> single full-K output projection.
        ctx_all = ctx_heads[0] if H == 1 else jnp.concatenate(ctx_heads,
                                                              axis=-1)
        attn = (jnp.dot(ctx_all.astype(wdt), out_w_ref[blk],
                        preferred_element_type=jnp.float32)
                + out_b_ref[blk])
        x = x + attn

        # ---- feed-forward sub-block ----
        h2 = _layernorm(x, ln2_g_ref[blk], ln2_b_ref[blk], 1e-5)
        z = (jnp.dot(h2.astype(wdt), ff1_w_ref[blk],
                     preferred_element_type=jnp.float32) + ff1_b_ref[blk])
        z = _gelu_tanh(z)
        z = (jnp.dot(z.astype(wdt), ff2_w_ref[blk],
                     preferred_element_type=jnp.float32) + ff2_b_ref[blk])
        return x + z

    if num_blocks <= 4:
        for blk in range(num_blocks):        # small: unrolled is cheapest
            x = block_fn(blk, x)
    else:
        # Deep encoder: bound vreg live ranges / trace size.
        x = lax.fori_loop(0, num_blocks, block_fn, x)

    # ---- scoring: (encoded[:, -T:, None, :] * cand_emb).sum(-1), on the MXU ----
    enc = x.reshape(Bt, L, E)[:, L - T:, :].astype(wdt)      # (Bt, T, E)
    cand = cand_ref[...].reshape(Bt, T * N, E)               # (Bt, T*N, E)
    # 'bte,bpe->btp'   (lane-dense result: T*N lanes)
    g = lax.dot_general(enc, cand, (((2,), (2,)), ((0,), (0,))),
                        preferred_element_type=jnp.float32)  # (Bt, T, T*N)
    # keep only the block diagonal: scores[b, t*N + n] = g[b, t, t*N + n]
    col2 = lax.broadcasted_iota(jnp.int32, (T, T * N), 1)
    row2 = lax.broadcasted_iota(jnp.int32, (T, T * N), 0)
    keep = (col2 >= row2 * N) & (col2 < (row2 + 1) * N)      # (T, T*N)
    scores = jnp.sum(jnp.where(keep[None], g, 0.0), axis=1)  # (Bt, T*N)
    # TODO(synk): for production-sized T (T*N >> a few hundred lanes) switch
    # scoring to a chunked-over-t formulation to avoid the T-times-redundant
    # dot_general and the O(T^2*N) masked reduction.
    scores_ref[...] = scores.astype(scores_ref.dtype)


def _pick_batch_tile(B, L, device_kind=""):
    # ~512 matmul rows per grid step keeps the MXU busy on single-TC chips
    # (v5e/v6e); per-step overhead is ~0.35us so fewer/larger steps win.
    max_rows = 512
    bt = max(1, max_rows // max(L, 1))
    # v7x: 2 TensorCores per chip -> keep >= 2 'parallel' grid steps.
    if "v7" in device_kind.lower() and B > 1:
        bt = min(bt, max(1, B // 2))
    bt = min(bt, B)
    # Keep the flattened (Bt, T*N) output block sublane-friendly when tiling.
    if bt < B and bt > 8:
        bt = (bt // 8) * 8
    return bt


def _vmem_limit_bytes(device_kind, weight_bytes, tile_bytes):
    # v7x has 64 MiB physical VMEM per TC; v5e/v6e have 128 MiB.
    cap = (48 << 20) if "v7" in device_kind.lower() else (100 << 20)
    est = 2 * int(weight_bytes) + 2 * int(tile_bytes) + (16 << 20)
    return int(min(cap, max(est, 32 << 20)))


def make_sasrec_call(B, Bt, L, T, N, E, num_blocks, num_heads, *,
                     vmem_limit_bytes, weight_pipeline_mode=None):
    kernel = functools.partial(sasrec_kernel, num_blocks=num_blocks,
                               num_heads=num_heads)

    def full(shape):
        # Grid-invariant weight/bias tile; optionally single-buffered.
        nd = len(shape)
        kwargs = {}
        if weight_pipeline_mode is not None:
            kwargs["pipeline_mode"] = weight_pipeline_mode
        return pl.BlockSpec(shape, lambda i, _nd=nd: (0,) * _nd, **kwargs)

    in_specs = [
        pl.BlockSpec((Bt, L, E), lambda i: (i, 0, 0)),          # item+pos emb
        pl.BlockSpec((Bt, T, N, E), lambda i: (i, 0, 0, 0)),    # candidate embs
        full((1, E)), full((1, E)),                              # first LN g, b
        full((num_blocks, E)), full((num_blocks, E)),            # ln1 g, b
        full((num_blocks, E, 3 * E)), full((num_blocks, 3 * E)),  # fused QKV
        full((num_blocks, E, E)), full((num_blocks, E)),          # out proj
        full((num_blocks, E)), full((num_blocks, E)),            # ln2 g, b
        full((num_blocks, E, 4 * E)), full((num_blocks, 4 * E)),  # FF1
        full((num_blocks, 4 * E, E)), full((num_blocks, E)),      # FF2
    ]
    out_spec = pl.BlockSpec((Bt, T * N), lambda i: (i, 0))
    return pl.pallas_call(
        kernel,
        grid=(B // Bt,),
        in_specs=in_specs,
        out_specs=out_spec,
        out_shape=jax.ShapeDtypeStruct((B, T * N), jnp.float32),
        compiler_params=pltpu.CompilerParams(
            dimension_semantics=("parallel",),   # independent batch tiles
            vmem_limit_bytes=vmem_limit_bytes),
    )


def init_params(key, num_items, lookback, emb_size, num_blocks, num_heads,
                padding_value=0):
    E = emb_size
    ks = jax.random.split(key, 10)

    def w(k, shape, scale=0.05):
        return scale * jax.random.normal(k, shape, dtype=jnp.float32)

    item_emb = 0.1 * jax.random.normal(ks[0], (num_items + 1, E), jnp.float32)
    item_emb = item_emb.at[padding_value].set(0.0)  # padding_idx row is zero
    pos_emb = 0.1 * jax.random.normal(ks[1], (lookback, E), jnp.float32)

    return dict(
        item_emb=item_emb,
        pos_emb=pos_emb,
        fln_g=jnp.ones((1, E), jnp.float32),
        fln_b=jnp.zeros((1, E), jnp.float32),
        ln1_g=jnp.ones((num_blocks, E), jnp.float32),
        ln1_b=jnp.zeros((num_blocks, E), jnp.float32),
        ln2_g=jnp.ones((num_blocks, E), jnp.float32),
        ln2_b=jnp.zeros((num_blocks, E), jnp.float32),
        # fused QKV / fused output-projection layouts; matmul weights in bf16
        in_w=w(ks[2], (num_blocks, E, 3 * E)).astype(WDT),
        in_b=w(ks[3], (num_blocks, 3 * E)),
        out_w=w(ks[4], (num_blocks, E, E)).astype(WDT),
        out_b=w(ks[5], (num_blocks, E)),
        ff1_w=w(ks[6], (num_blocks, E, 4 * E)).astype(WDT),
        ff1_b=w(ks[7], (num_blocks, 4 * E)),
        ff2_w=w(ks[8], (num_blocks, 4 * E, E)).astype(WDT),
        ff2_b=w(ks[9], (num_blocks, E)),
    )


def sasrec_forward(params, input_seqs, items_to_predict, num_heads):
    item_emb = params["item_emb"]
    pos_emb = params["pos_emb"]
    B, L = input_seqs.shape
    _, T, N = items_to_predict.shape
    E = item_emb.shape[1]
    num_blocks = params["ln1_g"].shape[0]

    # Glue: embedding gathers + positional add stay in plain JAX.
    x = jnp.take(item_emb, input_seqs, axis=0) + pos_emb[None]       # (B, L, E)
    cand = jnp.take(item_emb, items_to_predict, axis=0).astype(WDT)  # (B,T,N,E)

    device_kind = jax.devices()[0].device_kind
    Bt = _pick_batch_tile(B, L, device_kind)
    B_pad = pl.cdiv(B, Bt) * Bt
    if B_pad != B:  # pad batch instead of shrinking Bt to an awkward divisor
        x = jnp.pad(x, ((0, B_pad - B), (0, 0), (0, 0)))
        cand = jnp.pad(cand, ((0, B_pad - B), (0, 0), (0, 0), (0, 0)))

    weight_bytes = sum(int(v.size) * v.dtype.itemsize
                       for k2, v in params.items()
                       if k2 not in ("item_emb", "pos_emb"))
    tile_bytes = Bt * L * E * 4 + Bt * T * N * E * 2 + Bt * T * N * 4
    vmem = _vmem_limit_bytes(device_kind, weight_bytes, tile_bytes)

    weight_args = (params["fln_g"], params["fln_b"],
                   params["ln1_g"], params["ln1_b"],
                   params["in_w"], params["in_b"],
                   params["out_w"], params["out_b"],
                   params["ln2_g"], params["ln2_b"],
                   params["ff1_w"], params["ff1_b"],
                   params["ff2_w"], params["ff2_b"])

    def build(pipeline_mode):
        return make_sasrec_call(B_pad, Bt, L, T, N, E, num_blocks, num_heads,
                                vmem_limit_bytes=vmem,
                                weight_pipeline_mode=pipeline_mode)

    try:
        # Single-buffer the grid-invariant weights (their index_map is
        # constant, so double-buffering only doubles VMEM residency).
        flat = build(pl.Buffered(1))(x, cand, *weight_args)
    except Exception:
        # TODO(synk): this JAX build rejected pl.Buffered(1); fall back to the
        # default (double-buffered) pipelining so the kernel still runs.
        flat = build(None)(x, cand, *weight_args)

    return flat[:B].reshape(B, T, N)


if __name__ == "__main__":
    num_items = 50
    lookback = 8          # L
    emb_size = 32         # E
    num_blocks = 2
    num_heads = 2
    dropout_rate = 0.1    # identity at inference
    B, T, N = 2, 8, 16

    key = jax.random.PRNGKey(0)
    kp, k_seq, k_cand = jax.random.split(key, 3)
    params = init_params(kp, num_items, lookback, emb_size, num_blocks,
                         num_heads)

    input_seqs = jax.random.randint(k_seq, (B, lookback), 0, num_items + 1,
                                    dtype=jnp.int32)
    items_to_predict = jax.random.randint(k_cand, (B, T, N), 1, num_items + 1,
                                          dtype=jnp.int32)

    scores = sasrec_forward(params, input_seqs, items_to_predict, num_heads)
    scores = jax.block_until_ready(scores)
    assert scores.shape == (B, T, N) and scores.dtype == jnp.float32
    print("KERNEL_OK")
</pallas_src>

<mosaic_0001>
module attributes {stable_mosaic.version = 11 : i64} {
  func.func @sasrec_kernel(%arg0: i32, %arg1: memref<2x8x32xf32, #tpu.memory_space<vmem>>, %arg2: memref<2x8x16x32xbf16, #tpu.memory_space<vmem>>, %arg3: memref<1x32xf32, #tpu.memory_space<vmem>>, %arg4: memref<1x32xf32, #tpu.memory_space<vmem>>, %arg5: memref<2x32xf32, #tpu.memory_space<vmem>>, %arg6: memref<2x32xf32, #tpu.memory_space<vmem>>, %arg7: memref<2x32x96xbf16, #tpu.memory_space<vmem>>, %arg8: memref<2x96xf32, #tpu.memory_space<vmem>>, %arg9: memref<2x32x32xbf16, #tpu.memory_space<vmem>>, %arg10: memref<2x32xf32, #tpu.memory_space<vmem>>, %arg11: memref<2x32xf32, #tpu.memory_space<vmem>>, %arg12: memref<2x32xf32, #tpu.memory_space<vmem>>, %arg13: memref<2x32x128xbf16, #tpu.memory_space<vmem>>, %arg14: memref<2x128xf32, #tpu.memory_space<vmem>>, %arg15: memref<2x128x32xbf16, #tpu.memory_space<vmem>>, %arg16: memref<2x32xf32, #tpu.memory_space<vmem>>, %arg17: memref<2x128xf32, #tpu.memory_space<vmem>>) attributes {dimension_semantics = [#tpu.dimension_semantics<parallel>], iteration_bounds = array<i64: 1>, scalar_prefetch = 0 : i64, scratch_operands = 0 : i64, tpu.core_type = #tpu.core_type<tc>, window_params = [{transform_indices = @transform_0, window_bounds = array<i64: 2, 8, 32>}, {transform_indices = @transform_1, window_bounds = array<i64: 2, 8, 16, 32>}, {pipeline_mode = #tpu.pipeline_mode<synchronous>, transform_indices = @transform_2, window_bounds = array<i64: 1, 32>}, {pipeline_mode = #tpu.pipeline_mode<synchronous>, transform_indices = @transform_3, window_bounds = array<i64: 1, 32>}, {pipeline_mode = #tpu.pipeline_mode<synchronous>, transform_indices = @transform_4, window_bounds = array<i64: 2, 32>}, {pipeline_mode = #tpu.pipeline_mode<synchronous>, transform_indices = @transform_5, window_bounds = array<i64: 2, 32>}, {pipeline_mode = #tpu.pipeline_mode<synchronous>, transform_indices = @transform_6, window_bounds = array<i64: 2, 32, 96>}, {pipeline_mode = #tpu.pipeline_mode<synchronous>, transform_indices = @transform_7, window_bounds = array<i64: 2, 96>}, {pipeline_mode = #tpu.pipeline_mode<synchronous>, transform_indices = @transform_8, window_bounds = array<i64: 2, 32, 32>}, {pipeline_mode = #tpu.pipeline_mode<synchronous>, transform_indices = @transform_9, window_bounds = array<i64: 2, 32>}, {pipeline_mode = #tpu.pipeline_mode<synchronous>, transform_indices = @transform_10, window_bounds = array<i64: 2, 32>}, {pipeline_mode = #tpu.pipeline_mode<synchronous>, transform_indices = @transform_11, window_bounds = array<i64: 2, 32>}, {pipeline_mode = #tpu.pipeline_mode<synchronous>, transform_indices = @transform_12, window_bounds = array<i64: 2, 32, 128>}, {pipeline_mode = #tpu.pipeline_mode<synchronous>, transform_indices = @transform_13, window_bounds = array<i64: 2, 128>}, {pipeline_mode = #tpu.pipeline_mode<synchronous>, transform_indices = @transform_14, window_bounds = array<i64: 2, 128, 32>}, {pipeline_mode = #tpu.pipeline_mode<synchronous>, transform_indices = @transform_15, window_bounds = array<i64: 2, 32>}, {transform_indices = @transform_16, window_bounds = array<i64: 2, 128>}]} {
    %c0 = arith.constant 0 : index
    %c0_0 = arith.constant 0 : index
    %c0_1 = arith.constant 0 : index
    %0 = vector.load %arg1[%c0, %c0_0, %c0_1] : memref<2x8x32xf32, #tpu.memory_space<vmem>>, vector<2x8x32xf32>
    %1 = vector.shape_cast %0 : vector<2x8x32xf32> to vector<16x32xf32>
    %c0_2 = arith.constant 0 : index
    %c0_3 = arith.constant 0 : index
    %2 = vector.load %arg3[%c0_2, %c0_3] : memref<1x32xf32, #tpu.memory_space<vmem>>, vector<1x32xf32>
    %3 = vector.shape_cast %2 : vector<1x32xf32> to vector<32xf32>
    %c0_4 = arith.constant 0 : index
    %c0_5 = arith.constant 0 : index
    %4 = vector.load %arg4[%c0_4, %c0_5] : memref<1x32xf32, #tpu.memory_space<vmem>>, vector<1x32xf32>
    %5 = vector.shape_cast %4 : vector<1x32xf32> to vector<32xf32>
    %cst = arith.constant dense<0.000000e+00> : vector<16xf32>
    %6 = vector.multi_reduction <add>, %1, %cst [1] : vector<16x32xf32> to vector<16xf32>
    %7 = vector.shape_cast %6 : vector<16xf32> to vector<16x1xf32>
    %cst_6 = arith.constant 3.200000e+01 : f32
    %8 = vector.broadcast %cst_6 : f32 to vector<16x1xf32>
    %9 = arith.divf %7, %8 : vector<16x1xf32>
    %10 = vector.broadcast %9 : vector<16x1xf32> to vector<16x32xf32>
    %11 = arith.subf %1, %10 : vector<16x32xf32>
    %12 = arith.mulf %11, %11 : vector<16x32xf32>
    %cst_7 = arith.constant dense<0.000000e+00> : vector<16xf32>
    %13 = vector.multi_reduction <add>, %12, %cst_7 [1] : vector<16x32xf32> to vector<16xf32>
    %14 = vector.shape_cast %13 : vector<16xf32> to vector<16x1xf32>
    %cst_8 = arith.constant 3.200000e+01 : f32
    %15 = vector.broadcast %cst_8 : f32 to vector<16x1xf32>
    %16 = arith.divf %14, %15 : vector<16x1xf32>
    %cst_9 = arith.constant 9.99999993E-9 : f32
    %17 = vector.broadcast %cst_9 : f32 to vector<16x1xf32>
    %18 = arith.addf %16, %17 : vector<16x1xf32>
    %19 = math.rsqrt %18 : vector<16x1xf32>
    %20 = vector.broadcast %19 : vector<16x1xf32> to vector<16x32xf32>
    %21 = arith.mulf %11, %20 : vector<16x32xf32>
    %22 = vector.shape_cast %3 : vector<32xf32> to vector<1x32xf32>
    %23 = vector.broadcast %22 : vector<1x32xf32> to vector<16x32xf32>
    %24 = arith.mulf %21, %23 : vector<16x32xf32>
    %25 = vector.shape_cast %5 : vector<32xf32> to vector<1x32xf32>
    %26 = vector.broadcast %25 : vector<1x32xf32> to vector<16x32xf32>
    %27 = arith.addf %24, %26 : vector<16x32xf32>
    %28 = tpu.iota {dimensions = array<i32: 0>} : vector<8x8xi32>
    %29 = tpu.iota {dimensions = array<i32: 1>} : vector<8x8xi32>
    %30 = arith.cmpi sgt, %29, %28 : vector<8x8xi32>
    %cst_10 = arith.constant -1.000000e+30 : f32
    %cst_11 = arith.constant 0.000000e+00 : f32
    %31 = vector.broadcast %cst_10 : f32 to vector<8x8xf32>
    %32 = vector.broadcast %cst_11 : f32 to vector<8x8xf32>
    %33 = arith.select %30, %31, %32 : vector<8x8xi1>, vector<8x8xf32>
    %34 = vector.shape_cast %33 : vector<8x8xf32> to vector<1x8x8xf32>
    %c0_12 = arith.constant 0 : index
    %c0_13 = arith.constant 0 : index
    %35 = vector.load %arg5[%c0_12, %c0_13] : memref<2x32xf32, #tpu.memory_space<vmem>>, vector<1x32xf32>
    %36 = vector.shape_cast %35 : vector<1x32xf32> to vector<32xf32>
    %c0_14 = arith.constant 0 : index
    %c0_15 = arith.constant 0 : index
    %37 = vector.load %arg6[%c0_14, %c0_15] : memref<2x32xf32, #tpu.memory_space<vmem>>, vector<1x32xf32>
    %38 = vector.shape_cast %37 : vector<1x32xf32> to vector<32xf32>
    %cst_16 = arith.constant dense<0.000000e+00> : vector<16xf32>
    %39 = vector.multi_reduction <add>, %27, %cst_16 [1] : vector<16x32xf32> to vector<16xf32>
    %40 = vector.shape_cast %39 : vector<16xf32> to vector<16x1xf32>
    %cst_17 = arith.constant 3.200000e+01 : f32
    %41 = vector.broadcast %cst_17 : f32 to vector<16x1xf32>
    %42 = arith.divf %40, %41 : vector<16x1xf32>
    %43 = vector.broadcast %42 : vector<16x1xf32> to vector<16x32xf32>
    %44 = arith.subf %27, %43 : vector<16x32xf32>
    %45 = arith.mulf %44, %44 : vector<16x32xf32>
    %cst_18 = arith.constant dense<0.000000e+00> : vector<16xf32>
    %46 = vector.multi_reduction <add>, %45, %cst_18 [1] : vector<16x32xf32> to vector<16xf32>
    %47 = vector.shape_cast %46 : vector<16xf32> to vector<16x1xf32>
    %cst_19 = arith.constant 3.200000e+01 : f32
    %48 = vector.broadcast %cst_19 : f32 to vector<16x1xf32>
    %49 = arith.divf %47, %48 : vector<16x1xf32>
    %cst_20 = arith.constant 9.99999974E-6 : f32
    %50 = vector.broadcast %cst_20 : f32 to vector<16x1xf32>
    %51 = arith.addf %49, %50 : vector<16x1xf32>
    %52 = math.rsqrt %51 : vector<16x1xf32>
    %53 = vector.broadcast %52 : vector<16x1xf32> to vector<16x32xf32>
    %54 = arith.mulf %44, %53 : vector<16x32xf32>
    %55 = vector.shape_cast %36 : vector<32xf32> to vector<1x32xf32>
    %56 = vector.broadcast %55 : vector<1x32xf32> to vector<16x32xf32>
    %57 = arith.mulf %54, %56 : vector<16x32xf32>
    %58 = vector.shape_cast %38 : vector<32xf32> to vector<1x32xf32>
    %59 = vector.broadcast %58 : vector<1x32xf32> to vector<16x32xf32>
    %60 = arith.addf %57, %59 : vector<16x32xf32>
    %61 = arith.truncf %60 : vector<16x32xf32> to vector<16x32xbf16>
    %c0_21 = arith.constant 0 : index
    %c0_22 = arith.constant 0 : index
    %c0_23 = arith.constant 0 : index
    %62 = vector.load %arg7[%c0_21, %c0_22, %c0_23] : memref<2x32x96xbf16, #tpu.memory_space<vmem>>, vector<1x32x96xbf16>
    %63 = vector.shape_cast %62 : vector<1x32x96xbf16> to vector<32x96xbf16>
    %cst_24 = arith.constant dense<0.000000e+00> : vector<16x96xf32>
    %64 = tpu.matmul %61, %63, %cst_24 {dimension_numbers = #tpu.dot_dimension_numbers<[1], [0], [0], [1], [0, 0, 1, 1], [], []>} : vector<16x32xbf16>, vector<32x96xbf16>, vector<16x96xf32> -> vector<16x96xf32>
    %c0_25 = arith.constant 0 : index
    %c0_26 = arith.constant 0 : index
    %65 = vector.load %arg8[%c0_25, %c0_26] : memref<2x96xf32, #tpu.memory_space<vmem>>, vector<1x96xf32>
    %66 = vector.shape_cast %65 : vector<1x96xf32> to vector<96xf32>
    %67 = vector.shape_cast %66 : vector<96xf32> to vector<1x96xf32>
    %68 = vector.broadcast %67 : vector<1x96xf32> to vector<16x96xf32>
    %69 = arith.addf %64, %68 : vector<16x96xf32>
    %70 = vector.extract_strided_slice %69 {offsets = [0, 0], sizes = [16, 16], strides = [1, 1]} : vector<16x96xf32> to vector<16x16xf32>
    %71 = vector.extract_strided_slice %69 {offsets = [0, 32], sizes = [16, 16], strides = [1, 1]} : vector<16x96xf32> to vector<16x16xf32>
    %72 = vector.extract_strided_slice %69 {offsets = [0, 64], sizes = [16, 16], strides = [1, 1]} : vector<16x96xf32> to vector<16x16xf32>
    %cst_27 = arith.constant 2.500000e-01 : f32
    %73 = vector.broadcast %cst_27 : f32 to vector<16x16xf32>
    %74 = arith.mulf %70, %73 : vector<16x16xf32>
    %75 = vector.shape_cast %74 : vector<16x16xf32> to vector<2x8x16xf32>
    %76 = arith.truncf %75 : vector<2x8x16xf32> to vector<2x8x16xbf16>
    %77 = vector.shape_cast %71 : vector<16x16xf32> to vector<2x8x16xf32>
    %78 = arith.truncf %77 : vector<2x8x16xf32> to vector<2x8x16xbf16>
    %79 = vector.shape_cast %72 : vector<16x16xf32> to vector<2x8x16xf32>
    %80 = arith.truncf %79 : vector<2x8x16xf32> to vector<2x8x16xbf16>
    %cst_28 = arith.constant dense<0.000000e+00> : vector<2x8x8xf32>
    %81 = tpu.matmul %76, %78, %cst_28 {dimension_numbers = #tpu.dot_dimension_numbers<[2], [2], [1], [1], [0, 0, 0, 1, 1, 1], [0], [0]>} : vector<2x8x16xbf16>, vector<2x8x16xbf16>, vector<2x8x8xf32> -> vector<2x8x8xf32>
    %82 = vector.broadcast %34 : vector<1x8x8xf32> to vector<2x8x8xf32>
    %83 = arith.addf %81, %82 : vector<2x8x8xf32>
    %cst_29 = arith.constant dense<0xFF800000> : vector<2x8xf32>
    %84 = vector.multi_reduction <maximumf>, %83, %cst_29 [2] : vector<2x8x8xf32> to vector<2x8xf32>
    %85 = vector.shape_cast %84 : vector<2x8xf32> to vector<2x8x1xf32>
    %86 = vector.broadcast %85 : vector<2x8x1xf32> to vector<2x8x8xf32>
    %87 = arith.subf %83, %86 : vector<2x8x8xf32>
    %88 = math.exp %87 : vector<2x8x8xf32>
    %cst_30 = arith.constant dense<0.000000e+00> : vector<2x8xf32>
    %89 = vector.multi_reduction <add>, %88, %cst_30 [2] : vector<2x8x8xf32> to vector<2x8xf32>
    %90 = vector.shape_cast %89 : vector<2x8xf32> to vector<2x8x1xf32>
    %91 = tpu.reciprocal %90 {approx = true} : vector<2x8x1xf32> -> vector<2x8x1xf32>
    %92 = vector.broadcast %91 : vector<2x8x1xf32> to vector<2x8x8xf32>
    %93 = arith.mulf %88, %92 : vector<2x8x8xf32>
    %94 = arith.truncf %93 : vector<2x8x8xf32> to vector<2x8x8xbf16>
    %cst_31 = arith.constant dense<0.000000e+00> : vector<2x8x16xf32>
    %95 = tpu.matmul %94, %80, %cst_31 {dimension_numbers = #tpu.dot_dimension_numbers<[2], [1], [1], [2], [0, 0, 0, 1, 1, 2], [0], [0]>} : vector<2x8x8xbf16>, vector<2x8x16xbf16>, vector<2x8x16xf32> -> vector<2x8x16xf32>
    %96 = vector.shape_cast %95 : vector<2x8x16xf32> to vector<16x16xf32>
    %97 = vector.extract_strided_slice %69 {offsets = [0, 16], sizes = [16, 16], strides = [1, 1]} : vector<16x96xf32> to vector<16x16xf32>
    %98 = vector.extract_strided_slice %69 {offsets = [0, 48], sizes = [16, 16], strides = [1, 1]} : vector<16x96xf32> to vector<16x16xf32>
    %99 = vector.extract_strided_slice %69 {offsets = [0, 80], sizes = [16, 16], strides = [1, 1]} : vector<16x96xf32> to vector<16x16xf32>
    %cst_32 = arith.constant 2.500000e-01 : f32
    %100 = vector.broadcast %cst_32 : f32 to vector<16x16xf32>
    %101 = arith.mulf %97, %100 : vector<16x16xf32>
    %102 = vector.shape_cast %101 : vector<16x16xf32> to vector<2x8x16xf32>
    %103 = arith.truncf %102 : vector<2x8x16xf32> to vector<2x8x16xbf16>
    %104 = vector.shape_cast %98 : vector<16x16xf32> to vector<2x8x16xf32>
    %105 = arith.truncf %104 : vector<2x8x16xf32> to vector<2x8x16xbf16>
    %106 = vector.shape_cast %99 : vector<16x16xf32> to vector<2x8x16xf32>
    %107 = arith.truncf %106 : vector<2x8x16xf32> to vector<2x8x16xbf16>
    %cst_33 = arith.constant dense<0.000000e+00> : vector<2x8x8xf32>
    %108 = tpu.matmul %103, %105, %cst_33 {dimension_numbers = #tpu.dot_dimension_numbers<[2], [2], [1], [1], [0, 0, 0, 1, 1, 1], [0], [0]>} : vector<2x8x16xbf16>, vector<2x8x16xbf16>, vector<2x8x8xf32> -> vector<2x8x8xf32>
    %109 = vector.broadcast %34 : vector<1x8x8xf32> to vector<2x8x8xf32>
    %110 = arith.addf %108, %109 : vector<2x8x8xf32>
    %cst_34 = arith.constant dense<0xFF800000> : vector<2x8xf32>
    %111 = vector.multi_reduction <maximumf>, %110, %cst_34 [2] : vector<2x8x8xf32> to vector<2x8xf32>
    %112 = vector.shape_cast %111 : vector<2x8xf32> to vector<2x8x1xf32>
    %113 = vector.broadcast %112 : vector<2x8x1xf32> to vector<2x8x8xf32>
    %114 = arith.subf %110, %113 : vector<2x8x8xf32>
    %115 = math.exp %114 : vector<2x8x8xf32>
    %cst_35 = arith.constant dense<0.000000e+00> : vector<2x8xf32>
    %116 = vector.multi_reduction <add>, %115, %cst_35 [2] : vector<2x8x8xf32> to vector<2x8xf32>
    %117 = vector.shape_cast %116 : vector<2x8xf32> to vector<2x8x1xf32>
    %118 = tpu.reciprocal %117 {approx = true} : vector<2x8x1xf32> -> vector<2x8x1xf32>
    %119 = vector.broadcast %118 : vector<2x8x1xf32> to vector<2x8x8xf32>
    %120 = arith.mulf %115, %119 : vector<2x8x8xf32>
    %121 = arith.truncf %120 : vector<2x8x8xf32> to vector<2x8x8xbf16>
    %cst_36 = arith.constant dense<0.000000e+00> : vector<2x8x16xf32>
    %122 = tpu.matmul %121, %107, %cst_36 {dimension_numbers = #tpu.dot_dimension_numbers<[2], [1], [1], [2], [0, 0, 0, 1, 1, 2], [0], [0]>} : vector<2x8x8xbf16>, vector<2x8x16xbf16>, vector<2x8x16xf32> -> vector<2x8x16xf32>
    %123 = vector.shape_cast %122 : vector<2x8x16xf32> to vector<16x16xf32>
    %124 = tpu.concatenate %96, %123 in 1 : vector<16x16xf32>, vector<16x16xf32> -> vector<16x32xf32>
    %125 = arith.truncf %124 : vector<16x32xf32> to vector<16x32xbf16>
    %c0_37 = arith.constant 0 : index
    %c0_38 = arith.constant 0 : index
    %c0_39 = arith.constant 0 : index
    %126 = vector.load %arg9[%c0_37, %c0_38, %c0_39] : memref<2x32x32xbf16, #tpu.memory_space<vmem>>, vector<1x32x32xbf16>
    %127 = vector.shape_cast %126 : vector<1x32x32xbf16> to vector<32x32xbf16>
    %cst_40 = arith.constant dense<0.000000e+00> : vector<16x32xf32>
    %128 = tpu.matmul %125, %127, %cst_40 {dimension_numbers = #tpu.dot_dimension_numbers<[1], [0], [0], [1], [0, 0, 1, 1], [], []>} : vector<16x32xbf16>, vector<32x32xbf16>, vector<16x32xf32> -> vector<16x32xf32>
    %c0_41 = arith.constant 0 : index
    %c0_42 = arith.constant 0 : index
    %129 = vector.load %arg10[%c0_41, %c0_42] : memref<2x32xf32, #tpu.memory_space<vmem>>, vector<1x32xf32>
    %130 = vector.shape_cast %129 : vector<1x32xf32> to vector<32xf32>
    %131 = vector.shape_cast %130 : vector<32xf32> to vector<1x32xf32>
    %132 = vector.broadcast %131 : vector<1x32xf32> to vector<16x32xf32>
    %133 = arith.addf %128, %132 : vector<16x32xf32>
    %134 = arith.addf %27, %133 : vector<16x32xf32>
    %c0_43 = arith.constant 0 : index
    %c0_44 = arith.constant 0 : index
    %135 = vector.load %arg11[%c0_43, %c0_44] : memref<2x32xf32, #tpu.memory_space<vmem>>, vector<1x32xf32>
    %136 = vector.shape_cast %135 : vector<1x32xf32> to vector<32xf32>
    %c0_45 = arith.constant 0 : index
    %c0_46 = arith.constant 0 : index
    %137 = vector.load %arg12[%c0_45, %c0_46] : memref<2x32xf32, #tpu.memory_space<vmem>>, vector<1x32xf32>
    %138 = vector.shape_cast %137 : vector<1x32xf32> to vector<32xf32>
    %cst_47 = arith.constant dense<0.000000e+00> : vector<16xf32>
    %139 = vector.multi_reduction <add>, %134, %cst_47 [1] : vector<16x32xf32> to vector<16xf32>
    %140 = vector.shape_cast %139 : vector<16xf32> to vector<16x1xf32>
    %cst_48 = arith.constant 3.200000e+01 : f32
    %141 = vector.broadcast %cst_48 : f32 to vector<16x1xf32>
    %142 = arith.divf %140, %141 : vector<16x1xf32>
    %143 = vector.broadcast %142 : vector<16x1xf32> to vector<16x32xf32>
    %144 = arith.subf %134, %143 : vector<16x32xf32>
    %145 = arith.mulf %144, %144 : vector<16x32xf32>
    %cst_49 = arith.constant dense<0.000000e+00> : vector<16xf32>
    %146 = vector.multi_reduction <add>, %145, %cst_49 [1] : vector<16x32xf32> to vector<16xf32>
    %147 = vector.shape_cast %146 : vector<16xf32> to vector<16x1xf32>
    %cst_50 = arith.constant 3.200000e+01 : f32
    %148 = vector.broadcast %cst_50 : f32 to vector<16x1xf32>
    %149 = arith.divf %147, %148 : vector<16x1xf32>
    %cst_51 = arith.constant 9.99999974E-6 : f32
    %150 = vector.broadcast %cst_51 : f32 to vector<16x1xf32>
    %151 = arith.addf %149, %150 : vector<16x1xf32>
    %152 = math.rsqrt %151 : vector<16x1xf32>
    %153 = vector.broadcast %152 : vector<16x1xf32> to vector<16x32xf32>
    %154 = arith.mulf %144, %153 : vector<16x32xf32>
    %155 = vector.shape_cast %136 : vector<32xf32> to vector<1x32xf32>
    %156 = vector.broadcast %155 : vector<1x32xf32> to vector<16x32xf32>
    %157 = arith.mulf %154, %156 : vector<16x32xf32>
    %158 = vector.shape_cast %138 : vector<32xf32> to vector<1x32xf32>
    %159 = vector.broadcast %158 : vector<1x32xf32> to vector<16x32xf32>
    %160 = arith.addf %157, %159 : vector<16x32xf32>
    %161 = arith.truncf %160 : vector<16x32xf32> to vector<16x32xbf16>
    %c0_52 = arith.constant 0 : index
    %c0_53 = arith.constant 0 : index
    %c0_54 = arith.constant 0 : index
    %162 = vector.load %arg13[%c0_52, %c0_53, %c0_54] : memref<2x32x128xbf16, #tpu.memory_space<vmem>>, vector<1x32x128xbf16>
    %163 = vector.shape_cast %162 : vector<1x32x128xbf16> to vector<32x128xbf16>
    %cst_55 = arith.constant dense<0.000000e+00> : vector<16x128xf32>
    %164 = tpu.matmul %161, %163, %cst_55 {dimension_numbers = #tpu.dot_dimension_numbers<[1], [0], [0], [1], [0, 0, 1, 1], [], []>} : vector<16x32xbf16>, vector<32x128xbf16>, vector<16x128xf32> -> vector<16x128xf32>
    %c0_56 = arith.constant 0 : index
    %c0_57 = arith.constant 0 : index
    %165 = vector.load %arg14[%c0_56, %c0_57] : memref<2x128xf32, #tpu.memory_space<vmem>>, vector<1x128xf32>
    %166 = vector.shape_cast %165 : vector<1x128xf32> to vector<128xf32>
    %167 = vector.shape_cast %166 : vector<128xf32> to vector<1x128xf32>
    %168 = vector.broadcast %167 : vector<1x128xf32> to vector<16x128xf32>
    %169 = arith.addf %164, %168 : vector<16x128xf32>
    %cst_58 = arith.constant 5.000000e-01 : f32
    %170 = vector.broadcast %cst_58 : f32 to vector<16x128xf32>
    %171 = arith.mulf %170, %169 : vector<16x128xf32>
    %172 = arith.mulf %169, %169 : vector<16x128xf32>
    %173 = arith.mulf %172, %169 : vector<16x128xf32>
    %cst_59 = arith.constant 4.471500e-02 : f32
    %174 = vector.broadcast %cst_59 : f32 to vector<16x128xf32>
    %175 = arith.mulf %174, %173 : vector<16x128xf32>
    %176 = arith.addf %169, %175 : vector<16x128xf32>
    %cst_60 = arith.constant 0.797884583 : f32
    %177 = vector.broadcast %cst_60 : f32 to vector<16x128xf32>
    %178 = arith.mulf %177, %176 : vector<16x128xf32>
    %179 = math.tanh %178 : vector<16x128xf32>
    %cst_61 = arith.constant 1.000000e+00 : f32
    %180 = vector.broadcast %cst_61 : f32 to vector<16x128xf32>
    %181 = arith.addf %180, %179 : vector<16x128xf32>
    %182 = arith.mulf %171, %181 : vector<16x128xf32>
    %183 = arith.truncf %182 : vector<16x128xf32> to vector<16x128xbf16>
    %c0_62 = arith.constant 0 : index
    %c0_63 = arith.constant 0 : index
    %c0_64 = arith.constant 0 : index
    %184 = vector.load %arg15[%c0_62, %c0_63, %c0_64] : memref<2x128x32xbf16, #tpu.memory_space<vmem>>, vector<1x128x32xbf16>
    %185 = vector.shape_cast %184 : vector<1x128x32xbf16> to vector<128x32xbf16>
    %cst_65 = arith.constant dense<0.000000e+00> : vector<16x32xf32>
    %186 = tpu.matmul %183, %185, %cst_65 {dimension_numbers = #tpu.dot_dimension_numbers<[1], [0], [0], [1], [0, 0, 1, 1], [], []>} : vector<16x128xbf16>, vector<128x32xbf16>, vector<16x32xf32> -> vector<16x32xf32>
    %c0_66 = arith.constant 0 : index
    %c0_67 = arith.constant 0 : index
    %187 = vector.load %arg16[%c0_66, %c0_67] : memref<2x32xf32, #tpu.memory_space<vmem>>, vector<1x32xf32>
    %188 = vector.shape_cast %187 : vector<1x32xf32> to vector<32xf32>
    %189 = vector.shape_cast %188 : vector<32xf32> to vector<1x32xf32>
    %190 = vector.broadcast %189 : vector<1x32xf32> to vector<16x32xf32>
    %191 = arith.addf %186, %190 : vector<16x32xf32>
    %192 = arith.addf %134, %191 : vector<16x32xf32>
    %c1 = arith.constant 1 : index
    %c0_68 = arith.constant 0 : index
    %193 = vector.load %arg5[%c1, %c0_68] : memref<2x32xf32, #tpu.memory_space<vmem>>, vector<1x32xf32>
    %194 = vector.shape_cast %193 : vector<1x32xf32> to vector<32xf32>
    %c1_69 = arith.constant 1 : index
    %c0_70 = arith.constant 0 : index
    %195 = vector.load %arg6[%c1_69, %c0_70] : memref<2x32xf32, #tpu.memory_space<vmem>>, vector<1x32xf32>
    %196 = vector.shape_cast %195 : vector<1x32xf32> to vector<32xf32>
    %cst_71 = arith.constant dense<0.000000e+00> : vector<16xf32>
    %197 = vector.multi_reduction <add>, %192, %cst_71 [1] : vector<16x32xf32> to vector<16xf32>
    %198 = vector.shape_cast %197 : vector<16xf32> to vector<16x1xf32>
    %cst_72 = arith.constant 3.200000e+01 : f32
    %199 = vector.broadcast %cst_72 : f32 to vector<16x1xf32>
    %200 = arith.divf %198, %199 : vector<16x1xf32>
    %201 = vector.broadcast %200 : vector<16x1xf32> to vector<16x32xf32>
    %202 = arith.subf %192, %201 : vector<16x32xf32>
    %203 = arith.mulf %202, %202 : vector<16x32xf32>
    %cst_73 = arith.constant dense<0.000000e+00> : vector<16xf32>
    %204 = vector.multi_reduction <add>, %203, %cst_73 [1] : vector<16x32xf32> to vector<16xf32>
    %205 = vector.shape_cast %204 : vector<16xf32> to vector<16x1xf32>
    %cst_74 = arith.constant 3.200000e+01 : f32
    %206 = vector.broadcast %cst_74 : f32 to vector<16x1xf32>
    %207 = arith.divf %205, %206 : vector<16x1xf32>
    %cst_75 = arith.constant 9.99999974E-6 : f32
    %208 = vector.broadcast %cst_75 : f32 to vector<16x1xf32>
    %209 = arith.addf %207, %208 : vector<16x1xf32>
    %210 = math.rsqrt %209 : vector<16x1xf32>
    %211 = vector.broadcast %210 : vector<16x1xf32> to vector<16x32xf32>
    %212 = arith.mulf %202, %211 : vector<16x32xf32>
    %213 = vector.shape_cast %194 : vector<32xf32> to vector<1x32xf32>
    %214 = vector.broadcast %213 : vector<1x32xf32> to vector<16x32xf32>
    %215 = arith.mulf %212, %214 : vector<16x32xf32>
    %216 = vector.shape_cast %196 : vector<32xf32> to vector<1x32xf32>
    %217 = vector.broadcast %216 : vector<1x32xf32> to vector<16x32xf32>
    %218 = arith.addf %215, %217 : vector<16x32xf32>
    %219 = arith.truncf %218 : vector<16x32xf32> to vector<16x32xbf16>
    %c1_76 = arith.constant 1 : index
    %c0_77 = arith.constant 0 : index
    %c0_78 = arith.constant 0 : index
    %220 = vector.load %arg7[%c1_76, %c0_77, %c0_78] : memref<2x32x96xbf16, #tpu.memory_space<vmem>>, vector<1x32x96xbf16>
    %221 = vector.shape_cast %220 : vector<1x32x96xbf16> to vector<32x96xbf16>
    %cst_79 = arith.constant dense<0.000000e+00> : vector<16x96xf32>
    %222 = tpu.matmul %219, %221, %cst_79 {dimension_numbers = #tpu.dot_dimension_numbers<[1], [0], [0], [1], [0, 0, 1, 1], [], []>} : vector<16x32xbf16>, vector<32x96xbf16>, vector<16x96xf32> -> vector<16x96xf32>
    %c1_80 = arith.constant 1 : index
    %c0_81 = arith.constant 0 : index
    %223 = vector.load %arg8[%c1_80, %c0_81] : memref<2x96xf32, #tpu.memory_space<vmem>>, vector<1x96xf32>
    %224 = vector.shape_cast %223 : vector<1x96xf32> to vector<96xf32>
    %225 = vector.shape_cast %224 : vector<96xf32> to vector<1x96xf32>
    %226 = vector.broadcast %225 : vector<1x96xf32> to vector<16x96xf32>
    %227 = arith.addf %222, %226 : vector<16x96xf32>
    %228 = vector.extract_strided_slice %227 {offsets = [0, 0], sizes = [16, 16], strides = [1, 1]} : vector<16x96xf32> to vector<16x16xf32>
    %229 = vector.extract_strided_slice %227 {offsets = [0, 32], sizes = [16, 16], strides = [1, 1]} : vector<16x96xf32> to vector<16x16xf32>
    %230 = vector.extract_strided_slice %227 {offsets = [0, 64], sizes = [16, 16], strides = [1, 1]} : vector<16x96xf32> to vector<16x16xf32>
    %cst_82 = arith.constant 2.500000e-01 : f32
    %231 = vector.broadcast %cst_82 : f32 to vector<16x16xf32>
    %232 = arith.mulf %228, %231 : vector<16x16xf32>
    %233 = vector.shape_cast %232 : vector<16x16xf32> to vector<2x8x16xf32>
    %234 = arith.truncf %233 : vector<2x8x16xf32> to vector<2x8x16xbf16>
    %235 = vector.shape_cast %229 : vector<16x16xf32> to vector<2x8x16xf32>
    %236 = arith.truncf %235 : vector<2x8x16xf32> to vector<2x8x16xbf16>
    %237 = vector.shape_cast %230 : vector<16x16xf32> to vector<2x8x16xf32>
    %238 = arith.truncf %237 : vector<2x8x16xf32> to vector<2x8x16xbf16>
    %cst_83 = arith.constant dense<0.000000e+00> : vector<2x8x8xf32>
    %239 = tpu.matmul %234, %236, %cst_83 {dimension_numbers = #tpu.dot_dimension_numbers<[2], [2], [1], [1], [0, 0, 0, 1, 1, 1], [0], [0]>} : vector<2x8x16xbf16>, vector<2x8x16xbf16>, vector<2x8x8xf32> -> vector<2x8x8xf32>
    %240 = vector.broadcast %34 : vector<1x8x8xf32> to vector<2x8x8xf32>
    %241 = arith.addf %239, %240 : vector<2x8x8xf32>
    %cst_84 = arith.constant dense<0xFF800000> : vector<2x8xf32>
    %242 = vector.multi_reduction <maximumf>, %241, %cst_84 [2] : vector<2x8x8xf32> to vector<2x8xf32>
    %243 = vector.shape_cast %242 : vector<2x8xf32> to vector<2x8x1xf32>
    %244 = vector.broadcast %243 : vector<2x8x1xf32> to vector<2x8x8xf32>
    %245 = arith.subf %241, %244 : vector<2x8x8xf32>
    %246 = math.exp %245 : vector<2x8x8xf32>
    %cst_85 = arith.constant dense<0.000000e+00> : vector<2x8xf32>
    %247 = vector.multi_reduction <add>, %246, %cst_85 [2] : vector<2x8x8xf32> to vector<2x8xf32>
    %248 = vector.shape_cast %247 : vector<2x8xf32> to vector<2x8x1xf32>
    %249 = tpu.reciprocal %248 {approx = true} : vector<2x8x1xf32> -> vector<2x8x1xf32>
    %250 = vector.broadcast %249 : vector<2x8x1xf32> to vector<2x8x8xf32>
    %251 = arith.mulf %246, %250 : vector<2x8x8xf32>
    %252 = arith.truncf %251 : vector<2x8x8xf32> to vector<2x8x8xbf16>
    %cst_86 = arith.constant dense<0.000000e+00> : vector<2x8x16xf32>
    %253 = tpu.matmul %252, %238, %cst_86 {dimension_numbers = #tpu.dot_dimension_numbers<[2], [1], [1], [2], [0, 0, 0, 1, 1, 2], [0], [0]>} : vector<2x8x8xbf16>, vector<2x8x16xbf16>, vector<2x8x16xf32> -> vector<2x8x16xf32>
    %254 = vector.shape_cast %253 : vector<2x8x16xf32> to vector<16x16xf32>
    %255 = vector.extract_strided_slice %227 {offsets = [0, 16], sizes = [16, 16], strides = [1, 1]} : vector<16x96xf32> to vector<16x16xf32>
    %256 = vector.extract_strided_slice %227 {offsets = [0, 48], sizes = [16, 16], strides = [1, 1]} : vector<16x96xf32> to vector<16x16xf32>
    %257 = vector.extract_strided_slice %227 {offsets = [0, 80], sizes = [16, 16], strides = [1, 1]} : vector<16x96xf32> to vector<16x16xf32>
    %cst_87 = arith.constant 2.500000e-01 : f32
    %258 = vector.broadcast %cst_87 : f32 to vector<16x16xf32>
    %259 = arith.mulf %255, %258 : vector<16x16xf32>
    %260 = vector.shape_cast %259 : vector<16x16xf32> to vector<2x8x16xf32>
    %261 = arith.truncf %260 : vector<2x8x16xf32> to vector<2x8x16xbf16>
    %262 = vector.shape_cast %256 : vector<16x16xf32> to vector<2x8x16xf32>
    %263 = arith.truncf %262 : vector<2x8x16xf32> to vector<2x8x16xbf16>
    %264 = vector.shape_cast %257 : vector<16x16xf32> to vector<2x8x16xf32>
    %265 = arith.truncf %264 : vector<2x8x16xf32> to vector<2x8x16xbf16>
    %cst_88 = arith.constant dense<0.000000e+00> : vector<2x8x8xf32>
    %266 = tpu.matmul %261, %263, %cst_88 {dimension_numbers = #tpu.dot_dimension_numbers<[2], [2], [1], [1], [0, 0, 0, 1, 1, 1], [0], [0]>} : vector<2x8x16xbf16>, vector<2x8x16xbf16>, vector<2x8x8xf32> -> vector<2x8x8xf32>
    %267 = vector.broadcast %34 : vector<1x8x8xf32> to vector<2x8x8xf32>
    %268 = arith.addf %266, %267 : vector<2x8x8xf32>
    %cst_89 = arith.constant dense<0xFF800000> : vector<2x8xf32>
    %269 = vector.multi_reduction <maximumf>, %268, %cst_89 [2] : vector<2x8x8xf32> to vector<2x8xf32>
    %270 = vector.shape_cast %269 : vector<2x8xf32> to vector<2x8x1xf32>
    %271 = vector.broadcast %270 : vector<2x8x1xf32> to vector<2x8x8xf32>
    %272 = arith.subf %268, %271 : vector<2x8x8xf32>
    %273 = math.exp %272 : vector<2x8x8xf32>
    %cst_90 = arith.constant dense<0.000000e+00> : vector<2x8xf32>
    %274 = vector.multi_reduction <add>, %273, %cst_90 [2] : vector<2x8x8xf32> to vector<2x8xf32>
    %275 = vector.shape_cast %274 : vector<2x8xf32> to vector<2x8x1xf32>
    %276 = tpu.reciprocal %275 {approx = true} : vector<2x8x1xf32> -> vector<2x8x1xf32>
    %277 = vector.broadcast %276 : vector<2x8x1xf32> to vector<2x8x8xf32>
    %278 = arith.mulf %273, %277 : vector<2x8x8xf32>
    %279 = arith.truncf %278 : vector<2x8x8xf32> to vector<2x8x8xbf16>
    %cst_91 = arith.constant dense<0.000000e+00> : vector<2x8x16xf32>
    %280 = tpu.matmul %279, %265, %cst_91 {dimension_numbers = #tpu.dot_dimension_numbers<[2], [1], [1], [2], [0, 0, 0, 1, 1, 2], [0], [0]>} : vector<2x8x8xbf16>, vector<2x8x16xbf16>, vector<2x8x16xf32> -> vector<2x8x16xf32>
    %281 = vector.shape_cast %280 : vector<2x8x16xf32> to vector<16x16xf32>
    %282 = tpu.concatenate %254, %281 in 1 : vector<16x16xf32>, vector<16x16xf32> -> vector<16x32xf32>
    %283 = arith.truncf %282 : vector<16x32xf32> to vector<16x32xbf16>
    %c1_92 = arith.constant 1 : index
    %c0_93 = arith.constant 0 : index
    %c0_94 = arith.constant 0 : index
    %284 = vector.load %arg9[%c1_92, %c0_93, %c0_94] : memref<2x32x32xbf16, #tpu.memory_space<vmem>>, vector<1x32x32xbf16>
    %285 = vector.shape_cast %284 : vector<1x32x32xbf16> to vector<32x32xbf16>
    %cst_95 = arith.constant dense<0.000000e+00> : vector<16x32xf32>
    %286 = tpu.matmul %283, %285, %cst_95 {dimension_numbers = #tpu.dot_dimension_numbers<[1], [0], [0], [1], [0, 0, 1, 1], [], []>} : vector<16x32xbf16>, vector<32x32xbf16>, vector<16x32xf32> -> vector<16x32xf32>
    %c1_96 = arith.constant 1 : index
    %c0_97 = arith.constant 0 : index
    %287 = vector.load %arg10[%c1_96, %c0_97] : memref<2x32xf32, #tpu.memory_space<vmem>>, vector<1x32xf32>
    %288 = vector.shape_cast %287 : vector<1x32xf32> to vector<32xf32>
    %289 = vector.shape_cast %288 : vector<32xf32> to vector<1x32xf32>
    %290 = vector.broadcast %289 : vector<1x32xf32> to vector<16x32xf32>
    %291 = arith.addf %286, %290 : vector<16x32xf32>
    %292 = arith.addf %192, %291 : vector<16x32xf32>
    %c1_98 = arith.constant 1 : index
    %c0_99 = arith.constant 0 : index
    %293 = vector.load %arg11[%c1_98, %c0_99] : memref<2x32xf32, #tpu.memory_space<vmem>>, vector<1x32xf32>
    %294 = vector.shape_cast %293 : vector<1x32xf32> to vector<32xf32>
    %c1_100 = arith.constant 1 : index
    %c0_101 = arith.constant 0 : index
    %295 = vector.load %arg12[%c1_100, %c0_101] : memref<2x32xf32, #tpu.memory_space<vmem>>, vector<1x32xf32>
    %296 = vector.shape_cast %295 : vector<1x32xf32> to vector<32xf32>
    %cst_102 = arith.constant dense<0.000000e+00> : vector<16xf32>
    %297 = vector.multi_reduction <add>, %292, %cst_102 [1] : vector<16x32xf32> to vector<16xf32>
    %298 = vector.shape_cast %297 : vector<16xf32> to vector<16x1xf32>
    %cst_103 = arith.constant 3.200000e+01 : f32
    %299 = vector.broadcast %cst_103 : f32 to vector<16x1xf32>
    %300 = arith.divf %298, %299 : vector<16x1xf32>
    %301 = vector.broadcast %300 : vector<16x1xf32> to vector<16x32xf32>
    %302 = arith.subf %292, %301 : vector<16x32xf32>
    %303 = arith.mulf %302, %302 : vector<16x32xf32>
    %cst_104 = arith.constant dense<0.000000e+00> : vector<16xf32>
    %304 = vector.multi_reduction <add>, %303, %cst_104 [1] : vector<16x32xf32> to vector<16xf32>
    %305 = vector.shape_cast %304 : vector<16xf32> to vector<16x1xf32>
    %cst_105 = arith.constant 3.200000e+01 : f32
    %306 = vector.broadcast %cst_105 : f32 to vector<16x1xf32>
    %307 = arith.divf %305, %306 : vector<16x1xf32>
    %cst_106 = arith.constant 9.99999974E-6 : f32
    %308 = vector.broadcast %cst_106 : f32 to vector<16x1xf32>
    %309 = arith.addf %307, %308 : vector<16x1xf32>
    %310 = math.rsqrt %309 : vector<16x1xf32>
    %311 = vector.broadcast %310 : vector<16x1xf32> to vector<16x32xf32>
    %312 = arith.mulf %302, %311 : vector<16x32xf32>
    %313 = vector.shape_cast %294 : vector<32xf32> to vector<1x32xf32>
    %314 = vector.broadcast %313 : vector<1x32xf32> to vector<16x32xf32>
    %315 = arith.mulf %312, %314 : vector<16x32xf32>
    %316 = vector.shape_cast %296 : vector<32xf32> to vector<1x32xf32>
    %317 = vector.broadcast %316 : vector<1x32xf32> to vector<16x32xf32>
    %318 = arith.addf %315, %317 : vector<16x32xf32>
    %319 = arith.truncf %318 : vector<16x32xf32> to vector<16x32xbf16>
    %c1_107 = arith.constant 1 : index
    %c0_108 = arith.constant 0 : index
    %c0_109 = arith.constant 0 : index
    %320 = vector.load %arg13[%c1_107, %c0_108, %c0_109] : memref<2x32x128xbf16, #tpu.memory_space<vmem>>, vector<1x32x128xbf16>
    %321 = vector.shape_cast %320 : vector<1x32x128xbf16> to vector<32x128xbf16>
    %cst_110 = arith.constant dense<0.000000e+00> : vector<16x128xf32>
    %322 = tpu.matmul %319, %321, %cst_110 {dimension_numbers = #tpu.dot_dimension_numbers<[1], [0], [0], [1], [0, 0, 1, 1], [], []>} : vector<16x32xbf16>, vector<32x128xbf16>, vector<16x128xf32> -> vector<16x128xf32>
    %c1_111 = arith.constant 1 : index
    %c0_112 = arith.constant 0 : index
    %323 = vector.load %arg14[%c1_111, %c0_112] : memref<2x128xf32, #tpu.memory_space<vmem>>, vector<1x128xf32>
    %324 = vector.shape_cast %323 : vector<1x128xf32> to vector<128xf32>
    %325 = vector.shape_cast %324 : vector<128xf32> to vector<1x128xf32>
    %326 = vector.broadcast %325 : vector<1x128xf32> to vector<16x128xf32>
    %327 = arith.addf %322, %326 : vector<16x128xf32>
    %cst_113 = arith.constant 5.000000e-01 : f32
    %328 = vector.broadcast %cst_113 : f32 to vector<16x128xf32>
    %329 = arith.mulf %328, %327 : vector<16x128xf32>
    %330 = arith.mulf %327, %327 : vector<16x128xf32>
    %331 = arith.mulf %330, %327 : vector<16x128xf32>
    %cst_114 = arith.constant 4.471500e-02 : f32
    %332 = vector.broadcast %cst_114 : f32 to vector<16x128xf32>
    %333 = arith.mulf %332, %331 : vector<16x128xf32>
    %334 = arith.addf %327, %333 : vector<16x128xf32>
    %cst_115 = arith.constant 0.797884583 : f32
    %335 = vector.broadcast %cst_115 : f32 to vector<16x128xf32>
    %336 = arith.mulf %335, %334 : vector<16x128xf32>
    %337 = math.tanh %336 : vector<16x128xf32>
    %cst_116 = arith.constant 1.000000e+00 : f32
    %338 = vector.broadcast %cst_116 : f32 to vector<16x128xf32>
    %339 = arith.addf %338, %337 : vector<16x128xf32>
    %340 = arith.mulf %329, %339 : vector<16x128xf32>
    %341 = arith.truncf %340 : vector<16x128xf32> to vector<16x128xbf16>
    %c1_117 = arith.constant 1 : index
    %c0_118 = arith.constant 0 : index
    %c0_119 = arith.constant 0 : index
    %342 = vector.load %arg15[%c1_117, %c0_118, %c0_119] : memref<2x128x32xbf16, #tpu.memory_space<vmem>>, vector<1x128x32xbf16>
    %343 = vector.shape_cast %342 : vector<1x128x32xbf16> to vector<128x32xbf16>
    %cst_120 = arith.constant dense<0.000000e+00> : vector<16x32xf32>
    %344 = tpu.matmul %341, %343, %cst_120 {dimension_numbers = #tpu.dot_dimension_numbers<[1], [0], [0], [1], [0, 0, 1, 1], [], []>} : vector<16x128xbf16>, vector<128x32xbf16>, vector<16x32xf32> -> vector<16x32xf32>
    %c1_121 = arith.constant 1 : index
    %c0_122 = arith.constant 0 : index
    %345 = vector.load %arg16[%c1_121, %c0_122] : memref<2x32xf32, #tpu.memory_space<vmem>>, vector<1x32xf32>
    %346 = vector.shape_cast %345 : vector<1x32xf32> to vector<32xf32>
    %347 = vector.shape_cast %346 : vector<32xf32> to vector<1x32xf32>
    %348 = vector.broadcast %347 : vector<1x32xf32> to vector<16x32xf32>
    %349 = arith.addf %344, %348 : vector<16x32xf32>
    %350 = arith.addf %292, %349 : vector<16x32xf32>
    %351 = vector.shape_cast %350 : vector<16x32xf32> to vector<2x8x32xf32>
    %352 = arith.truncf %351 : vector<2x8x32xf32> to vector<2x8x32xbf16>
    %c0_123 = arith.constant 0 : index
    %c0_124 = arith.constant 0 : index
    %c0_125 = arith.constant 0 : index
    %c0_126 = arith.constant 0 : index
    %353 = vector.load %arg2[%c0_123, %c0_124, %c0_125, %c0_126] : memref<2x8x16x32xbf16, #tpu.memory_space<vmem>>, vector<2x8x16x32xbf16>
    %354 = vector.shape_cast %353 : vector<2x8x16x32xbf16> to vector<2x128x32xbf16>
    %cst_127 = arith.constant dense<0.000000e+00> : vector<2x8x128xf32>
    %355 = tpu.matmul %352, %354, %cst_127 {dimension_numbers = #tpu.dot_dimension_numbers<[2], [2], [1], [1], [0, 0, 0, 1, 1, 1], [0], [0]>} : vector<2x8x32xbf16>, vector<2x128x32xbf16>, vector<2x8x128xf32> -> vector<2x8x128xf32>
    %356 = tpu.iota {dimensions = array<i32: 1>} : vector<8x128xi32>
    %357 = tpu.iota {dimensions = array<i32: 0>} : vector<8x128xi32>
    %c16_i32 = arith.constant 16 : i32
    %358 = vector.broadcast %c16_i32 : i32 to vector<8x128xi32>
    %359 = arith.muli %357, %358 : vector<8x128xi32>
    %360 = arith.cmpi sge, %356, %359 : vector<8x128xi32>
    %c1_i32 = arith.constant 1 : i32
    %361 = vector.broadcast %c1_i32 : i32 to vector<8x128xi32>
    %362 = arith.addi %357, %361 : vector<8x128xi32>
    %c16_i32_128 = arith.constant 16 : i32
    %363 = vector.broadcast %c16_i32_128 : i32 to vector<8x128xi32>
    %364 = arith.muli %362, %363 : vector<8x128xi32>
    %365 = arith.cmpi slt, %356, %364 : vector<8x128xi32>
    %366 = arith.andi %360, %365 : vector<8x128xi1>
    %367 = vector.shape_cast %366 : vector<8x128xi1> to vector<1x8x128xi1>
    %cst_129 = arith.constant 0.000000e+00 : f32
    %368 = vector.shape_cast %367 : vector<1x8x128xi1> to vector<1x8x128xi1>
    %369 = vector.broadcast %368 : vector<1x8x128xi1> to vector<2x8x128xi1>
    %370 = vector.broadcast %cst_129 : f32 to vector<2x8x128xf32>
    %371 = arith.select %369, %355, %370 : vector<2x8x128xi1>, vector<2x8x128xf32>
    %cst_130 = arith.constant dense<0.000000e+00> : vector<2x128xf32>
    %372 = vector.multi_reduction <add>, %371, %cst_130 [1] : vector<2x8x128xf32> to vector<2x128xf32>
    %c0_131 = arith.constant 0 : index
    %c0_132 = arith.constant 0 : index
    %373 = vector.load %arg17[%c0_131, %c0_132] : memref<2x128xf32, #tpu.memory_space<vmem>>, vector<2x128xf32>
    tpu.vector_store %arg17[%c0_131, %c0_132], %372 {strides = array<i32>} : memref<2x128xf32, #tpu.memory_space<vmem>>, vector<2x128xf32>,
    return
  }
  func.func @transform_0(%arg0: i32) -> (i32, i32, i32) {
    %c0_i32 = arith.constant 0 : i32
    %c0_i32_0 = arith.constant 0 : i32
    %c0_i32_1 = arith.constant 0 : i32
    return %arg0, %c0_i32, %c0_i32_0 : i32, i32, i32
  }
  func.func @transform_1(%arg0: i32) -> (i32, i32, i32, i32) {
    %c0_i32 = arith.constant 0 : i32
    %c0_i32_0 = arith.constant 0 : i32
    %c0_i32_1 = arith.constant 0 : i32
    %c0_i32_2 = arith.constant 0 : i32
    return %arg0, %c0_i32, %c0_i32_0, %c0_i32_1 : i32, i32, i32, i32
  }
  func.func @transform_2(%arg0: i32) -> (i32, i32) {
    %c0_i32 = arith.constant 0 : i32
    %c0_i32_0 = arith.constant 0 : i32
    %c0_i32_1 = arith.constant 0 : i32
    return %c0_i32, %c0_i32_0 : i32, i32
  }
  func.func @transform_3(%arg0: i32) -> (i32, i32) {
    %c0_i32 = arith.constant 0 : i32
    %c0_i32_0 = arith.constant 0 : i32
    %c0_i32_1 = arith.constant 0 : i32
    return %c0_i32, %c0_i32_0 : i32, i32
  }
  func.func @transform_4(%arg0: i32) -> (i32, i32) {
    %c0_i32 = arith.constant 0 : i32
    %c0_i32_0 = arith.constant 0 : i32
    %c0_i32_1 = arith.constant 0 : i32
    return %c0_i32, %c0_i32_0 : i32, i32
  }
  func.func @transform_5(%arg0: i32) -> (i32, i32) {
    %c0_i32 = arith.constant 0 : i32
    %c0_i32_0 = arith.constant 0 : i32
    %c0_i32_1 = arith.constant 0 : i32
    return %c0_i32, %c0_i32_0 : i32, i32
  }
  func.func @transform_6(%arg0: i32) -> (i32, i32, i32) {
    %c0_i32 = arith.constant 0 : i32
    %c0_i32_0 = arith.constant 0 : i32
    %c0_i32_1 = arith.constant 0 : i32
    %c0_i32_2 = arith.constant 0 : i32
    return %c0_i32, %c0_i32_0, %c0_i32_1 : i32, i32, i32
  }
  func.func @transform_7(%arg0: i32) -> (i32, i32) {
    %c0_i32 = arith.constant 0 : i32
    %c0_i32_0 = arith.constant 0 : i32
    %c0_i32_1 = arith.constant 0 : i32
    return %c0_i32, %c0_i32_0 : i32, i32
  }
  func.func @transform_8(%arg0: i32) -> (i32, i32, i32) {
    %c0_i32 = arith.constant 0 : i32
    %c0_i32_0 = arith.constant 0 : i32
    %c0_i32_1 = arith.constant 0 : i32
    %c0_i32_2 = arith.constant 0 : i32
    return %c0_i32, %c0_i32_0, %c0_i32_1 : i32, i32, i32
  }
  func.func @transform_9(%arg0: i32) -> (i32, i32) {
    %c0_i32 = arith.constant 0 : i32
    %c0_i32_0 = arith.constant 0 : i32
    %c0_i32_1 = arith.constant 0 : i32
    return %c0_i32, %c0_i32_0 : i32, i32
  }
  func.func @transform_10(%arg0: i32) -> (i32, i32) {
    %c0_i32 = arith.constant 0 : i32
    %c0_i32_0 = arith.constant 0 : i32
    %c0_i32_1 = arith.constant 0 : i32
    return %c0_i32, %c0_i32_0 : i32, i32
  }
  func.func @transform_11(%arg0: i32) -> (i32, i32) {
    %c0_i32 = arith.constant 0 : i32
    %c0_i32_0 = arith.constant 0 : i32
    %c0_i32_1 = arith.constant 0 : i32
    return %c0_i32, %c0_i32_0 : i32, i32
  }
  func.func @transform_12(%arg0: i32) -> (i32, i32, i32) {
    %c0_i32 = arith.constant 0 : i32
    %c0_i32_0 = arith.constant 0 : i32
    %c0_i32_1 = arith.constant 0 : i32
    %c0_i32_2 = arith.constant 0 : i32
    return %c0_i32, %c0_i32_0, %c0_i32_1 : i32, i32, i32
  }
  func.func @transform_13(%arg0: i32) -> (i32, i32) {
    %c0_i32 = arith.constant 0 : i32
    %c0_i32_0 = arith.constant 0 : i32
    %c0_i32_1 = arith.constant 0 : i32
    return %c0_i32, %c0_i32_0 : i32, i32
  }
  func.func @transform_14(%arg0: i32) -> (i32, i32, i32) {
    %c0_i32 = arith.constant 0 : i32
    %c0_i32_0 = arith.constant 0 : i32
    %c0_i32_1 = arith.constant 0 : i32
    %c0_i32_2 = arith.constant 0 : i32
    return %c0_i32, %c0_i32_0, %c0_i32_1 : i32, i32, i32
  }
  func.func @transform_15(%arg0: i32) -> (i32, i32) {
    %c0_i32 = arith.constant 0 : i32
    %c0_i32_0 = arith.constant 0 : i32
    %c0_i32_1 = arith.constant 0 : i32
    return %c0_i32, %c0_i32_0 : i32, i32
  }
  func.func @transform_16(%arg0: i32) -> (i32, i32) {
    %c0_i32 = arith.constant 0 : i32
    %c0_i32_0 = arith.constant 0 : i32
    return %arg0, %c0_i32 : i32, i32
  }
}

module attributes {stable_mosaic.version = 11 : i64} {
  func.func @sasrec_kernel(%arg0: i32, %arg1: memref<2x8x32xf32, #tpu.memory_space<vmem>>, %arg2: memref<2x8x16x32xbf16, #tpu.memory_space<vmem>>, %arg3: memref<1x32xf32, #tpu.memory_space<vmem>>, %arg4: memref<1x32xf32, #tpu.memory_space<vmem>>, %arg5: memref<2x32xf32, #tpu.memory_space<vmem>>, %arg6: memref<2x32xf32, #tpu.memory_space<vmem>>, %arg7: memref<2x32x96xbf16, #tpu.memory_space<vmem>>, %arg8: memref<2x96xf32, #tpu.memory_space<vmem>>, %arg9: memref<2x32x32xbf16, #tpu.memory_space<vmem>>, %arg10: memref<2x32xf32, #tpu.memory_space<vmem>>, %arg11: memref<2x32xf32, #tpu.memory_space<vmem>>, %arg12: memref<2x32xf32, #tpu.memory_space<vmem>>, %arg13: memref<2x32x128xbf16, #tpu.memory_space<vmem>>, %arg14: memref<2x128xf32, #tpu.memory_space<vmem>>, %arg15: memref<2x128x32xbf16, #tpu.memory_space<vmem>>, %arg16: memref<2x32xf32, #tpu.memory_space<vmem>>, %arg17: memref<2x128xf32, #tpu.memory_space<vmem>>) attributes {dimension_semantics = [#tpu.dimension_semantics<parallel>], iteration_bounds = array<i64: 1>, scalar_prefetch = 0 : i64, scratch_operands = 0 : i64, tpu.core_type = #tpu.core_type<tc>, window_params = [{transform_indices = @transform_0, window_bounds = array<i64: 2, 8, 32>}, {transform_indices = @transform_1, window_bounds = array<i64: 2, 8, 16, 32>}, {pipeline_mode = #tpu.pipeline_mode<synchronous>, transform_indices = @transform_2, window_bounds = array<i64: 1, 32>}, {pipeline_mode = #tpu.pipeline_mode<synchronous>, transform_indices = @transform_3, window_bounds = array<i64: 1, 32>}, {pipeline_mode = #tpu.pipeline_mode<synchronous>, transform_indices = @transform_4, window_bounds = array<i64: 2, 32>}, {pipeline_mode = #tpu.pipeline_mode<synchronous>, transform_indices = @transform_5, window_bounds = array<i64: 2, 32>}, {pipeline_mode = #tpu.pipeline_mode<synchronous>, transform_indices = @transform_6, window_bounds = array<i64: 2, 32, 96>}, {pipeline_mode = #tpu.pipeline_mode<synchronous>, transform_indices = @transform_7, window_bounds = array<i64: 2, 96>}, {pipeline_mode = #tpu.pipeline_mode<synchronous>, transform_indices = @transform_8, window_bounds = array<i64: 2, 32, 32>}, {pipeline_mode = #tpu.pipeline_mode<synchronous>, transform_indices = @transform_9, window_bounds = array<i64: 2, 32>}, {pipeline_mode = #tpu.pipeline_mode<synchronous>, transform_indices = @transform_10, window_bounds = array<i64: 2, 32>}, {pipeline_mode = #tpu.pipeline_mode<synchronous>, transform_indices = @transform_11, window_bounds = array<i64: 2, 32>}, {pipeline_mode = #tpu.pipeline_mode<synchronous>, transform_indices = @transform_12, window_bounds = array<i64: 2, 32, 128>}, {pipeline_mode = #tpu.pipeline_mode<synchronous>, transform_indices = @transform_13, window_bounds = array<i64: 2, 128>}, {pipeline_mode = #tpu.pipeline_mode<synchronous>, transform_indices = @transform_14, window_bounds = array<i64: 2, 128, 32>}, {pipeline_mode = #tpu.pipeline_mode<synchronous>, transform_indices = @transform_15, window_bounds = array<i64: 2, 32>}, {transform_indices = @transform_16, window_bounds = array<i64: 2, 128>}]} {
    %c0 = arith.constant 0 : index
    %c0_0 = arith.constant 0 : index
    %c0_1 = arith.constant 0 : index
    %0 = vector.load %arg1[%c0, %c0_0, %c0_1] : memref<2x8x32xf32, #tpu.memory_space<vmem>>, vector<2x8x32xf32>
    %1 = vector.shape_cast %0 : vector<2x8x32xf32> to vector<16x32xf32>
    %c0_2 = arith.constant 0 : index
    %c0_3 = arith.constant 0 : index
    %2 = vector.load %arg3[%c0_2, %c0_3] : memref<1x32xf32, #tpu.memory_space<vmem>>, vector<1x32xf32>
    %3 = vector.shape_cast %2 : vector<1x32xf32> to vector<32xf32>
    %c0_4 = arith.constant 0 : index
    %c0_5 = arith.constant 0 : index
    %4 = vector.load %arg4[%c0_4, %c0_5] : memref<1x32xf32, #tpu.memory_space<vmem>>, vector<1x32xf32>
    %5 = vector.shape_cast %4 : vector<1x32xf32> to vector<32xf32>
    %cst = arith.constant dense<0.000000e+00> : vector<16xf32>
    %6 = vector.multi_reduction <add>, %1, %cst [1] : vector<16x32xf32> to vector<16xf32>
    %7 = vector.shape_cast %6 : vector<16xf32> to vector<16x1xf32>
    %cst_6 = arith.constant 3.200000e+01 : f32
    %8 = vector.broadcast %cst_6 : f32 to vector<16x1xf32>
    %9 = arith.divf %7, %8 : vector<16x1xf32>
    %10 = vector.broadcast %9 : vector<16x1xf32> to vector<16x32xf32>
    %11 = arith.subf %1, %10 : vector<16x32xf32>
    %12 = arith.mulf %11, %11 : vector<16x32xf32>
    %cst_7 = arith.constant dense<0.000000e+00> : vector<16xf32>
    %13 = vector.multi_reduction <add>, %12, %cst_7 [1] : vector<16x32xf32> to vector<16xf32>
    %14 = vector.shape_cast %13 : vector<16xf32> to vector<16x1xf32>
    %cst_8 = arith.constant 3.200000e+01 : f32
    %15 = vector.broadcast %cst_8 : f32 to vector<16x1xf32>
    %16 = arith.divf %14, %15 : vector<16x1xf32>
    %cst_9 = arith.constant 9.99999993E-9 : f32
    %17 = vector.broadcast %cst_9 : f32 to vector<16x1xf32>
    %18 = arith.addf %16, %17 : vector<16x1xf32>
    %19 = math.rsqrt %18 : vector<16x1xf32>
    %20 = vector.broadcast %19 : vector<16x1xf32> to vector<16x32xf32>
    %21 = arith.mulf %11, %20 : vector<16x32xf32>
    %22 = vector.shape_cast %3 : vector<32xf32> to vector<1x32xf32>
    %23 = vector.broadcast %22 : vector<1x32xf32> to vector<16x32xf32>
    %24 = arith.mulf %21, %23 : vector<16x32xf32>
    %25 = vector.shape_cast %5 : vector<32xf32> to vector<1x32xf32>
    %26 = vector.broadcast %25 : vector<1x32xf32> to vector<16x32xf32>
    %27 = arith.addf %24, %26 : vector<16x32xf32>
    %28 = tpu.iota {dimensions = array<i32: 0>} : vector<8x8xi32>
    %29 = tpu.iota {dimensions = array<i32: 1>} : vector<8x8xi32>
    %30 = arith.cmpi sgt, %29, %28 : vector<8x8xi32>
    %cst_10 = arith.constant -1.000000e+30 : f32
    %cst_11 = arith.constant 0.000000e+00 : f32
    %31 = vector.broadcast %cst_10 : f32 to vector<8x8xf32>
    %32 = vector.broadcast %cst_11 : f32 to vector<8x8xf32>
    %33 = arith.select %30, %31, %32 : vector<8x8xi1>, vector<8x8xf32>
    %34 = vector.shape_cast %33 : vector<8x8xf32> to vector<1x8x8xf32>
    %c0_12 = arith.constant 0 : index
    %c0_13 = arith.constant 0 : index
    %35 = vector.load %arg5[%c0_12, %c0_13] : memref<2x32xf32, #tpu.memory_space<vmem>>, vector<1x32xf32>
    %36 = vector.shape_cast %35 : vector<1x32xf32> to vector<32xf32>
    %c0_14 = arith.constant 0 : index
    %c0_15 = arith.constant 0 : index
    %37 = vector.load %arg6[%c0_14, %c0_15] : memref<2x32xf32, #tpu.memory_space<vmem>>, vector<1x32xf32>
    %38 = vector.shape_cast %37 : vector<1x32xf32> to vector<32xf32>
    %cst_16 = arith.constant dense<0.000000e+00> : vector<16xf32>
    %39 = vector.multi_reduction <add>, %27, %cst_16 [1] : vector<16x32xf32> to vector<16xf32>
    %40 = vector.shape_cast %39 : vector<16xf32> to vector<16x1xf32>
    %cst_17 = arith.constant 3.200000e+01 : f32
    %41 = vector.broadcast %cst_17 : f32 to vector<16x1xf32>
    %42 = arith.divf %40, %41 : vector<16x1xf32>
    %43 = vector.broadcast %42 : vector<16x1xf32> to vector<16x32xf32>
    %44 = arith.subf %27, %43 : vector<16x32xf32>
    %45 = arith.mulf %44, %44 : vector<16x32xf32>
    %cst_18 = arith.constant dense<0.000000e+00> : vector<16xf32>
    %46 = vector.multi_reduction <add>, %45, %cst_18 [1] : vector<16x32xf32> to vector<16xf32>
    %47 = vector.shape_cast %46 : vector<16xf32> to vector<16x1xf32>
    %cst_19 = arith.constant 3.200000e+01 : f32
    %48 = vector.broadcast %cst_19 : f32 to vector<16x1xf32>
    %49 = arith.divf %47, %48 : vector<16x1xf32>
    %cst_20 = arith.constant 9.99999974E-6 : f32
    %50 = vector.broadcast %cst_20 : f32 to vector<16x1xf32>
    %51 = arith.addf %49, %50 : vector<16x1xf32>
    %52 = math.rsqrt %51 : vector<16x1xf32>
    %53 = vector.broadcast %52 : vector<16x1xf32> to vector<16x32xf32>
    %54 = arith.mulf %44, %53 : vector<16x32xf32>
    %55 = vector.shape_cast %36 : vector<32xf32> to vector<1x32xf32>
    %56 = vector.broadcast %55 : vector<1x32xf32> to vector<16x32xf32>
    %57 = arith.mulf %54, %56 : vector<16x32xf32>
    %58 = vector.shape_cast %38 : vector<32xf32> to vector<1x32xf32>
    %59 = vector.broadcast %58 : vector<1x32xf32> to vector<16x32xf32>
    %60 = arith.addf %57, %59 : vector<16x32xf32>
    %61 = arith.truncf %60 : vector<16x32xf32> to vector<16x32xbf16>
    %c0_21 = arith.constant 0 : index
    %c0_22 = arith.constant 0 : index
    %c0_23 = arith.constant 0 : index
    %62 = vector.load %arg7[%c0_21, %c0_22, %c0_23] : memref<2x32x96xbf16, #tpu.memory_space<vmem>>, vector<1x32x96xbf16>
    %63 = vector.shape_cast %62 : vector<1x32x96xbf16> to vector<32x96xbf16>
    %cst_24 = arith.constant dense<0.000000e+00> : vector<16x96xf32>
    %64 = tpu.matmul %61, %63, %cst_24 {dimension_numbers = #tpu.dot_dimension_numbers<[1], [0], [0], [1], [0, 0, 1, 1], [], []>} : vector<16x32xbf16>, vector<32x96xbf16>, vector<16x96xf32> -> vector<16x96xf32>
    %c0_25 = arith.constant 0 : index
    %c0_26 = arith.constant 0 : index
    %65 = vector.load %arg8[%c0_25, %c0_26] : memref<2x96xf32, #tpu.memory_space<vmem>>, vector<1x96xf32>
    %66 = vector.shape_cast %65 : vector<1x96xf32> to vector<96xf32>
    %67 = vector.shape_cast %66 : vector<96xf32> to vector<1x96xf32>
    %68 = vector.broadcast %67 : vector<1x96xf32> to vector<16x96xf32>
    %69 = arith.addf %64, %68 : vector<16x96xf32>
    %70 = vector.extract_strided_slice %69 {offsets = [0, 0], sizes = [16, 16], strides = [1, 1]} : vector<16x96xf32> to vector<16x16xf32>
    %71 = vector.extract_strided_slice %69 {offsets = [0, 32], sizes = [16, 16], strides = [1, 1]} : vector<16x96xf32> to vector<16x16xf32>
    %72 = vector.extract_strided_slice %69 {offsets = [0, 64], sizes = [16, 16], strides = [1, 1]} : vector<16x96xf32> to vector<16x16xf32>
    %cst_27 = arith.constant 2.500000e-01 : f32
    %73 = vector.broadcast %cst_27 : f32 to vector<16x16xf32>
    %74 = arith.mulf %70, %73 : vector<16x16xf32>
    %75 = vector.shape_cast %74 : vector<16x16xf32> to vector<2x8x16xf32>
    %76 = arith.truncf %75 : vector<2x8x16xf32> to vector<2x8x16xbf16>
    %77 = vector.shape_cast %71 : vector<16x16xf32> to vector<2x8x16xf32>
    %78 = arith.truncf %77 : vector<2x8x16xf32> to vector<2x8x16xbf16>
    %79 = vector.shape_cast %72 : vector<16x16xf32> to vector<2x8x16xf32>
    %80 = arith.truncf %79 : vector<2x8x16xf32> to vector<2x8x16xbf16>
    %cst_28 = arith.constant dense<0.000000e+00> : vector<2x8x8xf32>
    %81 = tpu.matmul %76, %78, %cst_28 {dimension_numbers = #tpu.dot_dimension_numbers<[2], [2], [1], [1], [0, 0, 0, 1, 1, 1], [0], [0]>} : vector<2x8x16xbf16>, vector<2x8x16xbf16>, vector<2x8x8xf32> -> vector<2x8x8xf32>
    %82 = vector.broadcast %34 : vector<1x8x8xf32> to vector<2x8x8xf32>
    %83 = arith.addf %81, %82 : vector<2x8x8xf32>
    %cst_29 = arith.constant dense<0xFF800000> : vector<2x8xf32>
    %84 = vector.multi_reduction <maximumf>, %83, %cst_29 [2] : vector<2x8x8xf32> to vector<2x8xf32>
    %85 = vector.shape_cast %84 : vector<2x8xf32> to vector<2x8x1xf32>
    %86 = vector.broadcast %85 : vector<2x8x1xf32> to vector<2x8x8xf32>
    %87 = arith.subf %83, %86 : vector<2x8x8xf32>
    %88 = math.exp %87 : vector<2x8x8xf32>
    %cst_30 = arith.constant dense<0.000000e+00> : vector<2x8xf32>
    %89 = vector.multi_reduction <add>, %88, %cst_30 [2] : vector<2x8x8xf32> to vector<2x8xf32>
    %90 = vector.shape_cast %89 : vector<2x8xf32> to vector<2x8x1xf32>
    %91 = tpu.reciprocal %90 {approx = true} : vector<2x8x1xf32> -> vector<2x8x1xf32>
    %92 = vector.broadcast %91 : vector<2x8x1xf32> to vector<2x8x8xf32>
    %93 = arith.mulf %88, %92 : vector<2x8x8xf32>
    %94 = arith.truncf %93 : vector<2x8x8xf32> to vector<2x8x8xbf16>
    %cst_31 = arith.constant dense<0.000000e+00> : vector<2x8x16xf32>
    %95 = tpu.matmul %94, %80, %cst_31 {dimension_numbers = #tpu.dot_dimension_numbers<[2], [1], [1], [2], [0, 0, 0, 1, 1, 2], [0], [0]>} : vector<2x8x8xbf16>, vector<2x8x16xbf16>, vector<2x8x16xf32> -> vector<2x8x16xf32>
    %96 = vector.shape_cast %95 : vector<2x8x16xf32> to vector<16x16xf32>
    %97 = vector.extract_strided_slice %69 {offsets = [0, 16], sizes = [16, 16], strides = [1, 1]} : vector<16x96xf32> to vector<16x16xf32>
    %98 = vector.extract_strided_slice %69 {offsets = [0, 48], sizes = [16, 16], strides = [1, 1]} : vector<16x96xf32> to vector<16x16xf32>
    %99 = vector.extract_strided_slice %69 {offsets = [0, 80], sizes = [16, 16], strides = [1, 1]} : vector<16x96xf32> to vector<16x16xf32>
    %cst_32 = arith.constant 2.500000e-01 : f32
    %100 = vector.broadcast %cst_32 : f32 to vector<16x16xf32>
    %101 = arith.mulf %97, %100 : vector<16x16xf32>
    %102 = vector.shape_cast %101 : vector<16x16xf32> to vector<2x8x16xf32>
    %103 = arith.truncf %102 : vector<2x8x16xf32> to vector<2x8x16xbf16>
    %104 = vector.shape_cast %98 : vector<16x16xf32> to vector<2x8x16xf32>
    %105 = arith.truncf %104 : vector<2x8x16xf32> to vector<2x8x16xbf16>
    %106 = vector.shape_cast %99 : vector<16x16xf32> to vector<2x8x16xf32>
    %107 = arith.truncf %106 : vector<2x8x16xf32> to vector<2x8x16xbf16>
    %cst_33 = arith.constant dense<0.000000e+00> : vector<2x8x8xf32>
    %108 = tpu.matmul %103, %105, %cst_33 {dimension_numbers = #tpu.dot_dimension_numbers<[2], [2], [1], [1], [0, 0, 0, 1, 1, 1], [0], [0]>} : vector<2x8x16xbf16>, vector<2x8x16xbf16>, vector<2x8x8xf32> -> vector<2x8x8xf32>
    %109 = vector.broadcast %34 : vector<1x8x8xf32> to vector<2x8x8xf32>
    %110 = arith.addf %108, %109 : vector<2x8x8xf32>
    %cst_34 = arith.constant dense<0xFF800000> : vector<2x8xf32>
    %111 = vector.multi_reduction <maximumf>, %110, %cst_34 [2] : vector<2x8x8xf32> to vector<2x8xf32>
    %112 = vector.shape_cast %111 : vector<2x8xf32> to vector<2x8x1xf32>
    %113 = vector.broadcast %112 : vector<2x8x1xf32> to vector<2x8x8xf32>
    %114 = arith.subf %110, %113 : vector<2x8x8xf32>
    %115 = math.exp %114 : vector<2x8x8xf32>
    %cst_35 = arith.constant dense<0.000000e+00> : vector<2x8xf32>
    %116 = vector.multi_reduction <add>, %115, %cst_35 [2] : vector<2x8x8xf32> to vector<2x8xf32>
    %117 = vector.shape_cast %116 : vector<2x8xf32> to vector<2x8x1xf32>
    %118 = tpu.reciprocal %117 {approx = true} : vector<2x8x1xf32> -> vector<2x8x1xf32>
    %119 = vector.broadcast %118 : vector<2x8x1xf32> to vector<2x8x8xf32>
    %120 = arith.mulf %115, %119 : vector<2x8x8xf32>
    %121 = arith.truncf %120 : vector<2x8x8xf32> to vector<2x8x8xbf16>
    %cst_36 = arith.constant dense<0.000000e+00> : vector<2x8x16xf32>
    %122 = tpu.matmul %121, %107, %cst_36 {dimension_numbers = #tpu.dot_dimension_numbers<[2], [1], [1], [2], [0, 0, 0, 1, 1, 2], [0], [0]>} : vector<2x8x8xbf16>, vector<2x8x16xbf16>, vector<2x8x16xf32> -> vector<2x8x16xf32>
    %123 = vector.shape_cast %122 : vector<2x8x16xf32> to vector<16x16xf32>
    %124 = tpu.concatenate %96, %123 in 1 : vector<16x16xf32>, vector<16x16xf32> -> vector<16x32xf32>
    %125 = arith.truncf %124 : vector<16x32xf32> to vector<16x32xbf16>
    %c0_37 = arith.constant 0 : index
    %c0_38 = arith.constant 0 : index
    %c0_39 = arith.constant 0 : index
    %126 = vector.load %arg9[%c0_37, %c0_38, %c0_39] : memref<2x32x32xbf16, #tpu.memory_space<vmem>>, vector<1x32x32xbf16>
    %127 = vector.shape_cast %126 : vector<1x32x32xbf16> to vector<32x32xbf16>
    %cst_40 = arith.constant dense<0.000000e+00> : vector<16x32xf32>
    %128 = tpu.matmul %125, %127, %cst_40 {dimension_numbers = #tpu.dot_dimension_numbers<[1], [0], [0], [1], [0, 0, 1, 1], [], []>} : vector<16x32xbf16>, vector<32x32xbf16>, vector<16x32xf32> -> vector<16x32xf32>
    %c0_41 = arith.constant 0 : index
    %c0_42 = arith.constant 0 : index
    %129 = vector.load %arg10[%c0_41, %c0_42] : memref<2x32xf32, #tpu.memory_space<vmem>>, vector<1x32xf32>
    %130 = vector.shape_cast %129 : vector<1x32xf32> to vector<32xf32>
    %131 = vector.shape_cast %130 : vector<32xf32> to vector<1x32xf32>
    %132 = vector.broadcast %131 : vector<1x32xf32> to vector<16x32xf32>
    %133 = arith.addf %128, %132 : vector<16x32xf32>
    %134 = arith.addf %27, %133 : vector<16x32xf32>
    %c0_43 = arith.constant 0 : index
    %c0_44 = arith.constant 0 : index
    %135 = vector.load %arg11[%c0_43, %c0_44] : memref<2x32xf32, #tpu.memory_space<vmem>>, vector<1x32xf32>
    %136 = vector.shape_cast %135 : vector<1x32xf32> to vector<32xf32>
    %c0_45 = arith.constant 0 : index
    %c0_46 = arith.constant 0 : index
    %137 = vector.load %arg12[%c0_45, %c0_46] : memref<2x32xf32, #tpu.memory_space<vmem>>, vector<1x32xf32>
    %138 = vector.shape_cast %137 : vector<1x32xf32> to vector<32xf32>
    %cst_47 = arith.constant dense<0.000000e+00> : vector<16xf32>
    %139 = vector.multi_reduction <add>, %134, %cst_47 [1] : vector<16x32xf32> to vector<16xf32>
    %140 = vector.shape_cast %139 : vector<16xf32> to vector<16x1xf32>
    %cst_48 = arith.constant 3.200000e+01 : f32
    %141 = vector.broadcast %cst_48 : f32 to vector<16x1xf32>
    %142 = arith.divf %140, %141 : vector<16x1xf32>
    %143 = vector.broadcast %142 : vector<16x1xf32> to vector<16x32xf32>
    %144 = arith.subf %134, %143 : vector<16x32xf32>
    %145 = arith.mulf %144, %144 : vector<16x32xf32>
    %cst_49 = arith.constant dense<0.000000e+00> : vector<16xf32>
    %146 = vector.multi_reduction <add>, %145, %cst_49 [1] : vector<16x32xf32> to vector<16xf32>
    %147 = vector.shape_cast %146 : vector<16xf32> to vector<16x1xf32>
    %cst_50 = arith.constant 3.200000e+01 : f32
    %148 = vector.broadcast %cst_50 : f32 to vector<16x1xf32>
    %149 = arith.divf %147, %148 : vector<16x1xf32>
    %cst_51 = arith.constant 9.99999974E-6 : f32
    %150 = vector.broadcast %cst_51 : f32 to vector<16x1xf32>
    %151 = arith.addf %149, %150 : vector<16x1xf32>
    %152 = math.rsqrt %151 : vector<16x1xf32>
    %153 = vector.broadcast %152 : vector<16x1xf32> to vector<16x32xf32>
    %154 = arith.mulf %144, %153 : vector<16x32xf32>
    %155 = vector.shape_cast %136 : vector<32xf32> to vector<1x32xf32>
    %156 = vector.broadcast %155 : vector<1x32xf32> to vector<16x32xf32>
    %157 = arith.mulf %154, %156 : vector<16x32xf32>
    %158 = vector.shape_cast %138 : vector<32xf32> to vector<1x32xf32>
    %159 = vector.broadcast %158 : vector<1x32xf32> to vector<16x32xf32>
    %160 = arith.addf %157, %159 : vector<16x32xf32>
    %161 = arith.truncf %160 : vector<16x32xf32> to vector<16x32xbf16>
    %c0_52 = arith.constant 0 : index
    %c0_53 = arith.constant 0 : index
    %c0_54 = arith.constant 0 : index
    %162 = vector.load %arg13[%c0_52, %c0_53, %c0_54] : memref<2x32x128xbf16, #tpu.memory_space<vmem>>, vector<1x32x128xbf16>
    %163 = vector.shape_cast %162 : vector<1x32x128xbf16> to vector<32x128xbf16>
    %cst_55 = arith.constant dense<0.000000e+00> : vector<16x128xf32>
    %164 = tpu.matmul %161, %163, %cst_55 {dimension_numbers = #tpu.dot_dimension_numbers<[1], [0], [0], [1], [0, 0, 1, 1], [], []>} : vector<16x32xbf16>, vector<32x128xbf16>, vector<16x128xf32> -> vector<16x128xf32>
    %c0_56 = arith.constant 0 : index
    %c0_57 = arith.constant 0 : index
    %165 = vector.load %arg14[%c0_56, %c0_57] : memref<2x128xf32, #tpu.memory_space<vmem>>, vector<1x128xf32>
    %166 = vector.shape_cast %165 : vector<1x128xf32> to vector<128xf32>
    %167 = vector.shape_cast %166 : vector<128xf32> to vector<1x128xf32>
    %168 = vector.broadcast %167 : vector<1x128xf32> to vector<16x128xf32>
    %169 = arith.addf %164, %168 : vector<16x128xf32>
    %cst_58 = arith.constant 5.000000e-01 : f32
    %170 = vector.broadcast %cst_58 : f32 to vector<16x128xf32>
    %171 = arith.mulf %170, %169 : vector<16x128xf32>
    %172 = arith.mulf %169, %169 : vector<16x128xf32>
    %173 = arith.mulf %172, %169 : vector<16x128xf32>
    %cst_59 = arith.constant 4.471500e-02 : f32
    %174 = vector.broadcast %cst_59 : f32 to vector<16x128xf32>
    %175 = arith.mulf %174, %173 : vector<16x128xf32>
    %176 = arith.addf %169, %175 : vector<16x128xf32>
    %cst_60 = arith.constant 0.797884583 : f32
    %177 = vector.broadcast %cst_60 : f32 to vector<16x128xf32>
    %178 = arith.mulf %177, %176 : vector<16x128xf32>
    %179 = math.tanh %178 : vector<16x128xf32>
    %cst_61 = arith.constant 1.000000e+00 : f32
    %180 = vector.broadcast %cst_61 : f32 to vector<16x128xf32>
    %181 = arith.addf %180, %179 : vector<16x128xf32>
    %182 = arith.mulf %171, %181 : vector<16x128xf32>
    %183 = arith.truncf %182 : vector<16x128xf32> to vector<16x128xbf16>
    %c0_62 = arith.constant 0 : index
    %c0_63 = arith.constant 0 : index
    %c0_64 = arith.constant 0 : index
    %184 = vector.load %arg15[%c0_62, %c0_63, %c0_64] : memref<2x128x32xbf16, #tpu.memory_space<vmem>>, vector<1x128x32xbf16>
    %185 = vector.shape_cast %184 : vector<1x128x32xbf16> to vector<128x32xbf16>
    %cst_65 = arith.constant dense<0.000000e+00> : vector<16x32xf32>
    %186 = tpu.matmul %183, %185, %cst_65 {dimension_numbers = #tpu.dot_dimension_numbers<[1], [0], [0], [1], [0, 0, 1, 1], [], []>} : vector<16x128xbf16>, vector<128x32xbf16>, vector<16x32xf32> -> vector<16x32xf32>
    %c0_66 = arith.constant 0 : index
    %c0_67 = arith.constant 0 : index
    %187 = vector.load %arg16[%c0_66, %c0_67] : memref<2x32xf32, #tpu.memory_space<vmem>>, vector<1x32xf32>
    %188 = vector.shape_cast %187 : vector<1x32xf32> to vector<32xf32>
    %189 = vector.shape_cast %188 : vector<32xf32> to vector<1x32xf32>
    %190 = vector.broadcast %189 : vector<1x32xf32> to vector<16x32xf32>
    %191 = arith.addf %186, %190 : vector<16x32xf32>
    %192 = arith.addf %134, %191 : vector<16x32xf32>
    %c1 = arith.constant 1 : index
    %c0_68 = arith.constant 0 : index
    %193 = vector.load %arg5[%c1, %c0_68] : memref<2x32xf32, #tpu.memory_space<vmem>>, vector<1x32xf32>
    %194 = vector.shape_cast %193 : vector<1x32xf32> to vector<32xf32>
    %c1_69 = arith.constant 1 : index
    %c0_70 = arith.constant 0 : index
    %195 = vector.load %arg6[%c1_69, %c0_70] : memref<2x32xf32, #tpu.memory_space<vmem>>, vector<1x32xf32>
    %196 = vector.shape_cast %195 : vector<1x32xf32> to vector<32xf32>
    %cst_71 = arith.constant dense<0.000000e+00> : vector<16xf32>
    %197 = vector.multi_reduction <add>, %192, %cst_71 [1] : vector<16x32xf32> to vector<16xf32>
    %198 = vector.shape_cast %197 : vector<16xf32> to vector<16x1xf32>
    %cst_72 = arith.constant 3.200000e+01 : f32
    %199 = vector.broadcast %cst_72 : f32 to vector<16x1xf32>
    %200 = arith.divf %198, %199 : vector<16x1xf32>
    %201 = vector.broadcast %200 : vector<16x1xf32> to vector<16x32xf32>
    %202 = arith.subf %192, %201 : vector<16x32xf32>
    %203 = arith.mulf %202, %202 : vector<16x32xf32>
    %cst_73 = arith.constant dense<0.000000e+00> : vector<16xf32>
    %204 = vector.multi_reduction <add>, %203, %cst_73 [1] : vector<16x32xf32> to vector<16xf32>
    %205 = vector.shape_cast %204 : vector<16xf32> to vector<16x1xf32>
    %cst_74 = arith.constant 3.200000e+01 : f32
    %206 = vector.broadcast %cst_74 : f32 to vector<16x1xf32>
    %207 = arith.divf %205, %206 : vector<16x1xf32>
    %cst_75 = arith.constant 9.99999974E-6 : f32
    %208 = vector.broadcast %cst_75 : f32 to vector<16x1xf32>
    %209 = arith.addf %207, %208 : vector<16x1xf32>
    %210 = math.rsqrt %209 : vector<16x1xf32>
    %211 = vector.broadcast %210 : vector<16x1xf32> to vector<16x32xf32>
    %212 = arith.mulf %202, %211 : vector<16x32xf32>
    %213 = vector.shape_cast %194 : vector<32xf32> to vector<1x32xf32>
    %214 = vector.broadcast %213 : vector<1x32xf32> to vector<16x32xf32>
    %215 = arith.mulf %212, %214 : vector<16x32xf32>
    %216 = vector.shape_cast %196 : vector<32xf32> to vector<1x32xf32>
    %217 = vector.broadcast %216 : vector<1x32xf32> to vector<16x32xf32>
    %218 = arith.addf %215, %217 : vector<16x32xf32>
    %219 = arith.truncf %218 : vector<16x32xf32> to vector<16x32xbf16>
    %c1_76 = arith.constant 1 : index
    %c0_77 = arith.constant 0 : index
    %c0_78 = arith.constant 0 : index
    %220 = vector.load %arg7[%c1_76, %c0_77, %c0_78] : memref<2x32x96xbf16, #tpu.memory_space<vmem>>, vector<1x32x96xbf16>
    %221 = vector.shape_cast %220 : vector<1x32x96xbf16> to vector<32x96xbf16>
    %cst_79 = arith.constant dense<0.000000e+00> : vector<16x96xf32>
    %222 = tpu.matmul %219, %221, %cst_79 {dimension_numbers = #tpu.dot_dimension_numbers<[1], [0], [0], [1], [0, 0, 1, 1], [], []>} : vector<16x32xbf16>, vector<32x96xbf16>, vector<16x96xf32> -> vector<16x96xf32>
    %c1_80 = arith.constant 1 : index
    %c0_81 = arith.constant 0 : index
    %223 = vector.load %arg8[%c1_80, %c0_81] : memref<2x96xf32, #tpu.memory_space<vmem>>, vector<1x96xf32>
    %224 = vector.shape_cast %223 : vector<1x96xf32> to vector<96xf32>
    %225 = vector.shape_cast %224 : vector<96xf32> to vector<1x96xf32>
    %226 = vector.broadcast %225 : vector<1x96xf32> to vector<16x96xf32>
    %227 = arith.addf %222, %226 : vector<16x96xf32>
    %228 = vector.extract_strided_slice %227 {offsets = [0, 0], sizes = [16, 16], strides = [1, 1]} : vector<16x96xf32> to vector<16x16xf32>
    %229 = vector.extract_strided_slice %227 {offsets = [0, 32], sizes = [16, 16], strides = [1, 1]} : vector<16x96xf32> to vector<16x16xf32>
    %230 = vector.extract_strided_slice %227 {offsets = [0, 64], sizes = [16, 16], strides = [1, 1]} : vector<16x96xf32> to vector<16x16xf32>
    %cst_82 = arith.constant 2.500000e-01 : f32
    %231 = vector.broadcast %cst_82 : f32 to vector<16x16xf32>
    %232 = arith.mulf %228, %231 : vector<16x16xf32>
    %233 = vector.shape_cast %232 : vector<16x16xf32> to vector<2x8x16xf32>
    %234 = arith.truncf %233 : vector<2x8x16xf32> to vector<2x8x16xbf16>
    %235 = vector.shape_cast %229 : vector<16x16xf32> to vector<2x8x16xf32>
    %236 = arith.truncf %235 : vector<2x8x16xf32> to vector<2x8x16xbf16>
    %237 = vector.shape_cast %230 : vector<16x16xf32> to vector<2x8x16xf32>
    %238 = arith.truncf %237 : vector<2x8x16xf32> to vector<2x8x16xbf16>
    %cst_83 = arith.constant dense<0.000000e+00> : vector<2x8x8xf32>
    %239 = tpu.matmul %234, %236, %cst_83 {dimension_numbers = #tpu.dot_dimension_numbers<[2], [2], [1], [1], [0, 0, 0, 1, 1, 1], [0], [0]>} : vector<2x8x16xbf16>, vector<2x8x16xbf16>, vector<2x8x8xf32> -> vector<2x8x8xf32>
    %240 = vector.broadcast %34 : vector<1x8x8xf32> to vector<2x8x8xf32>
    %241 = arith.addf %239, %240 : vector<2x8x8xf32>
    %cst_84 = arith.constant dense<0xFF800000> : vector<2x8xf32>
    %242 = vector.multi_reduction <maximumf>, %241, %cst_84 [2] : vector<2x8x8xf32> to vector<2x8xf32>
    %243 = vector.shape_cast %242 : vector<2x8xf32> to vector<2x8x1xf32>
    %244 = vector.broadcast %243 : vector<2x8x1xf32> to vector<2x8x8xf32>
    %245 = arith.subf %241, %244 : vector<2x8x8xf32>
    %246 = math.exp %245 : vector<2x8x8xf32>
    %cst_85 = arith.constant dense<0.000000e+00> : vector<2x8xf32>
    %247 = vector.multi_reduction <add>, %246, %cst_85 [2] : vector<2x8x8xf32> to vector<2x8xf32>
    %248 = vector.shape_cast %247 : vector<2x8xf32> to vector<2x8x1xf32>
    %249 = tpu.reciprocal %248 {approx = true} : vector<2x8x1xf32> -> vector<2x8x1xf32>
    %250 = vector.broadcast %249 : vector<2x8x1xf32> to vector<2x8x8xf32>
    %251 = arith.mulf %246, %250 : vector<2x8x8xf32>
    %252 = arith.truncf %251 : vector<2x8x8xf32> to vector<2x8x8xbf16>
    %cst_86 = arith.constant dense<0.000000e+00> : vector<2x8x16xf32>
    %253 = tpu.matmul %252, %238, %cst_86 {dimension_numbers = #tpu.dot_dimension_numbers<[2], [1], [1], [2], [0, 0, 0, 1, 1, 2], [0], [0]>} : vector<2x8x8xbf16>, vector<2x8x16xbf16>, vector<2x8x16xf32> -> vector<2x8x16xf32>
    %254 = vector.shape_cast %253 : vector<2x8x16xf32> to vector<16x16xf32>
    %255 = vector.extract_strided_slice %227 {offsets = [0, 16], sizes = [16, 16], strides = [1, 1]} : vector<16x96xf32> to vector<16x16xf32>
    %256 = vector.extract_strided_slice %227 {offsets = [0, 48], sizes = [16, 16], strides = [1, 1]} : vector<16x96xf32> to vector<16x16xf32>
    %257 = vector.extract_strided_slice %227 {offsets = [0, 80], sizes = [16, 16], strides = [1, 1]} : vector<16x96xf32> to vector<16x16xf32>
    %cst_87 = arith.constant 2.500000e-01 : f32
    %258 = vector.broadcast %cst_87 : f32 to vector<16x16xf32>
    %259 = arith.mulf %255, %258 : vector<16x16xf32>
    %260 = vector.shape_cast %259 : vector<16x16xf32> to vector<2x8x16xf32>
    %261 = arith.truncf %260 : vector<2x8x16xf32> to vector<2x8x16xbf16>
    %262 = vector.shape_cast %256 : vector<16x16xf32> to vector<2x8x16xf32>
    %263 = arith.truncf %262 : vector<2x8x16xf32> to vector<2x8x16xbf16>
    %264 = vector.shape_cast %257 : vector<16x16xf32> to vector<2x8x16xf32>
    %265 = arith.truncf %264 : vector<2x8x16xf32> to vector<2x8x16xbf16>
    %cst_88 = arith.constant dense<0.000000e+00> : vector<2x8x8xf32>
    %266 = tpu.matmul %261, %263, %cst_88 {dimension_numbers = #tpu.dot_dimension_numbers<[2], [2], [1], [1], [0, 0, 0, 1, 1, 1], [0], [0]>} : vector<2x8x16xbf16>, vector<2x8x16xbf16>, vector<2x8x8xf32> -> vector<2x8x8xf32>
    %267 = vector.broadcast %34 : vector<1x8x8xf32> to vector<2x8x8xf32>
    %268 = arith.addf %266, %267 : vector<2x8x8xf32>
    %cst_89 = arith.constant dense<0xFF800000> : vector<2x8xf32>
    %269 = vector.multi_reduction <maximumf>, %268, %cst_89 [2] : vector<2x8x8xf32> to vector<2x8xf32>
    %270 = vector.shape_cast %269 : vector<2x8xf32> to vector<2x8x1xf32>
    %271 = vector.broadcast %270 : vector<2x8x1xf32> to vector<2x8x8xf32>
    %272 = arith.subf %268, %271 : vector<2x8x8xf32>
    %273 = math.exp %272 : vector<2x8x8xf32>
    %cst_90 = arith.constant dense<0.000000e+00> : vector<2x8xf32>
    %274 = vector.multi_reduction <add>, %273, %cst_90 [2] : vector<2x8x8xf32> to vector<2x8xf32>
    %275 = vector.shape_cast %274 : vector<2x8xf32> to vector<2x8x1xf32>
    %276 = tpu.reciprocal %275 {approx = true} : vector<2x8x1xf32> -> vector<2x8x1xf32>
    %277 = vector.broadcast %276 : vector<2x8x1xf32> to vector<2x8x8xf32>
    %278 = arith.mulf %273, %277 : vector<2x8x8xf32>
    %279 = arith.truncf %278 : vector<2x8x8xf32> to vector<2x8x8xbf16>
    %cst_91 = arith.constant dense<0.000000e+00> : vector<2x8x16xf32>
    %280 = tpu.matmul %279, %265, %cst_91 {dimension_numbers = #tpu.dot_dimension_numbers<[2], [1], [1], [2], [0, 0, 0, 1, 1, 2], [0], [0]>} : vector<2x8x8xbf16>, vector<2x8x16xbf16>, vector<2x8x16xf32> -> vector<2x8x16xf32>
    %281 = vector.shape_cast %280 : vector<2x8x16xf32> to vector<16x16xf32>
    %282 = tpu.concatenate %254, %281 in 1 : vector<16x16xf32>, vector<16x16xf32> -> vector<16x32xf32>
    %283 = arith.truncf %282 : vector<16x32xf32> to vector<16x32xbf16>
    %c1_92 = arith.constant 1 : index
    %c0_93 = arith.constant 0 : index
    %c0_94 = arith.constant 0 : index
    %284 = vector.load %arg9[%c1_92, %c0_93, %c0_94] : memref<2x32x32xbf16, #tpu.memory_space<vmem>>, vector<1x32x32xbf16>
    %285 = vector.shape_cast %284 : vector<1x32x32xbf16> to vector<32x32xbf16>
    %cst_95 = arith.constant dense<0.000000e+00> : vector<16x32xf32>
    %286 = tpu.matmul %283, %285, %cst_95 {dimension_numbers = #tpu.dot_dimension_numbers<[1], [0], [0], [1], [0, 0, 1, 1], [], []>} : vector<16x32xbf16>, vector<32x32xbf16>, vector<16x32xf32> -> vector<16x32xf32>
    %c1_96 = arith.constant 1 : index
    %c0_97 = arith.constant 0 : index
    %287 = vector.load %arg10[%c1_96, %c0_97] : memref<2x32xf32, #tpu.memory_space<vmem>>, vector<1x32xf32>
    %288 = vector.shape_cast %287 : vector<1x32xf32> to vector<32xf32>
    %289 = vector.shape_cast %288 : vector<32xf32> to vector<1x32xf32>
    %290 = vector.broadcast %289 : vector<1x32xf32> to vector<16x32xf32>
    %291 = arith.addf %286, %290 : vector<16x32xf32>
    %292 = arith.addf %192, %291 : vector<16x32xf32>
    %c1_98 = arith.constant 1 : index
    %c0_99 = arith.constant 0 : index
    %293 = vector.load %arg11[%c1_98, %c0_99] : memref<2x32xf32, #tpu.memory_space<vmem>>, vector<1x32xf32>
    %294 = vector.shape_cast %293 : vector<1x32xf32> to vector<32xf32>
    %c1_100 = arith.constant 1 : index
    %c0_101 = arith.constant 0 : index
    %295 = vector.load %arg12[%c1_100, %c0_101] : memref<2x32xf32, #tpu.memory_space<vmem>>, vector<1x32xf32>
    %296 = vector.shape_cast %295 : vector<1x32xf32> to vector<32xf32>
    %cst_102 = arith.constant dense<0.000000e+00> : vector<16xf32>
    %297 = vector.multi_reduction <add>, %292, %cst_102 [1] : vector<16x32xf32> to vector<16xf32>
    %298 = vector.shape_cast %297 : vector<16xf32> to vector<16x1xf32>
    %cst_103 = arith.constant 3.200000e+01 : f32
    %299 = vector.broadcast %cst_103 : f32 to vector<16x1xf32>
    %300 = arith.divf %298, %299 : vector<16x1xf32>
    %301 = vector.broadcast %300 : vector<16x1xf32> to vector<16x32xf32>
    %302 = arith.subf %292, %301 : vector<16x32xf32>
    %303 = arith.mulf %302, %302 : vector<16x32xf32>
    %cst_104 = arith.constant dense<0.000000e+00> : vector<16xf32>
    %304 = vector.multi_reduction <add>, %303, %cst_104 [1] : vector<16x32xf32> to vector<16xf32>
    %305 = vector.shape_cast %304 : vector<16xf32> to vector<16x1xf32>
    %cst_105 = arith.constant 3.200000e+01 : f32
    %306 = vector.broadcast %cst_105 : f32 to vector<16x1xf32>
    %307 = arith.divf %305, %306 : vector<16x1xf32>
    %cst_106 = arith.constant 9.99999974E-6 : f32
    %308 = vector.broadcast %cst_106 : f32 to vector<16x1xf32>
    %309 = arith.addf %307, %308 : vector<16x1xf32>
    %310 = math.rsqrt %309 : vector<16x1xf32>
    %311 = vector.broadcast %310 : vector<16x1xf32> to vector<16x32xf32>
    %312 = arith.mulf %302, %311 : vector<16x32xf32>
    %313 = vector.shape_cast %294 : vector<32xf32> to vector<1x32xf32>
    %314 = vector.broadcast %313 : vector<1x32xf32> to vector<16x32xf32>
    %315 = arith.mulf %312, %314 : vector<16x32xf32>
    %316 = vector.shape_cast %296 : vector<32xf32> to vector<1x32xf32>
    %317 = vector.broadcast %316 : vector<1x32xf32> to vector<16x32xf32>
    %318 = arith.addf %315, %317 : vector<16x32xf32>
    %319 = arith.truncf %318 : vector<16x32xf32> to vector<16x32xbf16>
    %c1_107 = arith.constant 1 : index
    %c0_108 = arith.constant 0 : index
    %c0_109 = arith.constant 0 : index
    %320 = vector.load %arg13[%c1_107, %c0_108, %c0_109] : memref<2x32x128xbf16, #tpu.memory_space<vmem>>, vector<1x32x128xbf16>
    %321 = vector.shape_cast %320 : vector<1x32x128xbf16> to vector<32x128xbf16>
    %cst_110 = arith.constant dense<0.000000e+00> : vector<16x128xf32>
    %322 = tpu.matmul %319, %321, %cst_110 {dimension_numbers = #tpu.dot_dimension_numbers<[1], [0], [0], [1], [0, 0, 1, 1], [], []>} : vector<16x32xbf16>, vector<32x128xbf16>, vector<16x128xf32> -> vector<16x128xf32>
    %c1_111 = arith.constant 1 : index
    %c0_112 = arith.constant 0 : index
    %323 = vector.load %arg14[%c1_111, %c0_112] : memref<2x128xf32, #tpu.memory_space<vmem>>, vector<1x128xf32>
    %324 = vector.shape_cast %323 : vector<1x128xf32> to vector<128xf32>
    %325 = vector.shape_cast %324 : vector<128xf32> to vector<1x128xf32>
    %326 = vector.broadcast %325 : vector<1x128xf32> to vector<16x128xf32>
    %327 = arith.addf %322, %326 : vector<16x128xf32>
    %cst_113 = arith.constant 5.000000e-01 : f32
    %328 = vector.broadcast %cst_113 : f32 to vector<16x128xf32>
    %329 = arith.mulf %328, %327 : vector<16x128xf32>
    %330 = arith.mulf %327, %327 : vector<16x128xf32>
    %331 = arith.mulf %330, %327 : vector<16x128xf32>
    %cst_114 = arith.constant 4.471500e-02 : f32
    %332 = vector.broadcast %cst_114 : f32 to vector<16x128xf32>
    %333 = arith.mulf %332, %331 : vector<16x128xf32>
    %334 = arith.addf %327, %333 : vector<16x128xf32>
    %cst_115 = arith.constant 0.797884583 : f32
    %335 = vector.broadcast %cst_115 : f32 to vector<16x128xf32>
    %336 = arith.mulf %335, %334 : vector<16x128xf32>
    %337 = math.tanh %336 : vector<16x128xf32>
    %cst_116 = arith.constant 1.000000e+00 : f32
    %338 = vector.broadcast %cst_116 : f32 to vector<16x128xf32>
    %339 = arith.addf %338, %337 : vector<16x128xf32>
    %340 = arith.mulf %329, %339 : vector<16x128xf32>
    %341 = arith.truncf %340 : vector<16x128xf32> to vector<16x128xbf16>
    %c1_117 = arith.constant 1 : index
    %c0_118 = arith.constant 0 : index
    %c0_119 = arith.constant 0 : index
    %342 = vector.load %arg15[%c1_117, %c0_118, %c0_119] : memref<2x128x32xbf16, #tpu.memory_space<vmem>>, vector<1x128x32xbf16>
    %343 = vector.shape_cast %342 : vector<1x128x32xbf16> to vector<128x32xbf16>
    %cst_120 = arith.constant dense<0.000000e+00> : vector<16x32xf32>
    %344 = tpu.matmul %341, %343, %cst_120 {dimension_numbers = #tpu.dot_dimension_numbers<[1], [0], [0], [1], [0, 0, 1, 1], [], []>} : vector<16x128xbf16>, vector<128x32xbf16>, vector<16x32xf32> -> vector<16x32xf32>
    %c1_121 = arith.constant 1 : index
    %c0_122 = arith.constant 0 : index
    %345 = vector.load %arg16[%c1_121, %c0_122] : memref<2x32xf32, #tpu.memory_space<vmem>>, vector<1x32xf32>
    %346 = vector.shape_cast %345 : vector<1x32xf32> to vector<32xf32>
    %347 = vector.shape_cast %346 : vector<32xf32> to vector<1x32xf32>
    %348 = vector.broadcast %347 : vector<1x32xf32> to vector<16x32xf32>
    %349 = arith.addf %344, %348 : vector<16x32xf32>
    %350 = arith.addf %292, %349 : vector<16x32xf32>
    %351 = vector.shape_cast %350 : vector<16x32xf32> to vector<2x8x32xf32>
    %352 = arith.truncf %351 : vector<2x8x32xf32> to vector<2x8x32xbf16>
    %c0_123 = arith.constant 0 : index
    %c0_124 = arith.constant 0 : index
    %c0_125 = arith.constant 0 : index
    %c0_126 = arith.constant 0 : index
    %353 = vector.load %arg2[%c0_123, %c0_124, %c0_125, %c0_126] : memref<2x8x16x32xbf16, #tpu.memory_space<vmem>>, vector<2x8x16x32xbf16>
    %354 = vector.shape_cast %353 : vector<2x8x16x32xbf16> to vector<2x128x32xbf16>
    %cst_127 = arith.constant dense<0.000000e+00> : vector<2x8x128xf32>
    %355 = tpu.matmul %352, %354, %cst_127 {dimension_numbers = #tpu.dot_dimension_numbers<[2], [2], [1], [1], [0, 0, 0, 1, 1, 1], [0], [0]>} : vector<2x8x32xbf16>, vector<2x128x32xbf16>, vector<2x8x128xf32> -> vector<2x8x128xf32>
    %356 = tpu.iota {dimensions = array<i32: 1>} : vector<8x128xi32>
    %357 = tpu.iota {dimensions = array<i32: 0>} : vector<8x128xi32>
    %c16_i32 = arith.constant 16 : i32
    %358 = vector.broadcast %c16_i32 : i32 to vector<8x128xi32>
    %359 = arith.muli %357, %358 : vector<8x128xi32>
    %360 = arith.cmpi sge, %356, %359 : vector<8x128xi32>
    %c1_i32 = arith.constant 1 : i32
    %361 = vector.broadcast %c1_i32 : i32 to vector<8x128xi32>
    %362 = arith.addi %357, %361 : vector<8x128xi32>
    %c16_i32_128 = arith.constant 16 : i32
    %363 = vector.broadcast %c16_i32_128 : i32 to vector<8x128xi32>
    %364 = arith.muli %362, %363 : vector<8x128xi32>
    %365 = arith.cmpi slt, %356, %364 : vector<8x128xi32>
    %366 = arith.andi %360, %365 : vector<8x128xi1>
    %367 = vector.shape_cast %366 : vector<8x128xi1> to vector<1x8x128xi1>
    %cst_129 = arith.constant 0.000000e+00 : f32
    %368 = vector.shape_cast %367 : vector<1x8x128xi1> to vector<1x8x128xi1>
    %369 = vector.broadcast %368 : vector<1x8x128xi1> to vector<2x8x128xi1>
    %370 = vector.broadcast %cst_129 : f32 to vector<2x8x128xf32>
    %371 = arith.select %369, %355, %370 : vector<2x8x128xi1>, vector<2x8x128xf32>
    %cst_130 = arith.constant dense<0.000000e+00> : vector<2x128xf32>
    %372 = vector.multi_reduction <add>, %371, %cst_130 [1] : vector<2x8x128xf32> to vector<2x128xf32>
    %c0_131 = arith.constant 0 : index
    %c0_132 = arith.constant 0 : index
    %373 = vector.load %arg17[%c0_131, %c0_132] : memref<2x128xf32, #tpu.memory_space<vmem>>, vector<2x128xf32>
    tpu.vector_store %arg17[%c0_131, %c0_132], %372 {strides = array<i32>} : memref<2x128xf32, #tpu.memory_space<vmem>>, vector<2x128xf32>,
    return
  }
  func.func @transform_0(%arg0: i32) -> (i32, i32, i32) {
    %c0_i32 = arith.constant 0 : i32
    %c0_i32_0 = arith.constant 0 : i32
    %c0_i32_1 = arith.constant 0 : i32
    return %arg0, %c0_i32, %c0_i32_0 : i32, i32, i32
  }
  func.func @transform_1(%arg0: i32) -> (i32, i32, i32, i32) {
    %c0_i32 = arith.constant 0 : i32
    %c0_i32_0 = arith.constant 0 : i32
    %c0_i32_1 = arith.constant 0 : i32
    %c0_i32_2 = arith.constant 0 : i32
    return %arg0, %c0_i32, %c0_i32_0, %c0_i32_1 : i32, i32, i32, i32
  }
  func.func @transform_2(%arg0: i32) -> (i32, i32) {
    %c0_i32 = arith.constant 0 : i32
    %c0_i32_0 = arith.constant 0 : i32
    %c0_i32_1 = arith.constant 0 : i32
    return %c0_i32, %c0_i32_0 : i32, i32
  }
  func.func @transform_3(%arg0: i32) -> (i32, i32) {
    %c0_i32 = arith.constant 0 : i32
    %c0_i32_0 = arith.constant 0 : i32
    %c0_i32_1 = arith.constant 0 : i32
    return %c0_i32, %c0_i32_0 : i32, i32
  }
  func.func @transform_4(%arg0: i32) -> (i32, i32) {
    %c0_i32 = arith.constant 0 : i32
    %c0_i32_0 = arith.constant 0 : i32
    %c0_i32_1 = arith.constant 0 : i32
    return %c0_i32, %c0_i32_0 : i32, i32
  }
  func.func @transform_5(%arg0: i32) -> (i32, i32) {
    %c0_i32 = arith.constant 0 : i32
    %c0_i32_0 = arith.constant 0 : i32
    %c0_i32_1 = arith.constant 0 : i32
    return %c0_i32, %c0_i32_0 : i32, i32
  }
  func.func @transform_6(%arg0: i32) -> (i32, i32, i32) {
    %c0_i32 = arith.constant 0 : i32
    %c0_i32_0 = arith.constant 0 : i32
    %c0_i32_1 = arith.constant 0 : i32
    %c0_i32_2 = arith.constant 0 : i32
    return %c0_i32, %c0_i32_0, %c0_i32_1 : i32, i32, i32
  }
  func.func @transform_7(%arg0: i32) -> (i32, i32) {
    %c0_i32 = arith.constant 0 : i32
    %c0_i32_0 = arith.constant 0 : i32
    %c0_i32_1 = arith.constant 0 : i32
    return %c0_i32, %c0_i32_0 : i32, i32
  }
  func.func @transform_8(%arg0: i32) -> (i32, i32, i32) {
    %c0_i32 = arith.constant 0 : i32
    %c0_i32_0 = arith.constant 0 : i32
    %c0_i32_1 = arith.constant 0 : i32
    %c0_i32_2 = arith.constant 0 : i32
    return %c0_i32, %c0_i32_0, %c0_i32_1 : i32, i32, i32
  }
  func.func @transform_9(%arg0: i32) -> (i32, i32) {
    %c0_i32 = arith.constant 0 : i32
    %c0_i32_0 = arith.constant 0 : i32
    %c0_i32_1 = arith.constant 0 : i32
    return %c0_i32, %c0_i32_0 : i32, i32
  }
  func.func @transform_10(%arg0: i32) -> (i32, i32) {
    %c0_i32 = arith.constant 0 : i32
    %c0_i32_0 = arith.constant 0 : i32
    %c0_i32_1 = arith.constant 0 : i32
    return %c0_i32, %c0_i32_0 : i32, i32
  }
  func.func @transform_11(%arg0: i32) -> (i32, i32) {
    %c0_i32 = arith.constant 0 : i32
    %c0_i32_0 = arith.constant 0 : i32
    %c0_i32_1 = arith.constant 0 : i32
    return %c0_i32, %c0_i32_0 : i32, i32
  }
  func.func @transform_12(%arg0: i32) -> (i32, i32, i32) {
    %c0_i32 = arith.constant 0 : i32
    %c0_i32_0 = arith.constant 0 : i32
    %c0_i32_1 = arith.constant 0 : i32
    %c0_i32_2 = arith.constant 0 : i32
    return %c0_i32, %c0_i32_0, %c0_i32_1 : i32, i32, i32
  }
  func.func @transform_13(%arg0: i32) -> (i32, i32) {
    %c0_i32 = arith.constant 0 : i32
    %c0_i32_0 = arith.constant 0 : i32
    %c0_i32_1 = arith.constant 0 : i32
    return %c0_i32, %c0_i32_0 : i32, i32
  }
  func.func @transform_14(%arg0: i32) -> (i32, i32, i32) {
    %c0_i32 = arith.constant 0 : i32
    %c0_i32_0 = arith.constant 0 : i32
    %c0_i32_1 = arith.constant 0 : i32
    %c0_i32_2 = arith.constant 0 : i32
    return %c0_i32, %c0_i32_0, %c0_i32_1 : i32, i32, i32
  }
  func.func @transform_15(%arg0: i32) -> (i32, i32) {
    %c0_i32 = arith.constant 0 : i32
    %c0_i32_0 = arith.constant 0 : i32
    %c0_i32_1 = arith.constant 0 : i32
    return %c0_i32, %c0_i32_0 : i32, i32
  }
  func.func @transform_16(%arg0: i32) -> (i32, i32) {
    %c0_i32 = arith.constant 0 : i32
    %c0_i32_0 = arith.constant 0 : i32
    return %arg0, %c0_i32 : i32, i32
  }
}

</mosaic_0001>

<llo_original>
// kernel: tpu_custom_call.1
$region0: #{tpu_custom_call.1}
  #allocation0 [shape = 'u32[]', space=smem, size = 0x4, offset = 0x4, fixed_abs, tag = 'smem constant byte address 0x4 - core index']
  #allocation1 [shape = 'u32[144,128]{1,0:T(1,128)}', space=vmem, size = 0x12000, scoped, tag = 'internal scratch']
  %s0 = inlined_call_operand.hbm [shape: f32[2,8,32], index: 0, kind: input, shape index: {}]
  %s1 = inlined_call_operand.vmem [shape: bf16[2,8,16,32], index: 1, kind: input, shape index: {}]
  %s2 = inlined_call_operand.vmem [shape: f32[1,32], index: 2, kind: input, shape index: {}]
  %s3 = inlined_call_operand.hbm [shape: f32[1,32], index: 3, kind: input, shape index: {}]
  %s4 = inlined_call_operand.vmem [shape: f32[2,32], index: 4, kind: input, shape index: {}]
  %s5 = inlined_call_operand.vmem [shape: f32[2,32], index: 5, kind: input, shape index: {}]
  %s6 = inlined_call_operand.vmem [shape: bf16[2,32,96], index: 6, kind: input, shape index: {}]
  %s7 = inlined_call_operand.vmem [shape: f32[2,96], index: 7, kind: input, shape index: {}]
  %s8 = inlined_call_operand.hbm [shape: bf16[2,32,32], index: 8, kind: input, shape index: {}]
  %s9 = inlined_call_operand.vmem [shape: f32[2,32], index: 9, kind: input, shape index: {}]
  %s10 = inlined_call_operand.vmem [shape: f32[2,32], index: 10, kind: input, shape index: {}]
  %s11 = inlined_call_operand.vmem [shape: f32[2,32], index: 11, kind: input, shape index: {}]
  %s12 = inlined_call_operand.hbm [shape: bf16[2,32,128], index: 12, kind: input, shape index: {}]
  %s13 = inlined_call_operand.vmem [shape: f32[2,128], index: 13, kind: input, shape index: {}]
  %s14 = inlined_call_operand.vmem [shape: bf16[2,128,32], index: 14, kind: input, shape index: {}]
  %s15 = inlined_call_operand.vmem [shape: f32[2,32], index: 15, kind: input, shape index: {}]
  %s16 = inlined_call_operand.hbm [shape: f32[2,128], index: 16, kind: output, shape index: {}]
  %s17 = sld [smem:[#allocation0]]
  $region90: #{tpu_custom_call.1} parent=0
    _
  %s19 = ssub.s32 1, %s17
  %s20 = scalar_select 0, %s19, %s17
  $region1: #{tpu_custom_call.1} parent=0
    #allocation2 [shape = 'u8[8192]{0}', space=vmem, size = 0x2000, scoped, tag = 'input window, operand 0, single buffered']
    #allocation3 [shape = 's32[1]{0}', space=sflag, size = 0x4, scoped, tag = 'scoped memory for tpu_custom_call.1']
    #allocation4 [shape = 's32[1]{0}', space=sflag, size = 0x4, scoped, tag = 'scoped memory for tpu_custom_call.1']
    #allocation5 [shape = 'u8[512]{0}', space=vmem, size = 0x400, scoped, tag = 'input window, operand 3, single buffered']
    #allocation6 [shape = 's32[1]{0}', space=sflag, size = 0x4, scoped, tag = 'scoped memory for tpu_custom_call.1']
    #allocation7 [shape = 'u8[16384]{0}', space=vmem, size = 0x4000, scoped, tag = 'input window, operand 8, single buffered']
    #allocation8 [shape = 'u8[16384]{0}', space=vmem, size = 0x4000, scoped, tag = 'input window, operand 12, single buffered']
    #allocation9 [shape = 's32[1]{0}', space=sflag, size = 0x4, scoped, tag = 'scoped memory for tpu_custom_call.1']
    #allocation10 [shape = 'u8[1024]{0}', space=vmem, size = 0x400, scoped, tag = 'output window, operand 0, single buffered']
    %21 = vsyncpa [#allocation3], 0
    %22 = vsyncpa [#allocation6], 0
    %23 = vsyncpa [#allocation9], 0
    %24 = vsyncpa [#allocation4], 0
    // Predicated region
    $region2: #{tpu_custom_call.1} parent=1 // pred_check
      _
    $region3: #{tpu_custom_call.1} parent=1 // pred_check_branch
      %26 = sbr.rel (0) target = $region5
    $region4: #{tpu_custom_call.1} parent=1 // pred_region
      %s28 = ssub.s32 256, 256
      %29 = vsyncadd [#allocation3], %s28
      %s30 = sshll.u32 [#allocation2], 4
      %s31 = int_to_ptr.vmem [resolvable:$true] %s30
      %36 = dma.hbm_to_vmem [thread:$0]  %s0, 256, %s31, [#allocation3], 128, 128, 8
    $region5: #{tpu_custom_call.1} parent=1 // pred_fallthru
      _
    // Predicated region
    $region6: #{tpu_custom_call.1} parent=1 // pred_check
      _
    $region7: #{tpu_custom_call.1} parent=1 // pred_check_branch
      %38 = sbr.rel (0) target = $region9
    $region8: #{tpu_custom_call.1} parent=1 // pred_region
      _
    $region9: #{tpu_custom_call.1} parent=1 // pred_fallthru
      _
    // Predicated region
    $region10: #{tpu_custom_call.1} parent=1 // pred_check
      _
    $region11: #{tpu_custom_call.1} parent=1 // pred_check_branch
      %40 = sbr.rel (0) target = $region13
    $region12: #{tpu_custom_call.1} parent=1 // pred_region
      _
    $region13: #{tpu_custom_call.1} parent=1 // pred_fallthru
      _
    // Predicated region
    $region14: #{tpu_custom_call.1} parent=1 // pred_check
      _
    $region15: #{tpu_custom_call.1} parent=1 // pred_check_branch
      %42 = sbr.rel (0) target = $region17
    $region16: #{tpu_custom_call.1} parent=1 // pred_region
      %s44 = ssub.s32 16, 16
      %45 = vsyncadd [#allocation6], %s44
      %s47 = sshll.u32 [#allocation5], 4
      %s48 = int_to_ptr.vmem [resolvable:$true] %s47
      %50 = dma.hbm_to_vmem [thread:$0]  %s3, 16, %s48, [#allocation6]
    $region17: #{tpu_custom_call.1} parent=1 // pred_fallthru
      _
    // Predicated region
    $region18: #{tpu_custom_call.1} parent=1 // pred_check
      _
    $region19: #{tpu_custom_call.1} parent=1 // pred_check_branch
      %52 = sbr.rel (0) target = $region21
    $region20: #{tpu_custom_call.1} parent=1 // pred_region
      _
    $region21: #{tpu_custom_call.1} parent=1 // pred_fallthru
      _
    // Predicated region
    $region22: #{tpu_custom_call.1} parent=1 // pred_check
      _
    $region23: #{tpu_custom_call.1} parent=1 // pred_check_branch
      %54 = sbr.rel (0) target = $region25
    $region24: #{tpu_custom_call.1} parent=1 // pred_region
      _
    $region25: #{tpu_custom_call.1} parent=1 // pred_fallthru
      _
    // Predicated region
    $region26: #{tpu_custom_call.1} parent=1 // pred_check
      _
    $region27: #{tpu_custom_call.1} parent=1 // pred_check_branch
      %56 = sbr.rel (0) target = $region29
    $region28: #{tpu_custom_call.1} parent=1 // pred_region
      _
    $region29: #{tpu_custom_call.1} parent=1 // pred_fallthru
      _
    // Predicated region
    $region30: #{tpu_custom_call.1} parent=1 // pred_check
      _
    $region31: #{tpu_custom_call.1} parent=1 // pred_check_branch
      %58 = sbr.rel (0) target = $region33
    $region32: #{tpu_custom_call.1} parent=1 // pred_region
      _
    $region33: #{tpu_custom_call.1} parent=1 // pred_fallthru
      _
    // Predicated region
    $region34: #{tpu_custom_call.1} parent=1 // pred_check
      _
    $region35: #{tpu_custom_call.1} parent=1 // pred_check_branch
      %60 = sbr.rel (0) target = $region37
    $region36: #{tpu_custom_call.1} parent=1 // pred_region
      %s62 = ssub.s32 512, 512
      %63 = vsyncadd [#allocation6], %s62
      %s64 = sshll.u32 [#allocation7], 4
      %s65 = int_to_ptr.vmem [resolvable:$true] %s64
      %70 = dma.hbm_to_vmem [thread:$0]  %s8, 512, %s65, [#allocation6], 64, 64, 4
    $region37: #{tpu_custom_call.1} parent=1 // pred_fallthru
      _
    // Predicated region
    $region38: #{tpu_custom_call.1} parent=1 // pred_check
      _
    $region39: #{tpu_custom_call.1} parent=1 // pred_check_branch
      %72 = sbr.rel (0) target = $region41
    $region40: #{tpu_custom_call.1} parent=1 // pred_region
      _
    $region41: #{tpu_custom_call.1} parent=1 // pred_fallthru
      _
    // Predicated region
    $region42: #{tpu_custom_call.1} parent=1 // pred_check
      _
    $region43: #{tpu_custom_call.1} parent=1 // pred_check_branch
      %74 = sbr.rel (0) target = $region45
    $region44: #{tpu_custom_call.1} parent=1 // pred_region
      _
    $region45: #{tpu_custom_call.1} parent=1 // pred_fallthru
      _
    // Predicated region
    $region46: #{tpu_custom_call.1} parent=1 // pred_check
      _
    $region47: #{tpu_custom_call.1} parent=1 // pred_check_branch
      %76 = sbr.rel (0) target = $region49
    $region48: #{tpu_custom_call.1} parent=1 // pred_region
      _
    $region49: #{tpu_custom_call.1} parent=1 // pred_fallthru
      _
    // Predicated region
    $region50: #{tpu_custom_call.1} parent=1 // pred_check
      _
    $region51: #{tpu_custom_call.1} parent=1 // pred_check_branch
      %78 = sbr.rel (0) target = $region53
    $region52: #{tpu_custom_call.1} parent=1 // pred_region
      %s80 = ssub.s32 512, 512
      %81 = vsyncadd [#allocation9], %s80
      %s82 = sshll.u32 [#allocation8], 4
      %s83 = int_to_ptr.vmem [resolvable:$true] %s82
      %88 = dma.hbm_to_vmem [thread:$0]  %s12, 512, %s83, [#allocation9], 64, 64, 4
    $region53: #{tpu_custom_call.1} parent=1 // pred_fallthru
      _
    // Predicated region
    $region54: #{tpu_custom_call.1} parent=1 // pred_check
      _
    $region55: #{tpu_custom_call.1} parent=1 // pred_check_branch
      %90 = sbr.rel (0) target = $region57
    $region56: #{tpu_custom_call.1} parent=1 // pred_region
      _
    $region57: #{tpu_custom_call.1} parent=1 // pred_fallthru
      _
    // Predicated region
    $region58: #{tpu_custom_call.1} parent=1 // pred_check
      _
    $region59: #{tpu_custom_call.1} parent=1 // pred_check_branch
      %92 = sbr.rel (0) target = $region61
    $region60: #{tpu_custom_call.1} parent=1 // pred_region
      _
    $region61: #{tpu_custom_call.1} parent=1 // pred_fallthru
      _
    // Predicated region
    $region62: #{tpu_custom_call.1} parent=1 // pred_check
      _
    $region63: #{tpu_custom_call.1} parent=1 // pred_check_branch
      %94 = sbr.rel (0) target = $region65
    $region64: #{tpu_custom_call.1} parent=1 // pred_region
      _
    $region65: #{tpu_custom_call.1} parent=1 // pred_fallthru
      _
    // Predicated region
    $region66: #{tpu_custom_call.1} parent=1 // pred_check
      _
    $region67: #{tpu_custom_call.1} parent=1 // pred_check_branch
      %96 = sbr.rel (0) target = $region69
    $region68: #{tpu_custom_call.1} parent=1 // pred_region
      %97 = dma.done [#allocation3], 256
    $region69: #{tpu_custom_call.1} parent=1 // pred_fallthru
      _
    // Predicated region
    $region70: #{tpu_custom_call.1} parent=1 // pred_check
      _
    $region71: #{tpu_custom_call.1} parent=1 // pred_check_branch
      %99 = sbr.rel (0) target = $region73
    $region72: #{tpu_custom_call.1} parent=1 // pred_region
      %100 = dma.done [#allocation6], 16
    $region73: #{tpu_custom_call.1} parent=1 // pred_fallthru
      _
    // Predicated region
    $region74: #{tpu_custom_call.1} parent=1 // pred_check
      _
    $region75: #{tpu_custom_call.1} parent=1 // pred_check_branch
      %102 = sbr.rel (0) target = $region77
    $region76: #{tpu_custom_call.1} parent=1 // pred_region
      %103 = dma.done [#allocation6], 512
    $region77: #{tpu_custom_call.1} parent=1 // pred_fallthru
      _
    // Predicated region
    $region78: #{tpu_custom_call.1} parent=1 // pred_check
      _
    $region79: #{tpu_custom_call.1} parent=1 // pred_check_branch
      %105 = sbr.rel (0) target = $region81
    $region80: #{tpu_custom_call.1} parent=1 // pred_region
      %106 = dma.done [#allocation9], 512
    $region81: #{tpu_custom_call.1} parent=1 // pred_fallthru
      _
    %v108 = vld [vmem:[#allocation2] sm:$0xff]
    %v109 = vld [vmem:[#allocation2 + $0x8] sm:$0xff]
    %v110 = vld [vmem:[%s2] sm:$0x1]
    %v111 = vld [vmem:[#allocation5] sm:$0x1]
    %vm112 = vcmask 261120
    %v113 = vsel %vm112, %v108, 0.0
    %114 = vadd.xlane.f32.xlu0 %v113
    %v115 = vpop.xlane.xlu0 %114
    %v116 = vsel %vm112, %v109, 0.0
    %117 = vadd.xlane.f32.xlu0 %v116
    %v118 = vpop.xlane.xlu0 %117
    %v119 = vrcp.pop 32.0
    %v120 = vmul.f32 %v115, %v119
    %v121 = vmul.f32 %v118, %v119
    %v122 = vsub.f32 %v108, %v120
    %v123 = vsub.f32 %v109, %v121
    %v124 = vmul.f32 %v122, %v122
    %v125 = vmul.f32 %v123, %v123
    %v126 = vsel %vm112, %v124, 0.0
    %127 = vadd.xlane.f32.xlu0 %v126
    %v128 = vpop.xlane.xlu0 %127
    %v129 = vsel %vm112, %v125, 0.0
    %130 = vadd.xlane.f32.xlu0 %v129
    %v131 = vpop.xlane.xlu0 %130
    %v132 = vmul.f32 %v128, %v119
    %v133 = vmul.f32 %v131, %v119
    %v134 = vadd.f32 %v132, 1e-08
    %v135 = vadd.f32 %v133, 1e-08
    %v136 = vrsqrt.pop %v134
    %v137 = vrsqrt.pop %v135
    %v138 = vmul.f32 %v122, %v136
    %v139 = vmul.f32 %v123, %v137
    %v141 = vlaneseq
    %v142 = vshrl.u32 %v141, 7
    %v143 = vsub.s32 0, %v142
    %v144 = vrot.slane %v110, %v143
    %v146 = vmul.f32 %v138, %v144
    %v147 = vmul.f32 %v139, %v144
    %v149 = vlaneseq
    %v150 = vshrl.u32 %v149, 7
    %v151 = vsub.s32 0, %v150
    %v152 = vrot.slane %v111, %v151
    %v154 = vadd.f32 %v146, %v152
    %v155 = vadd.f32 %v147, %v152
    %v156 = vlaneseq
    %v157 = vshrl.u32 %v156, 7
    %v158 = vlaneseq
    %v159 = vand.u32 %v158, 127
    %vm160 = vcmp.gt.s32.totalorder %v159, %v157
    %v161 = vsel %vm160, -1e+30, 0.0
    %v162 = vld [vmem:[%s4] sm:$0x1]
    %v163 = vld [vmem:[%s5] sm:$0x1]
    %v164 = vsel %vm112, %v154, 0.0
    %165 = vadd.xlane.f32.xlu0 %v164
    %v166 = vpop.xlane.xlu0 %165
    %v167 = vsel %vm112, %v155, 0.0
    %168 = vadd.xlane.f32.xlu0 %v167
    %v169 = vpop.xlane.xlu0 %168
    %v170 = vmul.f32 %v166, %v119
    %v171 = vmul.f32 %v169, %v119
    %v172 = vsub.f32 %v154, %v170
    %v173 = vsub.f32 %v155, %v171
    %v174 = vmul.f32 %v172, %v172
    %v175 = vmul.f32 %v173, %v173
    %v176 = vsel %vm112, %v174, 0.0
    %177 = vadd.xlane.f32.xlu0 %v176
    %v178 = vpop.xlane.xlu0 %177
    %v179 = vsel %vm112, %v175, 0.0
    %180 = vadd.xlane.f32.xlu0 %v179
    %v181 = vpop.xlane.xlu0 %180
    %v182 = vmul.f32 %v178, %v119
    %v183 = vmul.f32 %v181, %v119
    %v184 = vadd.f32 %v182, 1e-05
    %v185 = vadd.f32 %v183, 1e-05
    %v186 = vrsqrt.pop %v184
    %v187 = vrsqrt.pop %v185
    %v188 = vmul.f32 %v172, %v186
    %v189 = vmul.f32 %v173, %v187
    %v190 = vlaneseq
    %v191 = vshrl.u32 %v190, 7
    %v192 = vsub.s32 0, %v191
    %v193 = vrot.slane %v162, %v192
    %v194 = vmul.f32 %v188, %v193
    %v195 = vmul.f32 %v189, %v193
    %v196 = vlaneseq
    %v197 = vshrl.u32 %v196, 7
    %v198 = vsub.s32 0, %v197
    %v199 = vrot.slane %v163, %v198
    %v200 = vadd.f32 %v194, %v199
    %v201 = vadd.f32 %v195, %v199
    %v202 = vpack.c.bf16 %v201, %v200
    %v203 = vld [vmem:[%s6] sm:$0xf]
    %v204 = vld [vmem:[%s6 + $0x4] sm:$0xf]
    %v205 = vld [vmem:[%s6 + $0x8] sm:$0xf]
    %v206 = vld [vmem:[%s6 + $0xc] sm:$0xf]
    %v207 = vld [vmem:[%s7] sm:$0x1]
    %v208 = vlaneseq
    %v209 = vshrl.u32 %v208, 7
    %v210 = vsub.s32 0, %v209
    %v211 = vrot.slane %v207, %v210
    %v216 = vunpack.c.l.b16 %v203
    %v217 = vunpack.c.l.b16 %v204
    %v218 = vunpack.c.l.b16 %v205
    %v219 = vunpack.c.l.b16 %v206
    %v220 = vpack.c.b16 %v217, %v216
    %v221 = vpack.c.b16 %v219, %v218
    %v225 = vsel %vm112, %v202, 0
    %227 = vmatprep.subr.bf16.mxu0 0
    %228 = vmatpush1.bf16.msra.mxu0 %v220
    %229 = vmatprep.subr.bf16.mxu0 0
    %230 = vmatpush1.bf16.msra.mxu0 %v221
    %231 = vmatprep.subr.bf16.mxu0 0
    %232 = vmatpush1.bf16.msra.mxu0 0
    %233 = vmatprep.subr.bf16.mxu0 0
    %234 = vmatpush1.bf16.msra.mxu0 0
    %235 = vmatprep.subr.bf16.mxu0 0
    %236 = vmatpush1.bf16.msra.mxu0 0
    %237 = vmatprep.subr.bf16.mxu0 0
    %238 = vmatpush1.bf16.msra.mxu0 0
    %239 = vmatprep.subr.bf16.mxu0 0
    %240 = vmatpush1.bf16.msra.mxu0 0
    %241 = vmatprep.subr.bf16.mxu0 0
    %242 = vmatpush1.bf16.msra.mxu0 0
    %243 = vmatprep.subr.bf16.mxu0 0
    %244 = vmatpush1.bf16.msra.mxu0 0
    %245 = vmatprep.subr.bf16.mxu0 0
    %246 = vmatpush1.bf16.msra.mxu0 0
    %247 = vmatprep.subr.bf16.mxu0 0
    %248 = vmatpush1.bf16.msra.mxu0 0
    %249 = vmatprep.subr.bf16.mxu0 0
    %250 = vmatpush1.bf16.msra.mxu0 0
    %251 = vmatprep.subr.bf16.mxu0 0
    %252 = vmatpush1.bf16.msra.mxu0 0
    %253 = vmatprep.subr.bf16.mxu0 0
    %254 = vmatpush1.bf16.msra.mxu0 0
    %255 = vmatprep.subr.bf16.mxu0 0
    %256 = vmatpush1.bf16.msra.mxu0 0
    %257 = vmatprep.subr.bf16.mxu0 0
    %258 = vmatpush1.bf16.msra.mxu0 0
    %259 = vmatprep.mubr.bf16.mxu0 0
    %260 = vmatmul.mubr.bf16.gmra.mrb[0].mxu0 %v225
    %v261 = vpop.f32.mrb[0].mxu0
    %v262 = vadd.f32 %v211, %v261
    %v263 = vpop.f32.mrb[0].mxu0
    %v264 = vpop.f32.mrb[0].mxu0
    %v265 = vadd.f32 %v211, %v264
    %v266 = vpop.f32.mrb[0].mxu0
    %267 = vdwg.mxu0
    %v268 = vmul.f32 %v262, 0.25
    %v269 = vmul.f32 %v265, 0.25
    %v270 = vpack.c.bf16 %v268, %v268
    %v271 = vpack.c.bf16 %v269, %v269
    %v272 = vpack.c.bf16 %v262, %v262
    %v273 = vpack.c.bf16 %v265, %v265
    %275 = vrot.lane.b32.xlu0 %v272, 96
    %v276 = vpop.permute.xlu0 %275
    %vm277 = vcmask 130048
    %v279 = vsel %vm277, %v270, 0
    %v282 = vsel %vm277, %v276, 0
    %284 = vmatprep.subr.bf16.mxu0 0
    %285 = vmatpush1.bf16.xpose.msra.mxu0 %v282
    %286 = vmatprep.subr.bf16.mxu0 0
    %287 = vmatpush1.bf16.xpose.msra.mxu0 0
    %288 = vmatprep.subr.bf16.mxu0 0
    %289 = vmatpush1.bf16.xpose.msra.mxu0 0
    %290 = vmatprep.subr.bf16.mxu0 0
    %291 = vmatpush1.bf16.xpose.msra.mxu0 0
    %292 = vmatprep.subr.bf16.mxu0 0
    %293 = vmatpush1.bf16.xpose.msra.mxu0 0
    %294 = vmatprep.subr.bf16.mxu0 0
    %295 = vmatpush1.bf16.xpose.msra.mxu0 0
    %296 = vmatprep.subr.bf16.mxu0 0
    %297 = vmatpush1.bf16.xpose.msra.mxu0 0
    %298 = vmatprep.subr.bf16.mxu0 0
    %299 = vmatpush1.bf16.xpose.msra.mxu0 0
    %300 = vmatprep.subr.bf16.mxu0 0
    %301 = vmatpush1.bf16.xpose.msra.mxu0 0
    %302 = vmatprep.subr.bf16.mxu0 0
    %303 = vmatpush1.bf16.xpose.msra.mxu0 0
    %304 = vmatprep.subr.bf16.mxu0 0
    %305 = vmatpush1.bf16.xpose.msra.mxu0 0
    %306 = vmatprep.subr.bf16.mxu0 0
    %307 = vmatpush1.bf16.xpose.msra.mxu0 0
    %308 = vmatprep.subr.bf16.mxu0 0
    %309 = vmatpush1.bf16.xpose.msra.mxu0 0
    %310 = vmatprep.subr.bf16.mxu0 0
    %311 = vmatpush1.bf16.xpose.msra.mxu0 0
    %312 = vmatprep.subr.bf16.mxu0 0
    %313 = vmatpush1.bf16.xpose.msra.mxu0 0
    %314 = vmatprep.subr.bf16.mxu0 0
    %315 = vmatpush1.bf16.xpose.msra.mxu0 0
    %316 = vmatprep.mubr.bf16.mxu0 0
    %317 = vmatmul.mubr.bf16.gmra.mrb[0].mxu0 %v279
    %v318 = vpop.f32.mrb[0].mxu0
    %v319 = vadd.f32 %v161, %v318
    %v320 = vpop.f32.mrb[0].mxu0
    %v321 = vpop.f32.mrb[0].mxu0
    %v322 = vpop.f32.mrb[0].mxu0
    %323 = vdwg.mxu0
    %325 = vrot.lane.b32.xlu0 %v273, 96
    %v326 = vpop.permute.xlu0 %325
    %v328 = vsel %vm277, %v271, 0
    %v331 = vsel %vm277, %v326, 0
    %333 = vmatprep.subr.bf16.mxu0 0
    %334 = vmatpush1.bf16.xpose.msra.mxu0 %v331
    %335 = vmatprep.subr.bf16.mxu0 0
    %336 = vmatpush1.bf16.xpose.msra.mxu0 0
    %337 = vmatprep.subr.bf16.mxu0 0
    %338 = vmatpush1.bf16.xpose.msra.mxu0 0
    %339 = vmatprep.subr.bf16.mxu0 0
    %340 = vmatpush1.bf16.xpose.msra.mxu0 0
    %341 = vmatprep.subr.bf16.mxu0 0
    %342 = vmatpush1.bf16.xpose.msra.mxu0 0
    %343 = vmatprep.subr.bf16.mxu0 0
    %344 = vmatpush1.bf16.xpose.msra.mxu0 0
    %345 = vmatprep.subr.bf16.mxu0 0
    %346 = vmatpush1.bf16.xpose.msra.mxu0 0
    %347 = vmatprep.subr.bf16.mxu0 0
    %348 = vmatpush1.bf16.xpose.msra.mxu0 0
    %349 = vmatprep.subr.bf16.mxu0 0
    %350 = vmatpush1.bf16.xpose.msra.mxu0 0
    %351 = vmatprep.subr.bf16.mxu0 0
    %352 = vmatpush1.bf16.xpose.msra.mxu0 0
    %353 = vmatprep.subr.bf16.mxu0 0
    %354 = vmatpush1.bf16.xpose.msra.mxu0 0
    %355 = vmatprep.subr.bf16.mxu0 0
    %356 = vmatpush1.bf16.xpose.msra.mxu0 0
    %357 = vmatprep.subr.bf16.mxu0 0
    %358 = vmatpush1.bf16.xpose.msra.mxu0 0
    %359 = vmatprep.subr.bf16.mxu0 0
    %360 = vmatpush1.bf16.xpose.msra.mxu0 0
    %361 = vmatprep.subr.bf16.mxu0 0
    %362 = vmatpush1.bf16.xpose.msra.mxu0 0
    %363 = vmatprep.subr.bf16.mxu0 0
    %364 = vmatpush1.bf16.xpose.msra.mxu0 0
    %365 = vmatprep.mubr.bf16.mxu0 0
    %366 = vmatmul.mubr.bf16.gmra.mrb[0].mxu0 %v328
    %v367 = vpop.f32.mrb[0].mxu0
    %v368 = vadd.f32 %v161, %v367
    %v369 = vpop.f32.mrb[0].mxu0
    %v370 = vpop.f32.mrb[0].mxu0
    %v371 = vpop.f32.mrb[0].mxu0
    %372 = vdwg.mxu0
    %vm373 = vcmask 64512
    %v374 = vsel %vm373, %v319, -inf
    %375 = vmax.xlane.f32.xlu0 %v374
    %v376 = vpop.xlane.xlu0 %375
    %v377 = vsel %vm373, %v368, -inf
    %378 = vmax.xlane.f32.xlu0 %v377
    %v379 = vpop.xlane.xlu0 %378
    %v380 = vsub.f32 %v319, %v376
    %v381 = vsub.f32 %v368, %v379
    %v382 = vmul.f32 %v380, 1.442695
    %v383 = vpow.pop %v382
    %v384 = vmul.f32 %v381, 1.442695
    %v385 = vpow.pop %v384
    %v386 = vsel %vm373, %v383, 0.0
    %387 = vadd.xlane.f32.xlu0 %v386
    %v388 = vpop.xlane.xlu0 %387
    %v389 = vsel %vm373, %v385, 0.0
    %390 = vadd.xlane.f32.xlu0 %v389
    %v391 = vpop.xlane.xlu0 %390
    %v392 = vrcp.pop %v388
    %v393 = vrcp.pop %v391
    %v394 = vmul.f32 %v383, %v392
    %v395 = vmul.f32 %v385, %v393
    %v396 = vpack.c.bf16 %v394, %v394
    %v397 = vpack.c.bf16 %v395, %v395
    %398 = vrot.lane.b32.xlu0 %v272, 64
    %v399 = vpop.permute.xlu0 %398
    %v401 = vsel %vm373, %v396, 0
    %vm403 = vcmask 1043456
    %v405 = vsel %vm403, %v399, 0
    %407 = vmatprep.subr.bf16.mxu0 0
    %408 = vmatpush1.bf16.msra.mxu0 %v405
    %409 = vmatprep.subr.bf16.mxu0 0
    %410 = vmatpush1.bf16.msra.mxu0 0
    %411 = vmatprep.subr.bf16.mxu0 0
    %412 = vmatpush1.bf16.msra.mxu0 0
    %413 = vmatprep.subr.bf16.mxu0 0
    %414 = vmatpush1.bf16.msra.mxu0 0
    %415 = vmatprep.subr.bf16.mxu0 0
    %416 = vmatpush1.bf16.msra.mxu0 0
    %417 = vmatprep.subr.bf16.mxu0 0
    %418 = vmatpush1.bf16.msra.mxu0 0
    %419 = vmatprep.subr.bf16.mxu0 0
    %420 = vmatpush1.bf16.msra.mxu0 0
    %421 = vmatprep.subr.bf16.mxu0 0
    %422 = vmatpush1.bf16.msra.mxu0 0
    %423 = vmatprep.subr.bf16.mxu0 0
    %424 = vmatpush1.bf16.msra.mxu0 0
    %425 = vmatprep.subr.bf16.mxu0 0
    %426 = vmatpush1.bf16.msra.mxu0 0
    %427 = vmatprep.subr.bf16.mxu0 0
    %428 = vmatpush1.bf16.msra.mxu0 0
    %429 = vmatprep.subr.bf16.mxu0 0
    %430 = vmatpush1.bf16.msra.mxu0 0
    %431 = vmatprep.subr.bf16.mxu0 0
    %432 = vmatpush1.bf16.msra.mxu0 0
    %433 = vmatprep.subr.bf16.mxu0 0
    %434 = vmatpush1.bf16.msra.mxu0 0
    %435 = vmatprep.subr.bf16.mxu0 0
    %436 = vmatpush1.bf16.msra.mxu0 0
    %437 = vmatprep.subr.bf16.mxu0 0
    %438 = vmatpush1.bf16.msra.mxu0 0
    %439 = vmatprep.mubr.bf16.mxu0 0
    %440 = vmatmul.mubr.bf16.gmra.mrb[0].mxu0 %v401
    %v441 = vpop.f32.mrb[0].mxu0
    %v442 = vadd.f32 0.0, %v441
    %v443 = vpop.f32.mrb[0].mxu0
    %v444 = vpop.f32.mrb[0].mxu0
    %v445 = vpop.f32.mrb[0].mxu0
    %446 = vdwg.mxu0
    %447 = vrot.lane.b32.xlu0 %v273, 64
    %v448 = vpop.permute.xlu0 %447
    %v450 = vsel %vm373, %v397, 0
    %v453 = vsel %vm403, %v448, 0
    %455 = vmatprep.subr.bf16.mxu0 0
    %456 = vmatpush1.bf16.msra.mxu0 %v453
    %457 = vmatprep.subr.bf16.mxu0 0
    %458 = vmatpush1.bf16.msra.mxu0 0
    %459 = vmatprep.subr.bf16.mxu0 0
    %460 = vmatpush1.bf16.msra.mxu0 0
    %461 = vmatprep.subr.bf16.mxu0 0
    %462 = vmatpush1.bf16.msra.mxu0 0
    %463 = vmatprep.subr.bf16.mxu0 0
    %464 = vmatpush1.bf16.msra.mxu0 0
    %465 = vmatprep.subr.bf16.mxu0 0
    %466 = vmatpush1.bf16.msra.mxu0 0
    %467 = vmatprep.subr.bf16.mxu0 0
    %468 = vmatpush1.bf16.msra.mxu0 0
    %469 = vmatprep.subr.bf16.mxu0 0
    %470 = vmatpush1.bf16.msra.mxu0 0
    %471 = vmatprep.subr.bf16.mxu0 0
    %472 = vmatpush1.bf16.msra.mxu0 0
    %473 = vmatprep.subr.bf16.mxu0 0
    %474 = vmatpush1.bf16.msra.mxu0 0
    %475 = vmatprep.subr.bf16.mxu0 0
    %476 = vmatpush1.bf16.msra.mxu0 0
    %477 = vmatprep.subr.bf16.mxu0 0
    %478 = vmatpush1.bf16.msra.mxu0 0
    %479 = vmatprep.subr.bf16.mxu0 0
    %480 = vmatpush1.bf16.msra.mxu0 0
    %481 = vmatprep.subr.bf16.mxu0 0
    %482 = vmatpush1.bf16.msra.mxu0 0
    %483 = vmatprep.subr.bf16.mxu0 0
    %484 = vmatpush1.bf16.msra.mxu0 0
    %485 = vmatprep.subr.bf16.mxu0 0
    %486 = vmatpush1.bf16.msra.mxu0 0
    %487 = vmatprep.mubr.bf16.mxu0 0
    %488 = vmatmul.mubr.bf16.gmra.mrb[0].mxu0 %v450
    %v489 = vpop.f32.mrb[0].mxu0
    %v490 = vadd.f32 0.0, %v489
    %v491 = vpop.f32.mrb[0].mxu0
    %v492 = vpop.f32.mrb[0].mxu0
    %v493 = vpop.f32.mrb[0].mxu0
    %494 = vdwg.mxu0
    %496 = vrot.lane.b32.xlu0 %v270, 112
    %v497 = vpop.permute.xlu0 %496
    %498 = vrot.lane.b32.xlu0 %v272, 80
    %v499 = vpop.permute.xlu0 %498
    %v501 = vsel %vm277, %v497, 0
    %v504 = vsel %vm277, %v499, 0
    %506 = vmatprep.subr.bf16.mxu0 0
    %507 = vmatpush1.bf16.xpose.msra.mxu0 %v504
    %508 = vmatprep.subr.bf16.mxu0 0
    %509 = vmatpush1.bf16.xpose.msra.mxu0 0
    %510 = vmatprep.subr.bf16.mxu0 0
    %511 = vmatpush1.bf16.xpose.msra.mxu0 0
    %512 = vmatprep.subr.bf16.mxu0 0
    %513 = vmatpush1.bf16.xpose.msra.mxu0 0
    %514 = vmatprep.subr.bf16.mxu0 0
    %515 = vmatpush1.bf16.xpose.msra.mxu0 0
    %516 = vmatprep.subr.bf16.mxu0 0
    %517 = vmatpush1.bf16.xpose.msra.mxu0 0
    %518 = vmatprep.subr.bf16.mxu0 0
    %519 = vmatpush1.bf16.xpose.msra.mxu0 0
    %520 = vmatprep.subr.bf16.mxu0 0
    %521 = vmatpush1.bf16.xpose.msra.mxu0 0
    %522 = vmatprep.subr.bf16.mxu0 0
    %523 = vmatpush1.bf16.xpose.msra.mxu0 0
    %524 = vmatprep.subr.bf16.mxu0 0
    %525 = vmatpush1.bf16.xpose.msra.mxu0 0
    %526 = vmatprep.subr.bf16.mxu0 0
    %527 = vmatpush1.bf16.xpose.msra.mxu0 0
    %528 = vmatprep.subr.bf16.mxu0 0
    %529 = vmatpush1.bf16.xpose.msra.mxu0 0
    %530 = vmatprep.subr.bf16.mxu0 0
    %531 = vmatpush1.bf16.xpose.msra.mxu0 0
    %532 = vmatprep.subr.bf16.mxu0 0
    %533 = vmatpush1.bf16.xpose.msra.mxu0 0
    %534 = vmatprep.subr.bf16.mxu0 0
    %535 = vmatpush1.bf16.xpose.msra.mxu0 0
    %536 = vmatprep.subr.bf16.mxu0 0
    %537 = vmatpush1.bf16.xpose.msra.mxu0 0
    %538 = vmatprep.mubr.bf16.mxu0 0
    %539 = vmatmul.mubr.bf16.gmra.mrb[0].mxu0 %v501
    %v540 = vpop.f32.mrb[0].mxu0
    %v541 = vadd.f32 %v161, %v540
    %v542 = vpop.f32.mrb[0].mxu0
    %v543 = vpop.f32.mrb[0].mxu0
    %v544 = vpop.f32.mrb[0].mxu0
    %545 = vdwg.mxu0
    %547 = vrot.lane.b32.xlu0 %v271, 112
    %v548 = vpop.permute.xlu0 %547
    %549 = vrot.lane.b32.xlu0 %v273, 80
    %v550 = vpop.permute.xlu0 %549
    %v552 = vsel %vm277, %v548, 0
    %v555 = vsel %vm277, %v550, 0
    %557 = vmatprep.subr.bf16.mxu0 0
    %558 = vmatpush1.bf16.xpose.msra.mxu0 %v555
    %559 = vmatprep.subr.bf16.mxu0 0
    %560 = vmatpush1.bf16.xpose.msra.mxu0 0
    %561 = vmatprep.subr.bf16.mxu0 0
    %562 = vmatpush1.bf16.xpose.msra.mxu0 0
    %563 = vmatprep.subr.bf16.mxu0 0
    %564 = vmatpush1.bf16.xpose.msra.mxu0 0
    %565 = vmatprep.subr.bf16.mxu0 0
    %566 = vmatpush1.bf16.xpose.msra.mxu0 0
    %567 = vmatprep.subr.bf16.mxu0 0
    %568 = vmatpush1.bf16.xpose.msra.mxu0 0
    %569 = vmatprep.subr.bf16.mxu0 0
    %570 = vmatpush1.bf16.xpose.msra.mxu0 0
    %571 = vmatprep.subr.bf16.mxu0 0
    %572 = vmatpush1.bf16.xpose.msra.mxu0 0
    %573 = vmatprep.subr.bf16.mxu0 0
    %574 = vmatpush1.bf16.xpose.msra.mxu0 0
    %575 = vmatprep.subr.bf16.mxu0 0
    %576 = vmatpush1.bf16.xpose.msra.mxu0 0
    %577 = vmatprep.subr.bf16.mxu0 0
    %578 = vmatpush1.bf16.xpose.msra.mxu0 0
    %579 = vmatprep.subr.bf16.mxu0 0
    %580 = vmatpush1.bf16.xpose.msra.mxu0 0
    %581 = vmatprep.subr.bf16.mxu0 0
    %582 = vmatpush1.bf16.xpose.msra.mxu0 0
    %583 = vmatprep.subr.bf16.mxu0 0
    %584 = vmatpush1.bf16.xpose.msra.mxu0 0
    %585 = vmatprep.subr.bf16.mxu0 0
    %586 = vmatpush1.bf16.xpose.msra.mxu0 0
    %587 = vmatprep.subr.bf16.mxu0 0
    %588 = vmatpush1.bf16.xpose.msra.mxu0 0
    %589 = vmatprep.mubr.bf16.mxu0 0
    %590 = vmatmul.mubr.bf16.gmra.mrb[0].mxu0 %v552
    %v591 = vpop.f32.mrb[0].mxu0
    %v592 = vadd.f32 %v161, %v591
    %v593 = vpop.f32.mrb[0].mxu0
    %v594 = vpop.f32.mrb[0].mxu0
    %v595 = vpop.f32.mrb[0].mxu0
    %596 = vdwg.mxu0
    %v597 = vsel %vm373, %v541, -inf
    %598 = vmax.xlane.f32.xlu0 %v597
    %v599 = vpop.xlane.xlu0 %598
    %v600 = vsel %vm373, %v592, -inf
    %601 = vmax.xlane.f32.xlu0 %v600
    %v602 = vpop.xlane.xlu0 %601
    %v603 = vsub.f32 %v541, %v599
    %v604 = vsub.f32 %v592, %v602
    %v605 = vmul.f32 %v603, 1.442695
    %v606 = vpow.pop %v605
    %v607 = vmul.f32 %v604, 1.442695
    %v608 = vpow.pop %v607
    %v609 = vsel %vm373, %v606, 0.0
    %610 = vadd.xlane.f32.xlu0 %v609
    %v611 = vpop.xlane.xlu0 %610
    %v612 = vsel %vm373, %v608, 0.0
    %613 = vadd.xlane.f32.xlu0 %v612
    %v614 = vpop.xlane.xlu0 %613
    %v615 = vrcp.pop %v611
    %v616 = vrcp.pop %v614
    %v617 = vmul.f32 %v606, %v615
    %v618 = vmul.f32 %v608, %v616
    %v619 = vpack.c.bf16 %v617, %v617
    %v620 = vpack.c.bf16 %v618, %v618
    %621 = vrot.lane.b32.xlu0 %v272, 48
    %v622 = vpop.permute.xlu0 %621
    %v624 = vsel %vm373, %v619, 0
    %v627 = vsel %vm403, %v622, 0
    %629 = vmatprep.subr.bf16.mxu0 0
    %630 = vmatpush1.bf16.msra.mxu0 %v627
    %631 = vmatprep.subr.bf16.mxu0 0
    %632 = vmatpush1.bf16.msra.mxu0 0
    %633 = vmatprep.subr.bf16.mxu0 0
    %634 = vmatpush1.bf16.msra.mxu0 0
    %635 = vmatprep.subr.bf16.mxu0 0
    %636 = vmatpush1.bf16.msra.mxu0 0
    %637 = vmatprep.subr.bf16.mxu0 0
    %638 = vmatpush1.bf16.msra.mxu0 0
    %639 = vmatprep.subr.bf16.mxu0 0
    %640 = vmatpush1.bf16.msra.mxu0 0
    %641 = vmatprep.subr.bf16.mxu0 0
    %642 = vmatpush1.bf16.msra.mxu0 0
    %643 = vmatprep.subr.bf16.mxu0 0
    %644 = vmatpush1.bf16.msra.mxu0 0
    %645 = vmatprep.subr.bf16.mxu0 0
    %646 = vmatpush1.bf16.msra.mxu0 0
    %647 = vmatprep.subr.bf16.mxu0 0
    %648 = vmatpush1.bf16.msra.mxu0 0
    %649 = vmatprep.subr.bf16.mxu0 0
    %650 = vmatpush1.bf16.msra.mxu0 0
    %651 = vmatprep.subr.bf16.mxu0 0
    %652 = vmatpush1.bf16.msra.mxu0 0
    %653 = vmatprep.subr.bf16.mxu0 0
    %654 = vmatpush1.bf16.msra.mxu0 0
    %655 = vmatprep.subr.bf16.mxu0 0
    %656 = vmatpush1.bf16.msra.mxu0 0
    %657 = vmatprep.subr.bf16.mxu0 0
    %658 = vmatpush1.bf16.msra.mxu0 0
    %659 = vmatprep.subr.bf16.mxu0 0
    %660 = vmatpush1.bf16.msra.mxu0 0
    %661 = vmatprep.mubr.bf16.mxu0 0
    %662 = vmatmul.mubr.bf16.gmra.mrb[0].mxu0 %v624
    %v663 = vpop.f32.mrb[0].mxu0
    %v664 = vadd.f32 0.0, %v663
    %v665 = vpop.f32.mrb[0].mxu0
    %v666 = vpop.f32.mrb[0].mxu0
    %v667 = vpop.f32.mrb[0].mxu0
    %668 = vdwg.mxu0
    %669 = vrot.lane.b32.xlu0 %v273, 48
    %v670 = vpop.permute.xlu0 %669
    %v672 = vsel %vm373, %v620, 0
    %v675 = vsel %vm403, %v670, 0
    %677 = vmatprep.subr.bf16.mxu0 0
    %678 = vmatpush1.bf16.msra.mxu0 %v675
    %679 = vmatprep.subr.bf16.mxu0 0
    %680 = vmatpush1.bf16.msra.mxu0 0
    %681 = vmatprep.subr.bf16.mxu0 0
    %682 = vmatpush1.bf16.msra.mxu0 0
    %683 = vmatprep.subr.bf16.mxu0 0
    %684 = vmatpush1.bf16.msra.mxu0 0
    %685 = vmatprep.subr.bf16.mxu0 0
    %686 = vmatpush1.bf16.msra.mxu0 0
    %687 = vmatprep.subr.bf16.mxu0 0
    %688 = vmatpush1.bf16.msra.mxu0 0
    %689 = vmatprep.subr.bf16.mxu0 0
    %690 = vmatpush1.bf16.msra.mxu0 0
    %691 = vmatprep.subr.bf16.mxu0 0
    %692 = vmatpush1.bf16.msra.mxu0 0
    %693 = vmatprep.subr.bf16.mxu0 0
    %694 = vmatpush1.bf16.msra.mxu0 0
    %695 = vmatprep.subr.bf16.mxu0 0
    %696 = vmatpush1.bf16.msra.mxu0 0
    %697 = vmatprep.subr.bf16.mxu0 0
    %698 = vmatpush1.bf16.msra.mxu0 0
    %699 = vmatprep.subr.bf16.mxu0 0
    %700 = vmatpush1.bf16.msra.mxu0 0
    %701 = vmatprep.subr.bf16.mxu0 0
    %702 = vmatpush1.bf16.msra.mxu0 0
    %703 = vmatprep.subr.bf16.mxu0 0
    %704 = vmatpush1.bf16.msra.mxu0 0
    %705 = vmatprep.subr.bf16.mxu0 0
    %706 = vmatpush1.bf16.msra.mxu0 0
    %707 = vmatprep.subr.bf16.mxu0 0
    %708 = vmatpush1.bf16.msra.mxu0 0
    %709 = vmatprep.mubr.bf16.mxu0 0
    %710 = vmatmul.mubr.bf16.gmra.mrb[0].mxu0 %v672
    %v711 = vpop.f32.mrb[0].mxu0
    %v712 = vadd.f32 0.0, %v711
    %v713 = vpop.f32.mrb[0].mxu0
    %v714 = vpop.f32.mrb[0].mxu0
    %v715 = vpop.f32.mrb[0].mxu0
    %716 = vdwg.mxu0
    %719 = vrot.lane.b32.xlu0 %v664, 16
    %v720 = vpop.permute.xlu0 %719
    %721 = vrot.lane.b32.xlu0 %v712, 16
    %v722 = vpop.permute.xlu0 %721
    %v725 = vsel %vm277, %v442, %v720
    %v726 = vsel %vm277, %v490, %v722
    %v727 = vpack.c.bf16 %v726, %v725
    %v728 = vld [vmem:[#allocation7] sm:$0xf]
    %v729 = vld [vmem:[#allocation7 + $0x4] sm:$0xf]
    %v730 = vld [vmem:[#allocation7 + $0x8] sm:$0xf]
    %v731 = vld [vmem:[#allocation7 + $0xc] sm:$0xf]
    %v732 = vld [vmem:[%s9] sm:$0x1]
    %v733 = vlaneseq
    %v734 = vshrl.u32 %v733, 7
    %v735 = vsub.s32 0, %v734
    %v736 = vrot.slane %v732, %v735
    %v741 = vunpack.c.l.b16 %v728
    %v742 = vunpack.c.l.b16 %v729
    %v743 = vunpack.c.l.b16 %v730
    %v744 = vunpack.c.l.b16 %v731
    %v745 = vpack.c.b16 %v742, %v741
    %v746 = vpack.c.b16 %v744, %v743
    %v750 = vsel %vm112, %v727, 0
    %752 = vmatprep.subr.bf16.mxu0 0
    %753 = vmatpush1.bf16.msra.mxu0 %v745
    %754 = vmatprep.subr.bf16.mxu0 0
    %755 = vmatpush1.bf16.msra.mxu0 %v746
    %756 = vmatprep.subr.bf16.mxu0 0
    %757 = vmatpush1.bf16.msra.mxu0 0
    %758 = vmatprep.subr.bf16.mxu0 0
    %759 = vmatpush1.bf16.msra.mxu0 0
    %760 = vmatprep.subr.bf16.mxu0 0
    %761 = vmatpush1.bf16.msra.mxu0 0
    %762 = vmatprep.subr.bf16.mxu0 0
    %763 = vmatpush1.bf16.msra.mxu0 0
    %764 = vmatprep.subr.bf16.mxu0 0
    %765 = vmatpush1.bf16.msra.mxu0 0
    %766 = vmatprep.subr.bf16.mxu0 0
    %767 = vmatpush1.bf16.msra.mxu0 0
    %768 = vmatprep.subr.bf16.mxu0 0
    %769 = vmatpush1.bf16.msra.mxu0 0
    %770 = vmatprep.subr.bf16.mxu0 0
    %771 = vmatpush1.bf16.msra.mxu0 0
    %772 = vmatprep.subr.bf16.mxu0 0
    %773 = vmatpush1.bf16.msra.mxu0 0
    %774 = vmatprep.subr.bf16.mxu0 0
    %775 = vmatpush1.bf16.msra.mxu0 0
    %776 = vmatprep.subr.bf16.mxu0 0
    %777 = vmatpush1.bf16.msra.mxu0 0
    %778 = vmatprep.subr.bf16.mxu0 0
    %779 = vmatpush1.bf16.msra.mxu0 0
    %780 = vmatprep.subr.bf16.mxu0 0
    %781 = vmatpush1.bf16.msra.mxu0 0
    %782 = vmatprep.subr.bf16.mxu0 0
    %783 = vmatpush1.bf16.msra.mxu0 0
    %784 = vmatprep.mubr.bf16.mxu0 0
    %785 = vmatmul.mubr.bf16.gmra.mrb[0].mxu0 %v750
    %v786 = vpop.f32.mrb[0].mxu0
    %v787 = vadd.f32 %v736, %v786
    %v788 = vpop.f32.mrb[0].mxu0
    %v789 = vpop.f32.mrb[0].mxu0
    %v790 = vadd.f32 %v736, %v789
    %v791 = vpop.f32.mrb[0].mxu0
    %792 = vdwg.mxu0
    %v793 = vadd.f32 %v154, %v787
    %v794 = vadd.f32 %v155, %v790
    %v795 = vld [vmem:[%s10] sm:$0x1]
    %v796 = vld [vmem:[%s11] sm:$0x1]
    %v797 = vsel %vm112, %v793, 0.0
    %798 = vadd.xlane.f32.xlu0 %v797
    %v799 = vpop.xlane.xlu0 %798
    %v800 = vsel %vm112, %v794, 0.0
    %801 = vadd.xlane.f32.xlu0 %v800
    %v802 = vpop.xlane.xlu0 %801
    %v803 = vmul.f32 %v799, %v119
    %v804 = vmul.f32 %v802, %v119
    %v805 = vsub.f32 %v793, %v803
    %v806 = vsub.f32 %v794, %v804
    %v807 = vmul.f32 %v805, %v805
    %v808 = vmul.f32 %v806, %v806
    %v809 = vsel %vm112, %v807, 0.0
    %810 = vadd.xlane.f32.xlu0 %v809
    %v811 = vpop.xlane.xlu0 %810
    %v812 = vsel %vm112, %v808, 0.0
    %813 = vadd.xlane.f32.xlu0 %v812
    %v814 = vpop.xlane.xlu0 %813
    %v815 = vmul.f32 %v811, %v119
    %v816 = vmul.f32 %v814, %v119
    %v817 = vadd.f32 %v815, 1e-05
    %v818 = vadd.f32 %v816, 1e-05
    %v819 = vrsqrt.pop %v817
    %v820 = vrsqrt.pop %v818
    %v821 = vmul.f32 %v805, %v819
    %v822 = vmul.f32 %v806, %v820
    %v823 = vlaneseq
    %v824 = vshrl.u32 %v823, 7
    %v825 = vsub.s32 0, %v824
    %v826 = vrot.slane %v795, %v825
    %v827 = vmul.f32 %v821, %v826
    %v828 = vmul.f32 %v822, %v826
    %v829 = vlaneseq
    %v830 = vshrl.u32 %v829, 7
    %v831 = vsub.s32 0, %v830
    %v832 = vrot.slane %v796, %v831
    %v833 = vadd.f32 %v827, %v832
    %v834 = vadd.f32 %v828, %v832
    %v835 = vpack.c.bf16 %v834, %v833
    %v836 = vld [vmem:[#allocation8] sm:$0xf]
    %v837 = vld [vmem:[#allocation8 + $0x4] sm:$0xf]
    %v838 = vld [vmem:[#allocation8 + $0x8] sm:$0xf]
    %v839 = vld [vmem:[#allocation8 + $0xc] sm:$0xf]
    %v840 = vld [vmem:[%s13] sm:$0x1]
    %v841 = vlaneseq
    %v842 = vshrl.u32 %v841, 7
    %v843 = vsub.s32 0, %v842
    %v844 = vrot.slane %v840, %v843
    %v849 = vunpack.c.l.b16 %v836
    %v850 = vunpack.c.l.b16 %v837
    %v851 = vunpack.c.l.b16 %v838
    %v852 = vunpack.c.l.b16 %v839
    %v853 = vpack.c.b16 %v850, %v849
    %v854 = vpack.c.b16 %v852, %v851
    %v858 = vsel %vm112, %v835, 0
    %860 = vmatprep.subr.bf16.mxu0 0
    %861 = vmatpush1.bf16.msra.mxu0 %v853
    %862 = vmatprep.subr.bf16.mxu0 0
    %863 = vmatpush1.bf16.msra.mxu0 %v854
    %864 = vmatprep.subr.bf16.mxu0 0
    %865 = vmatpush1.bf16.msra.mxu0 0
    %866 = vmatprep.subr.bf16.mxu0 0
    %867 = vmatpush1.bf16.msra.mxu0 0
    %868 = vmatprep.subr.bf16.mxu0 0
    %869 = vmatpush1.bf16.msra.mxu0 0
    %870 = vmatprep.subr.bf16.mxu0 0
    %871 = vmatpush1.bf16.msra.mxu0 0
    %872 = vmatprep.subr.bf16.mxu0 0
    %873 = vmatpush1.bf16.msra.mxu0 0
    %874 = vmatprep.subr.bf16.mxu0 0
    %875 = vmatpush1.bf16.msra.mxu0 0
    %876 = vmatprep.subr.bf16.mxu0 0
    %877 = vmatpush1.bf16.msra.mxu0 0
    %878 = vmatprep.subr.bf16.mxu0 0
    %879 = vmatpush1.bf16.msra.mxu0 0
    %880 = vmatprep.subr.bf16.mxu0 0
    %881 = vmatpush1.bf16.msra.mxu0 0
    %882 = vmatprep.subr.bf16.mxu0 0
    %883 = vmatpush1.bf16.msra.mxu0 0
    %884 = vmatprep.subr.bf16.mxu0 0
    %885 = vmatpush1.bf16.msra.mxu0 0
    %886 = vmatprep.subr.bf16.mxu0 0
    %887 = vmatpush1.bf16.msra.mxu0 0
    %888 = vmatprep.subr.bf16.mxu0 0
    %889 = vmatpush1.bf16.msra.mxu0 0
    %890 = vmatprep.subr.bf16.mxu0 0
    %891 = vmatpush1.bf16.msra.mxu0 0
    %892 = vmatprep.mubr.bf16.mxu0 0
    %893 = vmatmul.mubr.bf16.gmra.mrb[0].mxu0 %v858
    %v894 = vpop.f32.mrb[0].mxu0
    %v895 = vadd.f32 %v844, %v894
    %v896 = vpop.f32.mrb[0].mxu0
    %v897 = vpop.f32.mrb[0].mxu0
    %v898 = vadd.f32 %v844, %v897
    %v899 = vpop.f32.mrb[0].mxu0
    %900 = vdwg.mxu0
    %v901 = vmul.f32 %v895, 0.5
    %v902 = vmul.f32 %v898, 0.5
    %v903 = vmul.f32 %v895, %v895
    %v904 = vmul.f32 %v898, %v898
    %v905 = vmul.f32 %v903, %v895
    %v906 = vmul.f32 %v904, %v898
    %v907 = vmul.f32 %v905, 0.044715
    %v908 = vmul.f32 %v906, 0.044715
    %v909 = vadd.f32 %v895, %v907
    %v910 = vadd.f32 %v898, %v908
    %v911 = vmul.f32 %v909, 0.7978846
    %v912 = vmul.f32 %v910, 0.7978846
    %v913 = vtanh.pop %v911
    %v914 = vtanh.pop %v912
    %v915 = vadd.f32 %v913, 1.0
    %v916 = vadd.f32 %v914, 1.0
    %v917 = vmul.f32 %v901, %v915
    %v918 = vmul.f32 %v902, %v916
    %v919 = vpack.c.bf16 %v918, %v917
    %v920 = vld [vmem:[%s14] sm:$0xf]
    %v921 = vld [vmem:[%s14 + $0x4] sm:$0xf]
    %v922 = vld [vmem:[%s14 + $0x8] sm:$0xf]
    %v923 = vld [vmem:[%s14 + $0xc] sm:$0xf]
    %v924 = vld [vmem:[%s14 + $0x10] sm:$0xf]
    %v925 = vld [vmem:[%s14 + $0x14] sm:$0xf]
    %v926 = vld [vmem:[%s14 + $0x18] sm:$0xf]
    %v927 = vld [vmem:[%s14 + $0x1c] sm:$0xf]
    %v928 = vld [vmem:[%s14 + $0x20] sm:$0xf]
    %v929 = vld [vmem:[%s14 + $0x24] sm:$0xf]
    %v930 = vld [vmem:[%s14 + $0x28] sm:$0xf]
    %v931 = vld [vmem:[%s14 + $0x2c] sm:$0xf]
    %v932 = vld [vmem:[%s14 + $0x30] sm:$0xf]
    %v933 = vld [vmem:[%s14 + $0x34] sm:$0xf]
    %v934 = vld [vmem:[%s14 + $0x38] sm:$0xf]
    %v935 = vld [vmem:[%s14 + $0x3c] sm:$0xf]
    %v936 = vld [vmem:[%s15] sm:$0x1]
    %v937 = vlaneseq
    %v938 = vshrl.u32 %v937, 7
    %v939 = vsub.s32 0, %v938
    %v940 = vrot.slane %v936, %v939
    %v957 = vunpack.c.l.b16 %v920
    %v958 = vunpack.c.l.b16 %v921
    %v959 = vunpack.c.l.b16 %v922
    %v960 = vunpack.c.l.b16 %v923
    %v961 = vunpack.c.l.b16 %v924
    %v962 = vunpack.c.l.b16 %v925
    %v963 = vunpack.c.l.b16 %v926
    %v964 = vunpack.c.l.b16 %v927
    %v965 = vunpack.c.l.b16 %v928
    %v966 = vunpack.c.l.b16 %v929
    %v967 = vunpack.c.l.b16 %v930
    %v968 = vunpack.c.l.b16 %v931
    %v969 = vunpack.c.l.b16 %v932
    %v970 = vunpack.c.l.b16 %v933
    %v971 = vunpack.c.l.b16 %v934
    %v972 = vunpack.c.l.b16 %v935
    %v973 = vpack.c.b16 %v958, %v957
    %v974 = vpack.c.b16 %v960, %v959
    %v975 = vpack.c.b16 %v962, %v961
    %v976 = vpack.c.b16 %v964, %v963
    %v977 = vpack.c.b16 %v966, %v965
    %v978 = vpack.c.b16 %v968, %v967
    %v979 = vpack.c.b16 %v970, %v969
    %v980 = vpack.c.b16 %v972, %v971
    %989 = vmatprep.subr.bf16.mxu0 0
    %990 = vmatpush1.bf16.msra.mxu0 %v973
    %991 = vmatprep.subr.bf16.mxu0 0
    %992 = vmatpush1.bf16.msra.mxu0 %v974
    %993 = vmatprep.subr.bf16.mxu0 0
    %994 = vmatpush1.bf16.msra.mxu0 %v975
    %995 = vmatprep.subr.bf16.mxu0 0
    %996 = vmatpush1.bf16.msra.mxu0 %v976
    %997 = vmatprep.subr.bf16.mxu0 0
    %998 = vmatpush1.bf16.msra.mxu0 %v977
    %999 = vmatprep.subr.bf16.mxu0 0
    %1000 = vmatpush1.bf16.msra.mxu0 %v978
    %1001 = vmatprep.subr.bf16.mxu0 0
    %1002 = vmatpush1.bf16.msra.mxu0 %v979
    %1003 = vmatprep.subr.bf16.mxu0 0
    %1004 = vmatpush1.bf16.msra.mxu0 %v980
    %1005 = vmatprep.subr.bf16.mxu0 0
    %1006 = vmatpush1.bf16.msra.mxu0 0
    %1007 = vmatprep.subr.bf16.mxu0 0
    %1008 = vmatpush1.bf16.msra.mxu0 0
    %1009 = vmatprep.subr.bf16.mxu0 0
    %1010 = vmatpush1.bf16.msra.mxu0 0
    %1011 = vmatprep.subr.bf16.mxu0 0
    %1012 = vmatpush1.bf16.msra.mxu0 0
    %1013 = vmatprep.subr.bf16.mxu0 0
    %1014 = vmatpush1.bf16.msra.mxu0 0
    %1015 = vmatprep.subr.bf16.mxu0 0
    %1016 = vmatpush1.bf16.msra.mxu0 0
    %1017 = vmatprep.subr.bf16.mxu0 0
    %1018 = vmatpush1.bf16.msra.mxu0 0
    %1019 = vmatprep.subr.bf16.mxu0 0
    %1020 = vmatpush1.bf16.msra.mxu0 0
    %1021 = vmatprep.mubr.bf16.mxu0 0
    %1022 = vmatmul.mubr.bf16.gmra.mrb[0].mxu0 %v919
    %v1023 = vpop.f32.mrb[0].mxu0
    %v1024 = vadd.f32 %v940, %v1023
    %v1025 = vpop.f32.mrb[0].mxu0
    %v1026 = vpop.f32.mrb[0].mxu0
    %v1027 = vadd.f32 %v940, %v1026
    %v1028 = vpop.f32.mrb[0].mxu0
    %1029 = vdwg.mxu0
    %v1030 = vadd.f32 %v793, %v1024
    %v1031 = vadd.f32 %v794, %v1027
    %v1032 = vld [vmem:[%s4 + $0x1] sm:$0x1]
    %v1033 = vld [vmem:[%s5 + $0x1] sm:$0x1]
    %v1034 = vsel %vm112, %v1030, 0.0
    %1035 = vadd.xlane.f32.xlu0 %v1034
    %v1036 = vpop.xlane.xlu0 %1035
    %v1037 = vsel %vm112, %v1031, 0.0
    %1038 = vadd.xlane.f32.xlu0 %v1037
    %v1039 = vpop.xlane.xlu0 %1038
    %v1040 = vmul.f32 %v1036, %v119
    %v1041 = vmul.f32 %v1039, %v119
    %v1042 = vsub.f32 %v1030, %v1040
    %v1043 = vsub.f32 %v1031, %v1041
    %v1044 = vmul.f32 %v1042, %v1042
    %v1045 = vmul.f32 %v1043, %v1043
    %v1046 = vsel %vm112, %v1044, 0.0
    %1047 = vadd.xlane.f32.xlu0 %v1046
    %v1048 = vpop.xlane.xlu0 %1047
    %v1049 = vsel %vm112, %v1045, 0.0
    %1050 = vadd.xlane.f32.xlu0 %v1049
    %v1051 = vpop.xlane.xlu0 %1050
    %v1052 = vmul.f32 %v1048, %v119
    %v1053 = vmul.f32 %v1051, %v119
    %v1054 = vadd.f32 %v1052, 1e-05
    %v1055 = vadd.f32 %v1053, 1e-05
    %v1056 = vrsqrt.pop %v1054
    %v1057 = vrsqrt.pop %v1055
    %v1058 = vmul.f32 %v1042, %v1056
    %v1059 = vmul.f32 %v1043, %v1057
    %v1060 = vlaneseq
    %v1061 = vshrl.u32 %v1060, 7
    %v1062 = vsub.s32 0, %v1061
    %v1063 = vrot.slane %v1032, %v1062
    %v1064 = vmul.f32 %v1058, %v1063
    %v1065 = vmul.f32 %v1059, %v1063
    %v1066 = vlaneseq
    %v1067 = vshrl.u32 %v1066, 7
    %v1068 = vsub.s32 0, %v1067
    %v1069 = vrot.slane %v1033, %v1068
    %v1070 = vadd.f32 %v1064, %v1069
    %v1071 = vadd.f32 %v1065, %v1069
    %v1072 = vpack.c.bf16 %v1071, %v1070
    %s1073 = scalar_lea.vmem %s6, 16
    %v1074 = vld [vmem:[%s1073] sm:$0xf]
    %v1075 = vld [vmem:[%s1073 + $0x4] sm:$0xf]
    %v1076 = vld [vmem:[%s1073 + $0x8] sm:$0xf]
    %v1077 = vld [vmem:[%s1073 + $0xc] sm:$0xf]
    %v1078 = vld [vmem:[%s7 + $0x1] sm:$0x1]
    %v1079 = vlaneseq
    %v1080 = vshrl.u32 %v1079, 7
    %v1081 = vsub.s32 0, %v1080
    %v1082 = vrot.slane %v1078, %v1081
    %v1087 = vunpack.c.l.b16 %v1074
    %v1088 = vunpack.c.l.b16 %v1075
    %v1089 = vunpack.c.l.b16 %v1076
    %v1090 = vunpack.c.l.b16 %v1077
    %v1091 = vpack.c.b16 %v1088, %v1087
    %v1092 = vpack.c.b16 %v1090, %v1089
    %v1096 = vsel %vm112, %v1072, 0
    %1098 = vmatprep.subr.bf16.mxu0 0
    %1099 = vmatpush1.bf16.msra.mxu0 %v1091
    %1100 = vmatprep.subr.bf16.mxu0 0
    %1101 = vmatpush1.bf16.msra.mxu0 %v1092
    %1102 = vmatprep.subr.bf16.mxu0 0
    %1103 = vmatpush1.bf16.msra.mxu0 0
    %1104 = vmatprep.subr.bf16.mxu0 0
    %1105 = vmatpush1.bf16.msra.mxu0 0
    %1106 = vmatprep.subr.bf16.mxu0 0
    %1107 = vmatpush1.bf16.msra.mxu0 0
    %1108 = vmatprep.subr.bf16.mxu0 0
    %1109 = vmatpush1.bf16.msra.mxu0 0
    %1110 = vmatprep.subr.bf16.mxu0 0
    %1111 = vmatpush1.bf16.msra.mxu0 0
    %1112 = vmatprep.subr.bf16.mxu0 0
    %1113 = vmatpush1.bf16.msra.mxu0 0
    %1114 = vmatprep.subr.bf16.mxu0 0
    %1115 = vmatpush1.bf16.msra.mxu0 0
    %1116 = vmatprep.subr.bf16.mxu0 0
    %1117 = vmatpush1.bf16.msra.mxu0 0
    %1118 = vmatprep.subr.bf16.mxu0 0
    %1119 = vmatpush1.bf16.msra.mxu0 0
    %1120 = vmatprep.subr.bf16.mxu0 0
    %1121 = vmatpush1.bf16.msra.mxu0 0
    %1122 = vmatprep.subr.bf16.mxu0 0
    %1123 = vmatpush1.bf16.msra.mxu0 0
    %1124 = vmatprep.subr.bf16.mxu0 0
    %1125 = vmatpush1.bf16.msra.mxu0 0
    %1126 = vmatprep.subr.bf16.mxu0 0
    %1127 = vmatpush1.bf16.msra.mxu0 0
    %1128 = vmatprep.subr.bf16.mxu0 0
    %1129 = vmatpush1.bf16.msra.mxu0 0
    %1130 = vmatprep.mubr.bf16.mxu0 0
    %1131 = vmatmul.mubr.bf16.gmra.mrb[0].mxu0 %v1096
    %v1132 = vpop.f32.mrb[0].mxu0
    %v1133 = vadd.f32 %v1082, %v1132
    %v1134 = vpop.f32.mrb[0].mxu0
    %v1135 = vpop.f32.mrb[0].mxu0
    %v1136 = vadd.f32 %v1082, %v1135
    %v1137 = vpop.f32.mrb[0].mxu0
    %1138 = vdwg.mxu0
    %v1139 = vmul.f32 %v1133, 0.25
    %v1140 = vmul.f32 %v1136, 0.25
    %v1141 = vpack.c.bf16 %v1139, %v1139
    %v1142 = vpack.c.bf16 %v1140, %v1140
    %v1143 = vpack.c.bf16 %v1133, %v1133
    %v1144 = vpack.c.bf16 %v1136, %v1136
    %1146 = vrot.lane.b32.xlu0 %v1143, 96
    %v1147 = vpop.permute.xlu0 %1146
    %v1149 = vsel %vm277, %v1141, 0
    %v1152 = vsel %vm277, %v1147, 0
    %1154 = vmatprep.subr.bf16.mxu0 0
    %1155 = vmatpush1.bf16.xpose.msra.mxu0 %v1152
    %1156 = vmatprep.subr.bf16.mxu0 0
    %1157 = vmatpush1.bf16.xpose.msra.mxu0 0
    %1158 = vmatprep.subr.bf16.mxu0 0
    %1159 = vmatpush1.bf16.xpose.msra.mxu0 0
    %1160 = vmatprep.subr.bf16.mxu0 0
    %1161 = vmatpush1.bf16.xpose.msra.mxu0 0
    %1162 = vmatprep.subr.bf16.mxu0 0
    %1163 = vmatpush1.bf16.xpose.msra.mxu0 0
    %1164 = vmatprep.subr.bf16.mxu0 0
    %1165 = vmatpush1.bf16.xpose.msra.mxu0 0
    %1166 = vmatprep.subr.bf16.mxu0 0
    %1167 = vmatpush1.bf16.xpose.msra.mxu0 0
    %1168 = vmatprep.subr.bf16.mxu0 0
    %1169 = vmatpush1.bf16.xpose.msra.mxu0 0
    %1170 = vmatprep.subr.bf16.mxu0 0
    %1171 = vmatpush1.bf16.xpose.msra.mxu0 0
    %1172 = vmatprep.subr.bf16.mxu0 0
    %1173 = vmatpush1.bf16.xpose.msra.mxu0 0
    %1174 = vmatprep.subr.bf16.mxu0 0
    %1175 = vmatpush1.bf16.xpose.msra.mxu0 0
    %1176 = vmatprep.subr.bf16.mxu0 0
    %1177 = vmatpush1.bf16.xpose.msra.mxu0 0
    %1178 = vmatprep.subr.bf16.mxu0 0
    %1179 = vmatpush1.bf16.xpose.msra.mxu0 0
    %1180 = vmatprep.subr.bf16.mxu0 0
    %1181 = vmatpush1.bf16.xpose.msra.mxu0 0
    %1182 = vmatprep.subr.bf16.mxu0 0
    %1183 = vmatpush1.bf16.xpose.msra.mxu0 0
    %1184 = vmatprep.subr.bf16.mxu0 0
    %1185 = vmatpush1.bf16.xpose.msra.mxu0 0
    %1186 = vmatprep.mubr.bf16.mxu0 0
    %1187 = vmatmul.mubr.bf16.gmra.mrb[0].mxu0 %v1149
    %v1188 = vpop.f32.mrb[0].mxu0
    %v1189 = vadd.f32 %v161, %v1188
    %v1190 = vpop.f32.mrb[0].mxu0
    %v1191 = vpop.f32.mrb[0].mxu0
    %v1192 = vpop.f32.mrb[0].mxu0
    %1193 = vdwg.mxu0
    %1195 = vrot.lane.b32.xlu0 %v1144, 96
    %v1196 = vpop.permute.xlu0 %1195
    %v1198 = vsel %vm277, %v1142, 0
    %v1201 = vsel %vm277, %v1196, 0
    %1203 = vmatprep.subr.bf16.mxu0 0
    %1204 = vmatpush1.bf16.xpose.msra.mxu0 %v1201
    %1205 = vmatprep.subr.bf16.mxu0 0
    %1206 = vmatpush1.bf16.xpose.msra.mxu0 0
    %1207 = vmatprep.subr.bf16.mxu0 0
    %1208 = vmatpush1.bf16.xpose.msra.mxu0 0
    %1209 = vmatprep.subr.bf16.mxu0 0
    %1210 = vmatpush1.bf16.xpose.msra.mxu0 0
    %1211 = vmatprep.subr.bf16.mxu0 0
    %1212 = vmatpush1.bf16.xpose.msra.mxu0 0
    %1213 = vmatprep.subr.bf16.mxu0 0
    %1214 = vmatpush1.bf16.xpose.msra.mxu0 0
    %1215 = vmatprep.subr.bf16.mxu0 0
    %1216 = vmatpush1.bf16.xpose.msra.mxu0 0
    %1217 = vmatprep.subr.bf16.mxu0 0
    %1218 = vmatpush1.bf16.xpose.msra.mxu0 0
    %1219 = vmatprep.subr.bf16.mxu0 0
    %1220 = vmatpush1.bf16.xpose.msra.mxu0 0
    %1221 = vmatprep.subr.bf16.mxu0 0
    %1222 = vmatpush1.bf16.xpose.msra.mxu0 0
    %1223 = vmatprep.subr.bf16.mxu0 0
    %1224 = vmatpush1.bf16.xpose.msra.mxu0 0
    %1225 = vmatprep.subr.bf16.mxu0 0
    %1226 = vmatpush1.bf16.xpose.msra.mxu0 0
    %1227 = vmatprep.subr.bf16.mxu0 0
    %1228 = vmatpush1.bf16.xpose.msra.mxu0 0
    %1229 = vmatprep.subr.bf16.mxu0 0
    %1230 = vmatpush1.bf16.xpose.msra.mxu0 0
    %1231 = vmatprep.subr.bf16.mxu0 0
    %1232 = vmatpush1.bf16.xpose.msra.mxu0 0
    %1233 = vmatprep.subr.bf16.mxu0 0
    %1234 = vmatpush1.bf16.xpose.msra.mxu0 0
    %1235 = vmatprep.mubr.bf16.mxu0 0
    %1236 = vmatmul.mubr.bf16.gmra.mrb[0].mxu0 %v1198
    %v1237 = vpop.f32.mrb[0].mxu0
    %v1238 = vadd.f32 %v161, %v1237
    %v1239 = vpop.f32.mrb[0].mxu0
    %v1240 = vpop.f32.mrb[0].mxu0
    %v1241 = vpop.f32.mrb[0].mxu0
    %1242 = vdwg.mxu0
    %v1243 = vsel %vm373, %v1189, -inf
    %1244 = vmax.xlane.f32.xlu0 %v1243
    %v1245 = vpop.xlane.xlu0 %1244
    %v1246 = vsel %vm373, %v1238, -inf
    %1247 = vmax.xlane.f32.xlu0 %v1246
    %v1248 = vpop.xlane.xlu0 %1247
    %v1249 = vsub.f32 %v1189, %v1245
    %v1250 = vsub.f32 %v1238, %v1248
    %v1251 = vmul.f32 %v1249, 1.442695
    %v1252 = vpow.pop %v1251
    %v1253 = vmul.f32 %v1250, 1.442695
    %v1254 = vpow.pop %v1253
    %v1255 = vsel %vm373, %v1252, 0.0
    %1256 = vadd.xlane.f32.xlu0 %v1255
    %v1257 = vpop.xlane.xlu0 %1256
    %v1258 = vsel %vm373, %v1254, 0.0
    %1259 = vadd.xlane.f32.xlu0 %v1258
    %v1260 = vpop.xlane.xlu0 %1259
    %v1261 = vrcp.pop %v1257
    %v1262 = vrcp.pop %v1260
    %v1263 = vmul.f32 %v1252, %v1261
    %v1264 = vmul.f32 %v1254, %v1262
    %v1265 = vpack.c.bf16 %v1263, %v1263
    %v1266 = vpack.c.bf16 %v1264, %v1264
    %1267 = vrot.lane.b32.xlu0 %v1143, 64
    %v1268 = vpop.permute.xlu0 %1267
    %v1270 = vsel %vm373, %v1265, 0
    %v1273 = vsel %vm403, %v1268, 0
    %1275 = vmatprep.subr.bf16.mxu0 0
    %1276 = vmatpush1.bf16.msra.mxu0 %v1273
    %1277 = vmatprep.subr.bf16.mxu0 0
    %1278 = vmatpush1.bf16.msra.mxu0 0
    %1279 = vmatprep.subr.bf16.mxu0 0
    %1280 = vmatpush1.bf16.msra.mxu0 0
    %1281 = vmatprep.subr.bf16.mxu0 0
    %1282 = vmatpush1.bf16.msra.mxu0 0
    %1283 = vmatprep.subr.bf16.mxu0 0
    %1284 = vmatpush1.bf16.msra.mxu0 0
    %1285 = vmatprep.subr.bf16.mxu0 0
    %1286 = vmatpush1.bf16.msra.mxu0 0
    %1287 = vmatprep.subr.bf16.mxu0 0
    %1288 = vmatpush1.bf16.msra.mxu0 0
    %1289 = vmatprep.subr.bf16.mxu0 0
    %1290 = vmatpush1.bf16.msra.mxu0 0
    %1291 = vmatprep.subr.bf16.mxu0 0
    %1292 = vmatpush1.bf16.msra.mxu0 0
    %1293 = vmatprep.subr.bf16.mxu0 0
    %1294 = vmatpush1.bf16.msra.mxu0 0
    %1295 = vmatprep.subr.bf16.mxu0 0
    %1296 = vmatpush1.bf16.msra.mxu0 0
    %1297 = vmatprep.subr.bf16.mxu0 0
    %1298 = vmatpush1.bf16.msra.mxu0 0
    %1299 = vmatprep.subr.bf16.mxu0 0
    %1300 = vmatpush1.bf16.msra.mxu0 0
    %1301 = vmatprep.subr.bf16.mxu0 0
    %1302 = vmatpush1.bf16.msra.mxu0 0
    %1303 = vmatprep.subr.bf16.mxu0 0
    %1304 = vmatpush1.bf16.msra.mxu0 0
    %1305 = vmatprep.subr.bf16.mxu0 0
    %1306 = vmatpush1.bf16.msra.mxu0 0
    %1307 = vmatprep.mubr.bf16.mxu0 0
    %1308 = vmatmul.mubr.bf16.gmra.mrb[0].mxu0 %v1270
    %v1309 = vpop.f32.mrb[0].mxu0
    %v1310 = vadd.f32 0.0, %v1309
    %v1311 = vpop.f32.mrb[0].mxu0
    %v1312 = vpop.f32.mrb[0].mxu0
    %v1313 = vpop.f32.mrb[0].mxu0
    %1314 = vdwg.mxu0
    %1315 = vrot.lane.b32.xlu0 %v1144, 64
    %v1316 = vpop.permute.xlu0 %1315
    %v1318 = vsel %vm373, %v1266, 0
    %v1321 = vsel %vm403, %v1316, 0
    %1323 = vmatprep.subr.bf16.mxu0 0
    %1324 = vmatpush1.bf16.msra.mxu0 %v1321
    %1325 = vmatprep.subr.bf16.mxu0 0
    %1326 = vmatpush1.bf16.msra.mxu0 0
    %1327 = vmatprep.subr.bf16.mxu0 0
    %1328 = vmatpush1.bf16.msra.mxu0 0
    %1329 = vmatprep.subr.bf16.mxu0 0
    %1330 = vmatpush1.bf16.msra.mxu0 0
    %1331 = vmatprep.subr.bf16.mxu0 0
    %1332 = vmatpush1.bf16.msra.mxu0 0
    %1333 = vmatprep.subr.bf16.mxu0 0
    %1334 = vmatpush1.bf16.msra.mxu0 0
    %1335 = vmatprep.subr.bf16.mxu0 0
    %1336 = vmatpush1.bf16.msra.mxu0 0
    %1337 = vmatprep.subr.bf16.mxu0 0
    %1338 = vmatpush1.bf16.msra.mxu0 0
    %1339 = vmatprep.subr.bf16.mxu0 0
    %1340 = vmatpush1.bf16.msra.mxu0 0
    %1341 = vmatprep.subr.bf16.mxu0 0
    %1342 = vmatpush1.bf16.msra.mxu0 0
    %1343 = vmatprep.subr.bf16.mxu0 0
    %1344 = vmatpush1.bf16.msra.mxu0 0
    %1345 = vmatprep.subr.bf16.mxu0 0
    %1346 = vmatpush1.bf16.msra.mxu0 0
    %1347 = vmatprep.subr.bf16.mxu0 0
    %1348 = vmatpush1.bf16.msra.mxu0 0
    %1349 = vmatprep.subr.bf16.mxu0 0
    %1350 = vmatpush1.bf16.msra.mxu0 0
    %1351 = vmatprep.subr.bf16.mxu0 0
    %1352 = vmatpush1.bf16.msra.mxu0 0
    %1353 = vmatprep.subr.bf16.mxu0 0
    %1354 = vmatpush1.bf16.msra.mxu0 0
    %1355 = vmatprep.mubr.bf16.mxu0 0
    %1356 = vmatmul.mubr.bf16.gmra.mrb[0].mxu0 %v1318
    %v1357 = vpop.f32.mrb[0].mxu0
    %v1358 = vadd.f32 0.0, %v1357
    %v1359 = vpop.f32.mrb[0].mxu0
    %v1360 = vpop.f32.mrb[0].mxu0
    %v1361 = vpop.f32.mrb[0].mxu0
    %1362 = vdwg.mxu0
    %1364 = vrot.lane.b32.xlu0 %v1141, 112
    %v1365 = vpop.permute.xlu0 %1364
    %1366 = vrot.lane.b32.xlu0 %v1143, 80
    %v1367 = vpop.permute.xlu0 %1366
    %v1369 = vsel %vm277, %v1365, 0
    %v1372 = vsel %vm277, %v1367, 0
    %1374 = vmatprep.subr.bf16.mxu0 0
    %1375 = vmatpush1.bf16.xpose.msra.mxu0 %v1372
    %1376 = vmatprep.subr.bf16.mxu0 0
    %1377 = vmatpush1.bf16.xpose.msra.mxu0 0
    %1378 = vmatprep.subr.bf16.mxu0 0
    %1379 = vmatpush1.bf16.xpose.msra.mxu0 0
    %1380 = vmatprep.subr.bf16.mxu0 0
    %1381 = vmatpush1.bf16.xpose.msra.mxu0 0
    %1382 = vmatprep.subr.bf16.mxu0 0
    %1383 = vmatpush1.bf16.xpose.msra.mxu0 0
    %1384 = vmatprep.subr.bf16.mxu0 0
    %1385 = vmatpush1.bf16.xpose.msra.mxu0 0
    %1386 = vmatprep.subr.bf16.mxu0 0
    %1387 = vmatpush1.bf16.xpose.msra.mxu0 0
    %1388 = vmatprep.subr.bf16.mxu0 0
    %1389 = vmatpush1.bf16.xpose.msra.mxu0 0
    %1390 = vmatprep.subr.bf16.mxu0 0
    %1391 = vmatpush1.bf16.xpose.msra.mxu0 0
    %1392 = vmatprep.subr.bf16.mxu0 0
    %1393 = vmatpush1.bf16.xpose.msra.mxu0 0
    %1394 = vmatprep.subr.bf16.mxu0 0
    %1395 = vmatpush1.bf16.xpose.msra.mxu0 0
    %1396 = vmatprep.subr.bf16.mxu0 0
    %1397 = vmatpush1.bf16.xpose.msra.mxu0 0
    %1398 = vmatprep.subr.bf16.mxu0 0
    %1399 = vmatpush1.bf16.xpose.msra.mxu0 0
    %1400 = vmatprep.subr.bf16.mxu0 0
    %1401 = vmatpush1.bf16.xpose.msra.mxu0 0
    %1402 = vmatprep.subr.bf16.mxu0 0
    %1403 = vmatpush1.bf16.xpose.msra.mxu0 0
    %1404 = vmatprep.subr.bf16.mxu0 0
    %1405 = vmatpush1.bf16.xpose.msra.mxu0 0
    %1406 = vmatprep.mubr.bf16.mxu0 0
    %1407 = vmatmul.mubr.bf16.gmra.mrb[0].mxu0 %v1369
    %v1408 = vpop.f32.mrb[0].mxu0
    %v1409 = vadd.f32 %v161, %v1408
    %v1410 = vpop.f32.mrb[0].mxu0
    %v1411 = vpop.f32.mrb[0].mxu0
    %v1412 = vpop.f32.mrb[0].mxu0
    %1413 = vdwg.mxu0
    %1415 = vrot.lane.b32.xlu0 %v1142, 112
    %v1416 = vpop.permute.xlu0 %1415
    %1417 = vrot.lane.b32.xlu0 %v1144, 80
    %v1418 = vpop.permute.xlu0 %1417
    %v1420 = vsel %vm277, %v1416, 0
    %v1423 = vsel %vm277, %v1418, 0
    %1425 = vmatprep.subr.bf16.mxu0 0
    %1426 = vmatpush1.bf16.xpose.msra.mxu0 %v1423
    %1427 = vmatprep.subr.bf16.mxu0 0
    %1428 = vmatpush1.bf16.xpose.msra.mxu0 0
    %1429 = vmatprep.subr.bf16.mxu0 0
    %1430 = vmatpush1.bf16.xpose.msra.mxu0 0
    %1431 = vmatprep.subr.bf16.mxu0 0
    %1432 = vmatpush1.bf16.xpose.msra.mxu0 0
    %1433 = vmatprep.subr.bf16.mxu0 0
    %1434 = vmatpush1.bf16.xpose.msra.mxu0 0
    %1435 = vmatprep.subr.bf16.mxu0 0
    %1436 = vmatpush1.bf16.xpose.msra.mxu0 0
    %1437 = vmatprep.subr.bf16.mxu0 0
    %1438 = vmatpush1.bf16.xpose.msra.mxu0 0
    %1439 = vmatprep.subr.bf16.mxu0 0
    %1440 = vmatpush1.bf16.xpose.msra.mxu0 0
    %1441 = vmatprep.subr.bf16.mxu0 0
    %1442 = vmatpush1.bf16.xpose.msra.mxu0 0
    %1443 = vmatprep.subr.bf16.mxu0 0
    %1444 = vmatpush1.bf16.xpose.msra.mxu0 0
    %1445 = vmatprep.subr.bf16.mxu0 0
    %1446 = vmatpush1.bf16.xpose.msra.mxu0 0
    %1447 = vmatprep.subr.bf16.mxu0 0
    %1448 = vmatpush1.bf16.xpose.msra.mxu0 0
    %1449 = vmatprep.subr.bf16.mxu0 0
    %1450 = vmatpush1.bf16.xpose.msra.mxu0 0
    %1451 = vmatprep.subr.bf16.mxu0 0
    %1452 = vmatpush1.bf16.xpose.msra.mxu0 0
    %1453 = vmatprep.subr.bf16.mxu0 0
    %1454 = vmatpush1.bf16.xpose.msra.mxu0 0
    %1455 = vmatprep.subr.bf16.mxu0 0
    %1456 = vmatpush1.bf16.xpose.msra.mxu0 0
    %1457 = vmatprep.mubr.bf16.mxu0 0
    %1458 = vmatmul.mubr.bf16.gmra.mrb[0].mxu0 %v1420
    %v1459 = vpop.f32.mrb[0].mxu0
    %v1460 = vadd.f32 %v161, %v1459
    %v1461 = vpop.f32.mrb[0].mxu0
    %v1462 = vpop.f32.mrb[0].mxu0
    %v1463 = vpop.f32.mrb[0].mxu0
    %1464 = vdwg.mxu0
    %v1465 = vsel %vm373, %v1409, -inf
    %1466 = vmax.xlane.f32.xlu0 %v1465
    %v1467 = vpop.xlane.xlu0 %1466
    %v1468 = vsel %vm373, %v1460, -inf
    %1469 = vmax.xlane.f32.xlu0 %v1468
    %v1470 = vpop.xlane.xlu0 %1469
    %v1471 = vsub.f32 %v1409, %v1467
    %v1472 = vsub.f32 %v1460, %v1470
    %v1473 = vmul.f32 %v1471, 1.442695
    %v1474 = vpow.pop %v1473
    %v1475 = vmul.f32 %v1472, 1.442695
    %v1476 = vpow.pop %v1475
    %v1477 = vsel %vm373, %v1474, 0.0
    %1478 = vadd.xlane.f32.xlu0 %v1477
    %v1479 = vpop.xlane.xlu0 %1478
    %v1480 = vsel %vm373, %v1476, 0.0
    %1481 = vadd.xlane.f32.xlu0 %v1480
    %v1482 = vpop.xlane.xlu0 %1481
    %v1483 = vrcp.pop %v1479
    %v1484 = vrcp.pop %v1482
    %v1485 = vmul.f32 %v1474, %v1483
    %v1486 = vmul.f32 %v1476, %v1484
    %v1487 = vpack.c.bf16 %v1485, %v1485
    %v1488 = vpack.c.bf16 %v1486, %v1486
    %1489 = vrot.lane.b32.xlu0 %v1143, 48
    %v1490 = vpop.permute.xlu0 %1489
    %v1492 = vsel %vm373, %v1487, 0
    %v1495 = vsel %vm403, %v1490, 0
    %1497 = vmatprep.subr.bf16.mxu0 0
    %1498 = vmatpush1.bf16.msra.mxu0 %v1495
    %1499 = vmatprep.subr.bf16.mxu0 0
    %1500 = vmatpush1.bf16.msra.mxu0 0
    %1501 = vmatprep.subr.bf16.mxu0 0
    %1502 = vmatpush1.bf16.msra.mxu0 0
    %1503 = vmatprep.subr.bf16.mxu0 0
    %1504 = vmatpush1.bf16.msra.mxu0 0
    %1505 = vmatprep.subr.bf16.mxu0 0
    %1506 = vmatpush1.bf16.msra.mxu0 0
    %1507 = vmatprep.subr.bf16.mxu0 0
    %1508 = vmatpush1.bf16.msra.mxu0 0
    %1509 = vmatprep.subr.bf16.mxu0 0
    %1510 = vmatpush1.bf16.msra.mxu0 0
    %1511 = vmatprep.subr.bf16.mxu0 0
    %1512 = vmatpush1.bf16.msra.mxu0 0
    %1513 = vmatprep.subr.bf16.mxu0 0
    %1514 = vmatpush1.bf16.msra.mxu0 0
    %1515 = vmatprep.subr.bf16.mxu0 0
    %1516 = vmatpush1.bf16.msra.mxu0 0
    %1517 = vmatprep.subr.bf16.mxu0 0
    %1518 = vmatpush1.bf16.msra.mxu0 0
    %1519 = vmatprep.subr.bf16.mxu0 0
    %1520 = vmatpush1.bf16.msra.mxu0 0
    %1521 = vmatprep.subr.bf16.mxu0 0
    %1522 = vmatpush1.bf16.msra.mxu0 0
    %1523 = vmatprep.subr.bf16.mxu0 0
    %1524 = vmatpush1.bf16.msra.mxu0 0
    %1525 = vmatprep.subr.bf16.mxu0 0
    %1526 = vmatpush1.bf16.msra.mxu0 0
    %1527 = vmatprep.subr.bf16.mxu0 0
    %1528 = vmatpush1.bf16.msra.mxu0 0
    %1529 = vmatprep.mubr.bf16.mxu0 0
    %1530 = vmatmul.mubr.bf16.gmra.mrb[0].mxu0 %v1492
    %v1531 = vpop.f32.mrb[0].mxu0
    %v1532 = vadd.f32 0.0, %v1531
    %v1533 = vpop.f32.mrb[0].mxu0
    %v1534 = vpop.f32.mrb[0].mxu0
    %v1535 = vpop.f32.mrb[0].mxu0
    %1536 = vdwg.mxu0
    %1537 = vrot.lane.b32.xlu0 %v1144, 48
    %v1538 = vpop.permute.xlu0 %1537
    %v1540 = vsel %vm373, %v1488, 0
    %v1543 = vsel %vm403, %v1538, 0
    %1545 = vmatprep.subr.bf16.mxu0 0
    %1546 = vmatpush1.bf16.msra.mxu0 %v1543
    %1547 = vmatprep.subr.bf16.mxu0 0
    %1548 = vmatpush1.bf16.msra.mxu0 0
    %1549 = vmatprep.subr.bf16.mxu0 0
    %1550 = vmatpush1.bf16.msra.mxu0 0
    %1551 = vmatprep.subr.bf16.mxu0 0
    %1552 = vmatpush1.bf16.msra.mxu0 0
    %1553 = vmatprep.subr.bf16.mxu0 0
    %1554 = vmatpush1.bf16.msra.mxu0 0
    %1555 = vmatprep.subr.bf16.mxu0 0
    %1556 = vmatpush1.bf16.msra.mxu0 0
    %1557 = vmatprep.subr.bf16.mxu0 0
    %1558 = vmatpush1.bf16.msra.mxu0 0
    %1559 = vmatprep.subr.bf16.mxu0 0
    %1560 = vmatpush1.bf16.msra.mxu0 0
    %1561 = vmatprep.subr.bf16.mxu0 0
    %1562 = vmatpush1.bf16.msra.mxu0 0
    %1563 = vmatprep.subr.bf16.mxu0 0
    %1564 = vmatpush1.bf16.msra.mxu0 0
    %1565 = vmatprep.subr.bf16.mxu0 0
    %1566 = vmatpush1.bf16.msra.mxu0 0
    %1567 = vmatprep.subr.bf16.mxu0 0
    %1568 = vmatpush1.bf16.msra.mxu0 0
    %1569 = vmatprep.subr.bf16.mxu0 0
    %1570 = vmatpush1.bf16.msra.mxu0 0
    %1571 = vmatprep.subr.bf16.mxu0 0
    %1572 = vmatpush1.bf16.msra.mxu0 0
    %1573 = vmatprep.subr.bf16.mxu0 0
    %1574 = vmatpush1.bf16.msra.mxu0 0
    %1575 = vmatprep.subr.bf16.mxu0 0
    %1576 = vmatpush1.bf16.msra.mxu0 0
    %1577 = vmatprep.mubr.bf16.mxu0 0
    %1578 = vmatmul.mubr.bf16.gmra.mrb[0].mxu0 %v1540
    %v1579 = vpop.f32.mrb[0].mxu0
    %v1580 = vadd.f32 0.0, %v1579
    %v1581 = vpop.f32.mrb[0].mxu0
    %v1582 = vpop.f32.mrb[0].mxu0
    %v1583 = vpop.f32.mrb[0].mxu0
    %1584 = vdwg.mxu0
    %1587 = vrot.lane.b32.xlu0 %v1532, 16
    %v1588 = vpop.permute.xlu0 %1587
    %1589 = vrot.lane.b32.xlu0 %v1580, 16
    %v1590 = vpop.permute.xlu0 %1589
    %v1593 = vsel %vm277, %v1310, %v1588
    %v1594 = vsel %vm277, %v1358, %v1590
    %v1595 = vpack.c.bf16 %v1594, %v1593
    %s1596 = scalar_lea.vmem [#allocation7], 16
    %v1597 = vld [vmem:[%s1596] sm:$0xf]
    %v1598 = vld [vmem:[%s1596 + $0x4] sm:$0xf]
    %v1599 = vld [vmem:[%s1596 + $0x8] sm:$0xf]
    %v1600 = vld [vmem:[%s1596 + $0xc] sm:$0xf]
    %v1601 = vld [vmem:[%s9 + $0x1] sm:$0x1]
    %v1602 = vlaneseq
    %v1603 = vshrl.u32 %v1602, 7
    %v1604 = vsub.s32 0, %v1603
    %v1605 = vrot.slane %v1601, %v1604
    %v1610 = vunpack.c.l.b16 %v1597
    %v1611 = vunpack.c.l.b16 %v1598
    %v1612 = vunpack.c.l.b16 %v1599
    %v1613 = vunpack.c.l.b16 %v1600
    %v1614 = vpack.c.b16 %v1611, %v1610
    %v1615 = vpack.c.b16 %v1613, %v1612
    %v1619 = vsel %vm112, %v1595, 0
    %1621 = vmatprep.subr.bf16.mxu0 0
    %1622 = vmatpush1.bf16.msra.mxu0 %v1614
    %1623 = vmatprep.subr.bf16.mxu0 0
    %1624 = vmatpush1.bf16.msra.mxu0 %v1615
    %1625 = vmatprep.subr.bf16.mxu0 0
    %1626 = vmatpush1.bf16.msra.mxu0 0
    %1627 = vmatprep.subr.bf16.mxu0 0
    %1628 = vmatpush1.bf16.msra.mxu0 0
    %1629 = vmatprep.subr.bf16.mxu0 0
    %1630 = vmatpush1.bf16.msra.mxu0 0
    %1631 = vmatprep.subr.bf16.mxu0 0
    %1632 = vmatpush1.bf16.msra.mxu0 0
    %1633 = vmatprep.subr.bf16.mxu0 0
    %1634 = vmatpush1.bf16.msra.mxu0 0
    %1635 = vmatprep.subr.bf16.mxu0 0
    %1636 = vmatpush1.bf16.msra.mxu0 0
    %1637 = vmatprep.subr.bf16.mxu0 0
    %1638 = vmatpush1.bf16.msra.mxu0 0
    %1639 = vmatprep.subr.bf16.mxu0 0
    %1640 = vmatpush1.bf16.msra.mxu0 0
    %1641 = vmatprep.subr.bf16.mxu0 0
    %1642 = vmatpush1.bf16.msra.mxu0 0
    %1643 = vmatprep.subr.bf16.mxu0 0
    %1644 = vmatpush1.bf16.msra.mxu0 0
    %1645 = vmatprep.subr.bf16.mxu0 0
    %1646 = vmatpush1.bf16.msra.mxu0 0
    %1647 = vmatprep.subr.bf16.mxu0 0
    %1648 = vmatpush1.bf16.msra.mxu0 0
    %1649 = vmatprep.subr.bf16.mxu0 0
    %1650 = vmatpush1.bf16.msra.mxu0 0
    %1651 = vmatprep.subr.bf16.mxu0 0
    %1652 = vmatpush1.bf16.msra.mxu0 0
    %1653 = vmatprep.mubr.bf16.mxu0 0
    %1654 = vmatmul.mubr.bf16.gmra.mrb[0].mxu0 %v1619
    %v1655 = vpop.f32.mrb[0].mxu0
    %v1656 = vadd.f32 %v1605, %v1655
    %v1657 = vpop.f32.mrb[0].mxu0
    %v1658 = vpop.f32.mrb[0].mxu0
    %v1659 = vadd.f32 %v1605, %v1658
    %v1660 = vpop.f32.mrb[0].mxu0
    %1661 = vdwg.mxu0
    %v1662 = vadd.f32 %v1030, %v1656
    %v1663 = vadd.f32 %v1031, %v1659
    %v1664 = vld [vmem:[%s10 + $0x1] sm:$0x1]
    %v1665 = vld [vmem:[%s11 + $0x1] sm:$0x1]
    %v1666 = vsel %vm112, %v1662, 0.0
    %1667 = vadd.xlane.f32.xlu0 %v1666
    %v1668 = vpop.xlane.xlu0 %1667
    %v1669 = vsel %vm112, %v1663, 0.0
    %1670 = vadd.xlane.f32.xlu0 %v1669
    %v1671 = vpop.xlane.xlu0 %1670
    %v1672 = vmul.f32 %v1668, %v119
    %v1673 = vmul.f32 %v1671, %v119
    %v1674 = vsub.f32 %v1662, %v1672
    %v1675 = vsub.f32 %v1663, %v1673
    %v1676 = vmul.f32 %v1674, %v1674
    %v1677 = vmul.f32 %v1675, %v1675
    %v1678 = vsel %vm112, %v1676, 0.0
    %1679 = vadd.xlane.f32.xlu0 %v1678
    %v1680 = vpop.xlane.xlu0 %1679
    %v1681 = vsel %vm112, %v1677, 0.0
    %1682 = vadd.xlane.f32.xlu0 %v1681
    %v1683 = vpop.xlane.xlu0 %1682
    %v1684 = vmul.f32 %v1680, %v119
    %v1685 = vmul.f32 %v1683, %v119
    %v1686 = vadd.f32 %v1684, 1e-05
    %v1687 = vadd.f32 %v1685, 1e-05
    %v1688 = vrsqrt.pop %v1686
    %v1689 = vrsqrt.pop %v1687
    %v1690 = vmul.f32 %v1674, %v1688
    %v1691 = vmul.f32 %v1675, %v1689
    %v1692 = vlaneseq
    %v1693 = vshrl.u32 %v1692, 7
    %v1694 = vsub.s32 0, %v1693
    %v1695 = vrot.slane %v1664, %v1694
    %v1696 = vmul.f32 %v1690, %v1695
    %v1697 = vmul.f32 %v1691, %v1695
    %v1698 = vlaneseq
    %v1699 = vshrl.u32 %v1698, 7
    %v1700 = vsub.s32 0, %v1699
    %v1701 = vrot.slane %v1665, %v1700
    %v1702 = vadd.f32 %v1696, %v1701
    %v1703 = vadd.f32 %v1697, %v1701
    %v1704 = vpack.c.bf16 %v1703, %v1702
    %s1705 = scalar_lea.vmem [#allocation8], 16
    %v1706 = vld [vmem:[%s1705] sm:$0xf]
    %v1707 = vld [vmem:[%s1705 + $0x4] sm:$0xf]
    %v1708 = vld [vmem:[%s1705 + $0x8] sm:$0xf]
    %v1709 = vld [vmem:[%s1705 + $0xc] sm:$0xf]
    %v1710 = vld [vmem:[%s13 + $0x1] sm:$0x1]
    %v1711 = vlaneseq
    %v1712 = vshrl.u32 %v1711, 7
    %v1713 = vsub.s32 0, %v1712
    %v1714 = vrot.slane %v1710, %v1713
    %v1719 = vunpack.c.l.b16 %v1706
    %v1720 = vunpack.c.l.b16 %v1707
    %v1721 = vunpack.c.l.b16 %v1708
    %v1722 = vunpack.c.l.b16 %v1709
    %v1723 = vpack.c.b16 %v1720, %v1719
    %v1724 = vpack.c.b16 %v1722, %v1721
    %v1728 = vsel %vm112, %v1704, 0
    %1730 = vmatprep.subr.bf16.mxu0 0
    %1731 = vmatpush1.bf16.msra.mxu0 %v1723
    %1732 = vmatprep.subr.bf16.mxu0 0
    %1733 = vmatpush1.bf16.msra.mxu0 %v1724
    %1734 = vmatprep.subr.bf16.mxu0 0
    %1735 = vmatpush1.bf16.msra.mxu0 0
    %1736 = vmatprep.subr.bf16.mxu0 0
    %1737 = vmatpush1.bf16.msra.mxu0 0
    %1738 = vmatprep.subr.bf16.mxu0 0
    %1739 = vmatpush1.bf16.msra.mxu0 0
    %1740 = vmatprep.subr.bf16.mxu0 0
    %1741 = vmatpush1.bf16.msra.mxu0 0
    %1742 = vmatprep.subr.bf16.mxu0 0
    %1743 = vmatpush1.bf16.msra.mxu0 0
    %1744 = vmatprep.subr.bf16.mxu0 0
    %1745 = vmatpush1.bf16.msra.mxu0 0
    %1746 = vmatprep.subr.bf16.mxu0 0
    %1747 = vmatpush1.bf16.msra.mxu0 0
    %1748 = vmatprep.subr.bf16.mxu0 0
    %1749 = vmatpush1.bf16.msra.mxu0 0
    %1750 = vmatprep.subr.bf16.mxu0 0
    %1751 = vmatpush1.bf16.msra.mxu0 0
    %1752 = vmatprep.subr.bf16.mxu0 0
    %1753 = vmatpush1.bf16.msra.mxu0 0
    %1754 = vmatprep.subr.bf16.mxu0 0
    %1755 = vmatpush1.bf16.msra.mxu0 0
    %1756 = vmatprep.subr.bf16.mxu0 0
    %1757 = vmatpush1.bf16.msra.mxu0 0
    %1758 = vmatprep.subr.bf16.mxu0 0
    %1759 = vmatpush1.bf16.msra.mxu0 0
    %1760 = vmatprep.subr.bf16.mxu0 0
    %1761 = vmatpush1.bf16.msra.mxu0 0
    %1762 = vmatprep.mubr.bf16.mxu0 0
    %1763 = vmatmul.mubr.bf16.gmra.mrb[0].mxu0 %v1728
    %v1764 = vpop.f32.mrb[0].mxu0
    %v1765 = vadd.f32 %v1714, %v1764
    %v1766 = vpop.f32.mrb[0].mxu0
    %v1767 = vpop.f32.mrb[0].mxu0
    %v1768 = vadd.f32 %v1714, %v1767
    %v1769 = vpop.f32.mrb[0].mxu0
    %1770 = vdwg.mxu0
    %v1771 = vmul.f32 %v1765, 0.5
    %v1772 = vmul.f32 %v1768, 0.5
    %v1773 = vmul.f32 %v1765, %v1765
    %v1774 = vmul.f32 %v1768, %v1768
    %v1775 = vmul.f32 %v1773, %v1765
    %v1776 = vmul.f32 %v1774, %v1768
    %v1777 = vmul.f32 %v1775, 0.044715
    %v1778 = vmul.f32 %v1776, 0.044715
    %v1779 = vadd.f32 %v1765, %v1777
    %v1780 = vadd.f32 %v1768, %v1778
    %v1781 = vmul.f32 %v1779, 0.7978846
    %v1782 = vmul.f32 %v1780, 0.7978846
    %v1783 = vtanh.pop %v1781
    %v1784 = vtanh.pop %v1782
    %v1785 = vadd.f32 %v1783, 1.0
    %v1786 = vadd.f32 %v1784, 1.0
    %v1787 = vmul.f32 %v1771, %v1785
    %v1788 = vmul.f32 %v1772, %v1786
    %v1789 = vpack.c.bf16 %v1788, %v1787
    %s1790 = scalar_lea.vmem %s14, 64
    %v1791 = vld [vmem:[%s1790] sm:$0xf]
    %v1792 = vld [vmem:[%s1790 + $0x4] sm:$0xf]
    %v1793 = vld [vmem:[%s1790 + $0x8] sm:$0xf]
    %v1794 = vld [vmem:[%s1790 + $0xc] sm:$0xf]
    %v1795 = vld [vmem:[%s1790 + $0x10] sm:$0xf]
    %v1796 = vld [vmem:[%s1790 + $0x14] sm:$0xf]
    %v1797 = vld [vmem:[%s1790 + $0x18] sm:$0xf]
    %v1798 = vld [vmem:[%s1790 + $0x1c] sm:$0xf]
    %v1799 = vld [vmem:[%s1790 + $0x20] sm:$0xf]
    %v1800 = vld [vmem:[%s1790 + $0x24] sm:$0xf]
    %v1801 = vld [vmem:[%s1790 + $0x28] sm:$0xf]
    %v1802 = vld [vmem:[%s1790 + $0x2c] sm:$0xf]
    %v1803 = vld [vmem:[%s1790 + $0x30] sm:$0xf]
    %v1804 = vld [vmem:[%s1790 + $0x34] sm:$0xf]
    %v1805 = vld [vmem:[%s1790 + $0x38] sm:$0xf]
    %v1806 = vld [vmem:[%s1790 + $0x3c] sm:$0xf]
    %v1807 = vld [vmem:[%s15 + $0x1] sm:$0x1]
    %v1808 = vlaneseq
    %v1809 = vshrl.u32 %v1808, 7
    %v1810 = vsub.s32 0, %v1809
    %v1811 = vrot.slane %v1807, %v1810
    %v1828 = vunpack.c.l.b16 %v1791
    %v1829 = vunpack.c.l.b16 %v1792
    %v1830 = vunpack.c.l.b16 %v1793
    %v1831 = vunpack.c.l.b16 %v1794
    %v1832 = vunpack.c.l.b16 %v1795
    %v1833 = vunpack.c.l.b16 %v1796
    %v1834 = vunpack.c.l.b16 %v1797
    %v1835 = vunpack.c.l.b16 %v1798
    %v1836 = vunpack.c.l.b16 %v1799
    %v1837 = vunpack.c.l.b16 %v1800
    %v1838 = vunpack.c.l.b16 %v1801
    %v1839 = vunpack.c.l.b16 %v1802
    %v1840 = vunpack.c.l.b16 %v1803
    %v1841 = vunpack.c.l.b16 %v1804
    %v1842 = vunpack.c.l.b16 %v1805
    %v1843 = vunpack.c.l.b16 %v1806
    %v1844 = vpack.c.b16 %v1829, %v1828
    %v1845 = vpack.c.b16 %v1831, %v1830
    %v1846 = vpack.c.b16 %v1833, %v1832
    %v1847 = vpack.c.b16 %v1835, %v1834
    %v1848 = vpack.c.b16 %v1837, %v1836
    %v1849 = vpack.c.b16 %v1839, %v1838
    %v1850 = vpack.c.b16 %v1841, %v1840
    %v1851 = vpack.c.b16 %v1843, %v1842
    %1860 = vmatprep.subr.bf16.mxu0 0
    %1861 = vmatpush1.bf16.msra.mxu0 %v1844
    %1862 = vmatprep.subr.bf16.mxu0 0
    %1863 = vmatpush1.bf16.msra.mxu0 %v1845
    %1864 = vmatprep.subr.bf16.mxu0 0
    %1865 = vmatpush1.bf16.msra.mxu0 %v1846
    %1866 = vmatprep.subr.bf16.mxu0 0
    %1867 = vmatpush1.bf16.msra.mxu0 %v1847
    %1868 = vmatprep.subr.bf16.mxu0 0
    %1869 = vmatpush1.bf16.msra.mxu0 %v1848
    %1870 = vmatprep.subr.bf16.mxu0 0
    %1871 = vmatpush1.bf16.msra.mxu0 %v1849
    %1872 = vmatprep.subr.bf16.mxu0 0
    %1873 = vmatpush1.bf16.msra.mxu0 %v1850
    %1874 = vmatprep.subr.bf16.mxu0 0
    %1875 = vmatpush1.bf16.msra.mxu0 %v1851
    %1876 = vmatprep.subr.bf16.mxu0 0
    %1877 = vmatpush1.bf16.msra.mxu0 0
    %1878 = vmatprep.subr.bf16.mxu0 0
    %1879 = vmatpush1.bf16.msra.mxu0 0
    %1880 = vmatprep.subr.bf16.mxu0 0
    %1881 = vmatpush1.bf16.msra.mxu0 0
    %1882 = vmatprep.subr.bf16.mxu0 0
    %1883 = vmatpush1.bf16.msra.mxu0 0
    %1884 = vmatprep.subr.bf16.mxu0 0
    %1885 = vmatpush1.bf16.msra.mxu0 0
    %1886 = vmatprep.subr.bf16.mxu0 0
    %1887 = vmatpush1.bf16.msra.mxu0 0
    %1888 = vmatprep.subr.bf16.mxu0 0
    %1889 = vmatpush1.bf16.msra.mxu0 0
    %1890 = vmatprep.subr.bf16.mxu0 0
    %1891 = vmatpush1.bf16.msra.mxu0 0
    %1892 = vmatprep.mubr.bf16.mxu0 0
    %1893 = vmatmul.mubr.bf16.gmra.mrb[0].mxu0 %v1789
    %v1894 = vpop.f32.mrb[0].mxu0
    %v1895 = vadd.f32 %v1811, %v1894
    %v1896 = vpop.f32.mrb[0].mxu0
    %v1897 = vpop.f32.mrb[0].mxu0
    %v1898 = vadd.f32 %v1811, %v1897
    %v1899 = vpop.f32.mrb[0].mxu0
    %1900 = vdwg.mxu0
    %v1901 = vadd.f32 %v1662, %v1895
    %v1902 = vadd.f32 %v1663, %v1898
    %v1903 = vpack.c.bf16 %v1901, %v1901
    %v1904 = vpack.c.bf16 %v1902, %v1902
    %v1905 = vld [vmem:[%s1] sm:$0xf]
    %v1906 = vld [vmem:[%s1 + $0x4] sm:$0xf]
    %v1907 = vld [vmem:[%s1 + $0x8] sm:$0xf]
    %v1908 = vld [vmem:[%s1 + $0xc] sm:$0xf]
    %v1909 = vld [vmem:[%s1 + $0x10] sm:$0xf]
    %v1910 = vld [vmem:[%s1 + $0x14] sm:$0xf]
    %v1911 = vld [vmem:[%s1 + $0x18] sm:$0xf]
    %v1912 = vld [vmem:[%s1 + $0x1c] sm:$0xf]
    %v1913 = vld [vmem:[%s1 + $0x20] sm:$0xf]
    %v1914 = vld [vmem:[%s1 + $0x24] sm:$0xf]
    %v1915 = vld [vmem:[%s1 + $0x28] sm:$0xf]
    %v1916 = vld [vmem:[%s1 + $0x2c] sm:$0xf]
    %v1917 = vld [vmem:[%s1 + $0x30] sm:$0xf]
    %v1918 = vld [vmem:[%s1 + $0x34] sm:$0xf]
    %v1919 = vld [vmem:[%s1 + $0x38] sm:$0xf]
    %v1920 = vld [vmem:[%s1 + $0x3c] sm:$0xf]
    %v1921 = vld [vmem:[%s1 + $0x40] sm:$0xf]
    %v1922 = vld [vmem:[%s1 + $0x44] sm:$0xf]
    %v1923 = vld [vmem:[%s1 + $0x48] sm:$0xf]
    %v1924 = vld [vmem:[%s1 + $0x4c] sm:$0xf]
    %v1925 = vld [vmem:[%s1 + $0x50] sm:$0xf]
    %v1926 = vld [vmem:[%s1 + $0x54] sm:$0xf]
    %v1927 = vld [vmem:[%s1 + $0x58] sm:$0xf]
    %v1928 = vld [vmem:[%s1 + $0x5c] sm:$0xf]
    %v1929 = vld [vmem:[%s1 + $0x60] sm:$0xf]
    %v1930 = vld [vmem:[%s1 + $0x64] sm:$0xf]
    %v1931 = vld [vmem:[%s1 + $0x68] sm:$0xf]
    %v1932 = vld [vmem:[%s1 + $0x6c] sm:$0xf]
    %v1933 = vld [vmem:[%s1 + $0x70] sm:$0xf]
    %v1934 = vld [vmem:[%s1 + $0x74] sm:$0xf]
    %v1935 = vld [vmem:[%s1 + $0x78] sm:$0xf]
    %v1936 = vld [vmem:[%s1 + $0x7c] sm:$0xf]
    %v1953 = vunpack.c.l.b16 %v1905
    %v1954 = vunpack.c.l.b16 %v1906
    %v1955 = vunpack.c.l.b16 %v1907
    %v1956 = vunpack.c.l.b16 %v1908
    %v1957 = vunpack.c.l.b16 %v1909
    %v1958 = vunpack.c.l.b16 %v1910
    %v1959 = vunpack.c.l.b16 %v1911
    %v1960 = vunpack.c.l.b16 %v1912
    %v1961 = vunpack.c.l.b16 %v1913
    %v1962 = vunpack.c.l.b16 %v1914
    %v1963 = vunpack.c.l.b16 %v1915
    %v1964 = vunpack.c.l.b16 %v1916
    %v1965 = vunpack.c.l.b16 %v1917
    %v1966 = vunpack.c.l.b16 %v1918
    %v1967 = vunpack.c.l.b16 %v1919
    %v1968 = vunpack.c.l.b16 %v1920
    %v1969 = vpack.c.b16 %v1954, %v1953
    %v1970 = vpack.c.b16 %v1956, %v1955
    %v1971 = vpack.c.b16 %v1958, %v1957
    %v1972 = vpack.c.b16 %v1960, %v1959
    %v1973 = vpack.c.b16 %v1962, %v1961
    %v1974 = vpack.c.b16 %v1964, %v1963
    %v1975 = vpack.c.b16 %v1966, %v1965
    %v1976 = vpack.c.b16 %v1968, %v1967
    %v1978 = vsel %vm112, %v1903, 0
    %v1981 = vsel %vm112, %v1969, 0
    %v1984 = vsel %vm112, %v1970, 0
    %v1987 = vsel %vm112, %v1971, 0
    %v1990 = vsel %vm112, %v1972, 0
    %v1993 = vsel %vm112, %v1973, 0
    %v1996 = vsel %vm112, %v1974, 0
    %v1999 = vsel %vm112, %v1975, 0
    %v2002 = vsel %vm112, %v1976, 0
    %2004 = vmatprep.subr.bf16.mxu0 0
    %2005 = vmatpush1.bf16.xpose.msra.mxu0 %v1981
    %2006 = vmatprep.subr.bf16.mxu0 0
    %2007 = vmatpush1.bf16.xpose.msra.mxu0 %v1984
    %2008 = vmatprep.subr.bf16.mxu0 0
    %2009 = vmatpush1.bf16.xpose.msra.mxu0 %v1987
    %2010 = vmatprep.subr.bf16.mxu0 0
    %2011 = vmatpush1.bf16.xpose.msra.mxu0 %v1990
    %2012 = vmatprep.subr.bf16.mxu0 0
    %2013 = vmatpush1.bf16.xpose.msra.mxu0 %v1993
    %2014 = vmatprep.subr.bf16.mxu0 0
    %2015 = vmatpush1.bf16.xpose.msra.mxu0 %v1996
    %2016 = vmatprep.subr.bf16.mxu0 0
    %2017 = vmatpush1.bf16.xpose.msra.mxu0 %v1999
    %2018 = vmatprep.subr.bf16.mxu0 0
    %2019 = vmatpush1.bf16.xpose.msra.mxu0 %v2002
    %2020 = vmatprep.subr.bf16.mxu0 0
    %2021 = vmatpush1.bf16.xpose.msra.mxu0 0
    %2022 = vmatprep.subr.bf16.mxu0 0
    %2023 = vmatpush1.bf16.xpose.msra.mxu0 0
    %2024 = vmatprep.subr.bf16.mxu0 0
    %2025 = vmatpush1.bf16.xpose.msra.mxu0 0
    %2026 = vmatprep.subr.bf16.mxu0 0
    %2027 = vmatpush1.bf16.xpose.msra.mxu0 0
    %2028 = vmatprep.subr.bf16.mxu0 0
    %2029 = vmatpush1.bf16.xpose.msra.mxu0 0
    %2030 = vmatprep.subr.bf16.mxu0 0
    %2031 = vmatpush1.bf16.xpose.msra.mxu0 0
    %2032 = vmatprep.subr.bf16.mxu0 0
    %2033 = vmatpush1.bf16.xpose.msra.mxu0 0
    %2034 = vmatprep.subr.bf16.mxu0 0
    %2035 = vmatpush1.bf16.xpose.msra.mxu0 0
    %2036 = vmatprep.mubr.bf16.mxu0 0
    %2037 = vmatmul.mubr.bf16.gmra.mrb[0].mxu0 %v1978
    %v2038 = vpop.f32.mrb[0].mxu0
    %v2039 = vadd.f32 0.0, %v2038
    %v2040 = vpop.f32.mrb[0].mxu0
    %v2041 = vpop.f32.mrb[0].mxu0
    %v2042 = vpop.f32.mrb[0].mxu0
    %2043 = vdwg.mxu0
    %v2060 = vunpack.c.l.b16 %v1921
    %v2061 = vunpack.c.l.b16 %v1922
    %v2062 = vunpack.c.l.b16 %v1923
    %v2063 = vunpack.c.l.b16 %v1924
    %v2064 = vunpack.c.l.b16 %v1925
    %v2065 = vunpack.c.l.b16 %v1926
    %v2066 = vunpack.c.l.b16 %v1927
    %v2067 = vunpack.c.l.b16 %v1928
    %v2068 = vunpack.c.l.b16 %v1929
    %v2069 = vunpack.c.l.b16 %v1930
    %v2070 = vunpack.c.l.b16 %v1931
    %v2071 = vunpack.c.l.b16 %v1932
    %v2072 = vunpack.c.l.b16 %v1933
    %v2073 = vunpack.c.l.b16 %v1934
    %v2074 = vunpack.c.l.b16 %v1935
    %v2075 = vunpack.c.l.b16 %v1936
    %v2076 = vpack.c.b16 %v2061, %v2060
    %v2077 = vpack.c.b16 %v2063, %v2062
    %v2078 = vpack.c.b16 %v2065, %v2064
    %v2079 = vpack.c.b16 %v2067, %v2066
    %v2080 = vpack.c.b16 %v2069, %v2068
    %v2081 = vpack.c.b16 %v2071, %v2070
    %v2082 = vpack.c.b16 %v2073, %v2072
    %v2083 = vpack.c.b16 %v2075, %v2074
    %v2085 = vsel %vm112, %v1904, 0
    %v2088 = vsel %vm112, %v2076, 0
    %v2091 = vsel %vm112, %v2077, 0
    %v2094 = vsel %vm112, %v2078, 0
    %v2097 = vsel %vm112, %v2079, 0
    %v2100 = vsel %vm112, %v2080, 0
    %v2103 = vsel %vm112, %v2081, 0
    %v2106 = vsel %vm112, %v2082, 0
    %v2109 = vsel %vm112, %v2083, 0
    %2111 = vmatprep.subr.bf16.mxu0 0
    %2112 = vmatpush1.bf16.xpose.msra.mxu0 %v2088
    %2113 = vmatprep.subr.bf16.mxu0 0
    %2114 = vmatpush1.bf16.xpose.msra.mxu0 %v2091
    %2115 = vmatprep.subr.bf16.mxu0 0
    %2116 = vmatpush1.bf16.xpose.msra.mxu0 %v2094
    %2117 = vmatprep.subr.bf16.mxu0 0
    %2118 = vmatpush1.bf16.xpose.msra.mxu0 %v2097
    %2119 = vmatprep.subr.bf16.mxu0 0
    %2120 = vmatpush1.bf16.xpose.msra.mxu0 %v2100
    %2121 = vmatprep.subr.bf16.mxu0 0
    %2122 = vmatpush1.bf16.xpose.msra.mxu0 %v2103
    %2123 = vmatprep.subr.bf16.mxu0 0
    %2124 = vmatpush1.bf16.xpose.msra.mxu0 %v2106
    %2125 = vmatprep.subr.bf16.mxu0 0
    %2126 = vmatpush1.bf16.xpose.msra.mxu0 %v2109
    %2127 = vmatprep.subr.bf16.mxu0 0
    %2128 = vmatpush1.bf16.xpose.msra.mxu0 0
    %2129 = vmatprep.subr.bf16.mxu0 0
    %2130 = vmatpush1.bf16.xpose.msra.mxu0 0
    %2131 = vmatprep.subr.bf16.mxu0 0
    %2132 = vmatpush1.bf16.xpose.msra.mxu0 0
    %2133 = vmatprep.subr.bf16.mxu0 0
    %2134 = vmatpush1.bf16.xpose.msra.mxu0 0
    %2135 = vmatprep.subr.bf16.mxu0 0
    %2136 = vmatpush1.bf16.xpose.msra.mxu0 0
    %2137 = vmatprep.subr.bf16.mxu0 0
    %2138 = vmatpush1.bf16.xpose.msra.mxu0 0
    %2139 = vmatprep.subr.bf16.mxu0 0
    %2140 = vmatpush1.bf16.xpose.msra.mxu0 0
    %2141 = vmatprep.subr.bf16.mxu0 0
    %2142 = vmatpush1.bf16.xpose.msra.mxu0 0
    %2143 = vmatprep.mubr.bf16.mxu0 0
    %2144 = vmatmul.mubr.bf16.gmra.mrb[0].mxu0 %v2085
    %v2145 = vpop.f32.mrb[0].mxu0
    %v2146 = vadd.f32 0.0, %v2145
    %v2147 = vpop.f32.mrb[0].mxu0
    %v2148 = vpop.f32.mrb[0].mxu0
    %v2149 = vpop.f32.mrb[0].mxu0
    %2150 = vdwg.mxu0
    %v2151 = vmul.u32 %v157, 16
    %vm2152 = vcmp.ge.s32.totalorder %v159, %v2151
    %v2153 = vadd.s32 %v157, 1
    %v2154 = vmul.u32 %v2153, 16
    %vm2155 = vcmp.lt.s32.totalorder %v159, %v2154
    %vm2156 = vmand %vm2152, %vm2155
    %v2157 = vsel %vm2156, 1, 0
    %vm2158 = vcmp.eq.s32.totalorder %v2157, 1
    %v2159 = vsel %vm2158, %v2039, 0.0
    %v2160 = vsel %vm2158, %v2146, 0.0
    %v2161 = vrot.slane %v2159, 4
    %v2162 = vadd.f32 %v2159, %v2161
    %v2163 = vrot.slane %v2162, 2
    %v2164 = vadd.f32 %v2162, %v2163
    %v2165 = vrot.slane %v2164, 1
    %v2166 = vadd.f32 %v2164, %v2165
    %v2167 = vrot.slane %v2160, 4
    %v2168 = vadd.f32 %v2160, %v2167
    %v2169 = vrot.slane %v2168, 2
    %v2170 = vadd.f32 %v2168, %v2169
    %v2171 = vrot.slane %v2170, 1
    %v2172 = vadd.f32 %v2170, %v2171
    %vm2175 = vcmask 1041409
    %v2176 = vsel %vm2175, %v2172, %v2166
    %2178 = vst [vmem:[#allocation10] sm:$0x3] %v2176
    // Predicated region
    $region82: #{tpu_custom_call.1} parent=1 // pred_check
      _
    $region83: #{tpu_custom_call.1} parent=1 // pred_check_branch
      %2180 = sbr.rel (0) target = $region85
    $region84: #{tpu_custom_call.1} parent=1 // pred_region
      %s2182 = ssub.s32 32, 32
      %2183 = vsyncadd [#allocation4], %s2182
      %s2185 = sshll.u32 [#allocation10], 4
      %s2186 = int_to_ptr.vmem [resolvable:$true] %s2185
      %2188 = dma.vmem_to_hbm [thread:$0]  %s2186, 32, %s16, [#allocation4]
    $region85: #{tpu_custom_call.1} parent=1 // pred_fallthru
      _
    // Predicated region
    $region86: #{tpu_custom_call.1} parent=1 // pred_check
      _
    $region87: #{tpu_custom_call.1} parent=1 // pred_check_branch
      %2190 = sbr.rel (0) target = $region89
    $region88: #{tpu_custom_call.1} parent=1 // pred_region
      %2191 = dma.done [#allocation4], 32
    $region89: #{tpu_custom_call.1} parent=1 // pred_fallthru
      _
    %2192 = vsyncpa [#allocation3], 1
    %2193 = vsyncpa [#allocation6], 1
    %2194 = vsyncpa [#allocation9], 1
    %2195 = vsyncpa [#allocation4], 1

// kernel: tpu_custom_call.1
$region0: #{tpu_custom_call.1}
  #allocation0 [shape = 'u32[]', space=smem, size = 0x4, offset = 0x4, fixed_abs, tag = 'smem constant byte address 0x4 - core index']
  #allocation1 [shape = 'u32[144,128]{1,0:T(1,128)}', space=vmem, size = 0x12000, scoped, tag = 'internal scratch']
  %s0 = inlined_call_operand.hbm [shape: f32[2,8,32], index: 0, kind: input, shape index: {}]
  %s1 = inlined_call_operand.vmem [shape: bf16[2,8,16,32], index: 1, kind: input, shape index: {}]
  %s2 = inlined_call_operand.vmem [shape: f32[1,32], index: 2, kind: input, shape index: {}]
  %s3 = inlined_call_operand.hbm [shape: f32[1,32], index: 3, kind: input, shape index: {}]
  %s4 = inlined_call_operand.vmem [shape: f32[2,32], index: 4, kind: input, shape index: {}]
  %s5 = inlined_call_operand.vmem [shape: f32[2,32], index: 5, kind: input, shape index: {}]
  %s6 = inlined_call_operand.vmem [shape: bf16[2,32,96], index: 6, kind: input, shape index: {}]
  %s7 = inlined_call_operand.vmem [shape: f32[2,96], index: 7, kind: input, shape index: {}]
  %s8 = inlined_call_operand.hbm [shape: bf16[2,32,32], index: 8, kind: input, shape index: {}]
  %s9 = inlined_call_operand.vmem [shape: f32[2,32], index: 9, kind: input, shape index: {}]
  %s10 = inlined_call_operand.vmem [shape: f32[2,32], index: 10, kind: input, shape index: {}]
  %s11 = inlined_call_operand.vmem [shape: f32[2,32], index: 11, kind: input, shape index: {}]
  %s12 = inlined_call_operand.hbm [shape: bf16[2,32,128], index: 12, kind: input, shape index: {}]
  %s13 = inlined_call_operand.vmem [shape: f32[2,128], index: 13, kind: input, shape index: {}]
  %s14 = inlined_call_operand.vmem [shape: bf16[2,128,32], index: 14, kind: input, shape index: {}]
  %s15 = inlined_call_operand.vmem [shape: f32[2,32], index: 15, kind: input, shape index: {}]
  %s16 = inlined_call_operand.hbm [shape: f32[2,128], index: 16, kind: output, shape index: {}]
  %s17 = sld [smem:[#allocation0]]
  $region90: #{tpu_custom_call.1} parent=0
    _
  %s19 = ssub.s32 1, %s17
  %s20 = scalar_select 0, %s19, %s17
  $region1: #{tpu_custom_call.1} parent=0
    #allocation2 [shape = 'u8[8192]{0}', space=vmem, size = 0x2000, scoped, tag = 'input window, operand 0, single buffered']
    #allocation3 [shape = 's32[1]{0}', space=sflag, size = 0x4, scoped, tag = 'scoped memory for tpu_custom_call.1']
    #allocation4 [shape = 's32[1]{0}', space=sflag, size = 0x4, scoped, tag = 'scoped memory for tpu_custom_call.1']
    #allocation5 [shape = 'u8[512]{0}', space=vmem, size = 0x400, scoped, tag = 'input window, operand 3, single buffered']
    #allocation6 [shape = 's32[1]{0}', space=sflag, size = 0x4, scoped, tag = 'scoped memory for tpu_custom_call.1']
    #allocation7 [shape = 'u8[16384]{0}', space=vmem, size = 0x4000, scoped, tag = 'input window, operand 8, single buffered']
    #allocation8 [shape = 'u8[16384]{0}', space=vmem, size = 0x4000, scoped, tag = 'input window, operand 12, single buffered']
    #allocation9 [shape = 's32[1]{0}', space=sflag, size = 0x4, scoped, tag = 'scoped memory for tpu_custom_call.1']
    #allocation10 [shape = 'u8[1024]{0}', space=vmem, size = 0x400, scoped, tag = 'output window, operand 0, single buffered']
    %21 = vsyncpa [#allocation3], 0
    %22 = vsyncpa [#allocation6], 0
    %23 = vsyncpa [#allocation9], 0
    %24 = vsyncpa [#allocation4], 0
    // Predicated region
    $region2: #{tpu_custom_call.1} parent=1 // pred_check
      _
    $region3: #{tpu_custom_call.1} parent=1 // pred_check_branch
      %26 = sbr.rel (0) target = $region5
    $region4: #{tpu_custom_call.1} parent=1 // pred_region
      %s28 = ssub.s32 256, 256
      %29 = vsyncadd [#allocation3], %s28
      %s30 = sshll.u32 [#allocation2], 4
      %s31 = int_to_ptr.vmem [resolvable:$true] %s30
      %36 = dma.hbm_to_vmem [thread:$0]  %s0, 256, %s31, [#allocation3], 128, 128, 8
    $region5: #{tpu_custom_call.1} parent=1 // pred_fallthru
      _
    // Predicated region
    $region6: #{tpu_custom_call.1} parent=1 // pred_check
      _
    $region7: #{tpu_custom_call.1} parent=1 // pred_check_branch
      %38 = sbr.rel (0) target = $region9
    $region8: #{tpu_custom_call.1} parent=1 // pred_region
      _
    $region9: #{tpu_custom_call.1} parent=1 // pred_fallthru
      _
    // Predicated region
    $region10: #{tpu_custom_call.1} parent=1 // pred_check
      _
    $region11: #{tpu_custom_call.1} parent=1 // pred_check_branch
      %40 = sbr.rel (0) target = $region13
    $region12: #{tpu_custom_call.1} parent=1 // pred_region
      _
    $region13: #{tpu_custom_call.1} parent=1 // pred_fallthru
      _
    // Predicated region
    $region14: #{tpu_custom_call.1} parent=1 // pred_check
      _
    $region15: #{tpu_custom_call.1} parent=1 // pred_check_branch
      %42 = sbr.rel (0) target = $region17
    $region16: #{tpu_custom_call.1} parent=1 // pred_region
      %s44 = ssub.s32 16, 16
      %45 = vsyncadd [#allocation6], %s44
      %s47 = sshll.u32 [#allocation5], 4
      %s48 = int_to_ptr.vmem [resolvable:$true] %s47
      %50 = dma.hbm_to_vmem [thread:$0]  %s3, 16, %s48, [#allocation6]
    $region17: #{tpu_custom_call.1} parent=1 // pred_fallthru
      _
    // Predicated region
    $region18: #{tpu_custom_call.1} parent=1 // pred_check
      _
    $region19: #{tpu_custom_call.1} parent=1 // pred_check_branch
      %52 = sbr.rel (0) target = $region21
    $region20: #{tpu_custom_call.1} parent=1 // pred_region
      _
    $region21: #{tpu_custom_call.1} parent=1 // pred_fallthru
      _
    // Predicated region
    $region22: #{tpu_custom_call.1} parent=1 // pred_check
      _
    $region23: #{tpu_custom_call.1} parent=1 // pred_check_branch
      %54 = sbr.rel (0) target = $region25
    $region24: #{tpu_custom_call.1} parent=1 // pred_region
      _
    $region25: #{tpu_custom_call.1} parent=1 // pred_fallthru
      _
    // Predicated region
    $region26: #{tpu_custom_call.1} parent=1 // pred_check
      _
    $region27: #{tpu_custom_call.1} parent=1 // pred_check_branch
      %56 = sbr.rel (0) target = $region29
    $region28: #{tpu_custom_call.1} parent=1 // pred_region
      _
    $region29: #{tpu_custom_call.1} parent=1 // pred_fallthru
      _
    // Predicated region
    $region30: #{tpu_custom_call.1} parent=1 // pred_check
      _
    $region31: #{tpu_custom_call.1} parent=1 // pred_check_branch
      %58 = sbr.rel (0) target = $region33
    $region32: #{tpu_custom_call.1} parent=1 // pred_region
      _
    $region33: #{tpu_custom_call.1} parent=1 // pred_fallthru
      _
    // Predicated region
    $region34: #{tpu_custom_call.1} parent=1 // pred_check
      _
    $region35: #{tpu_custom_call.1} parent=1 // pred_check_branch
      %60 = sbr.rel (0) target = $region37
    $region36: #{tpu_custom_call.1} parent=1 // pred_region
      %s62 = ssub.s32 512, 512
      %63 = vsyncadd [#allocation6], %s62
      %s64 = sshll.u32 [#allocation7], 4
      %s65 = int_to_ptr.vmem [resolvable:$true] %s64
      %70 = dma.hbm_to_vmem [thread:$0]  %s8, 512, %s65, [#allocation6], 64, 64, 4
    $region37: #{tpu_custom_call.1} parent=1 // pred_fallthru
      _
    // Predicated region
    $region38: #{tpu_custom_call.1} parent=1 // pred_check
      _
    $region39: #{tpu_custom_call.1} parent=1 // pred_check_branch
      %72 = sbr.rel (0) target = $region41
    $region40: #{tpu_custom_call.1} parent=1 // pred_region
      _
    $region41: #{tpu_custom_call.1} parent=1 // pred_fallthru
      _
    // Predicated region
    $region42: #{tpu_custom_call.1} parent=1 // pred_check
      _
    $region43: #{tpu_custom_call.1} parent=1 // pred_check_branch
      %74 = sbr.rel (0) target = $region45
    $region44: #{tpu_custom_call.1} parent=1 // pred_region
      _
    $region45: #{tpu_custom_call.1} parent=1 // pred_fallthru
      _
    // Predicated region
    $region46: #{tpu_custom_call.1} parent=1 // pred_check
      _
    $region47: #{tpu_custom_call.1} parent=1 // pred_check_branch
      %76 = sbr.rel (0) target = $region49
    $region48: #{tpu_custom_call.1} parent=1 // pred_region
      _
    $region49: #{tpu_custom_call.1} parent=1 // pred_fallthru
      _
    // Predicated region
    $region50: #{tpu_custom_call.1} parent=1 // pred_check
      _
    $region51: #{tpu_custom_call.1} parent=1 // pred_check_branch
      %78 = sbr.rel (0) target = $region53
    $region52: #{tpu_custom_call.1} parent=1 // pred_region
      %s80 = ssub.s32 512, 512
      %81 = vsyncadd [#allocation9], %s80
      %s82 = sshll.u32 [#allocation8], 4
      %s83 = int_to_ptr.vmem [resolvable:$true] %s82
      %88 = dma.hbm_to_vmem [thread:$0]  %s12, 512, %s83, [#allocation9], 64, 64, 4
    $region53: #{tpu_custom_call.1} parent=1 // pred_fallthru
      _
    // Predicated region
    $region54: #{tpu_custom_call.1} parent=1 // pred_check
      _
    $region55: #{tpu_custom_call.1} parent=1 // pred_check_branch
      %90 = sbr.rel (0) target = $region57
    $region56: #{tpu_custom_call.1} parent=1 // pred_region
      _
    $region57: #{tpu_custom_call.1} parent=1 // pred_fallthru
      _
    // Predicated region
    $region58: #{tpu_custom_call.1} parent=1 // pred_check
      _
    $region59: #{tpu_custom_call.1} parent=1 // pred_check_branch
      %92 = sbr.rel (0) target = $region61
    $region60: #{tpu_custom_call.1} parent=1 // pred_region
      _
    $region61: #{tpu_custom_call.1} parent=1 // pred_fallthru
      _
    // Predicated region
    $region62: #{tpu_custom_call.1} parent=1 // pred_check
      _
    $region63: #{tpu_custom_call.1} parent=1 // pred_check_branch
      %94 = sbr.rel (0) target = $region65
    $region64: #{tpu_custom_call.1} parent=1 // pred_region
      _
    $region65: #{tpu_custom_call.1} parent=1 // pred_fallthru
      _
    // Predicated region
    $region66: #{tpu_custom_call.1} parent=1 // pred_check
      _
    $region67: #{tpu_custom_call.1} parent=1 // pred_check_branch
      %96 = sbr.rel (0) target = $region69
    $region68: #{tpu_custom_call.1} parent=1 // pred_region
      %97 = dma.done [#allocation3], 256
    $region69: #{tpu_custom_call.1} parent=1 // pred_fallthru
      _
    // Predicated region
    $region70: #{tpu_custom_call.1} parent=1 // pred_check
      _
    $region71: #{tpu_custom_call.1} parent=1 // pred_check_branch
      %99 = sbr.rel (0) target = $region73
    $region72: #{tpu_custom_call.1} parent=1 // pred_region
      %100 = dma.done [#allocation6], 16
    $region73: #{tpu_custom_call.1} parent=1 // pred_fallthru
      _
    // Predicated region
    $region74: #{tpu_custom_call.1} parent=1 // pred_check
      _
    $region75: #{tpu_custom_call.1} parent=1 // pred_check_branch
      %102 = sbr.rel (0) target = $region77
    $region76: #{tpu_custom_call.1} parent=1 // pred_region
      %103 = dma.done [#allocation6], 512
    $region77: #{tpu_custom_call.1} parent=1 // pred_fallthru
      _
    // Predicated region
    $region78: #{tpu_custom_call.1} parent=1 // pred_check
      _
    $region79: #{tpu_custom_call.1} parent=1 // pred_check_branch
      %105 = sbr.rel (0) target = $region81
    $region80: #{tpu_custom_call.1} parent=1 // pred_region
      %106 = dma.done [#allocation9], 512
    $region81: #{tpu_custom_call.1} parent=1 // pred_fallthru
      _
    %v108 = vld [vmem:[#allocation2] sm:$0xff]
    %v109 = vld [vmem:[#allocation2 + $0x8] sm:$0xff]
    %v110 = vld [vmem:[%s2] sm:$0x1]
    %v111 = vld [vmem:[#allocation5] sm:$0x1]
    %vm112 = vcmask 261120
    %v113 = vsel %vm112, %v108, 0.0
    %114 = vadd.xlane.f32.xlu0 %v113
    %v115 = vpop.xlane.xlu0 %114
    %v116 = vsel %vm112, %v109, 0.0
    %117 = vadd.xlane.f32.xlu0 %v116
    %v118 = vpop.xlane.xlu0 %117
    %v119 = vrcp.pop 32.0
    %v120 = vmul.f32 %v115, %v119
    %v121 = vmul.f32 %v118, %v119
    %v122 = vsub.f32 %v108, %v120
    %v123 = vsub.f32 %v109, %v121
    %v124 = vmul.f32 %v122, %v122
    %v125 = vmul.f32 %v123, %v123
    %v126 = vsel %vm112, %v124, 0.0
    %127 = vadd.xlane.f32.xlu0 %v126
    %v128 = vpop.xlane.xlu0 %127
    %v129 = vsel %vm112, %v125, 0.0
    %130 = vadd.xlane.f32.xlu0 %v129
    %v131 = vpop.xlane.xlu0 %130
    %v132 = vmul.f32 %v128, %v119
    %v133 = vmul.f32 %v131, %v119
    %v134 = vadd.f32 %v132, 1e-08
    %v135 = vadd.f32 %v133, 1e-08
    %v136 = vrsqrt.pop %v134
    %v137 = vrsqrt.pop %v135
    %v138 = vmul.f32 %v122, %v136
    %v139 = vmul.f32 %v123, %v137
    %v141 = vlaneseq
    %v142 = vshrl.u32 %v141, 7
    %v143 = vsub.s32 0, %v142
    %v144 = vrot.slane %v110, %v143
    %v146 = vmul.f32 %v138, %v144
    %v147 = vmul.f32 %v139, %v144
    %v149 = vlaneseq
    %v150 = vshrl.u32 %v149, 7
    %v151 = vsub.s32 0, %v150
    %v152 = vrot.slane %v111, %v151
    %v154 = vadd.f32 %v146, %v152
    %v155 = vadd.f32 %v147, %v152
    %v156 = vlaneseq
    %v157 = vshrl.u32 %v156, 7
    %v158 = vlaneseq
    %v159 = vand.u32 %v158, 127
    %vm160 = vcmp.gt.s32.totalorder %v159, %v157
    %v161 = vsel %vm160, -1e+30, 0.0
    %v162 = vld [vmem:[%s4] sm:$0x1]
    %v163 = vld [vmem:[%s5] sm:$0x1]
    %v164 = vsel %vm112, %v154, 0.0
    %165 = vadd.xlane.f32.xlu0 %v164
    %v166 = vpop.xlane.xlu0 %165
    %v167 = vsel %vm112, %v155, 0.0
    %168 = vadd.xlane.f32.xlu0 %v167
    %v169 = vpop.xlane.xlu0 %168
    %v170 = vmul.f32 %v166, %v119
    %v171 = vmul.f32 %v169, %v119
    %v172 = vsub.f32 %v154, %v170
    %v173 = vsub.f32 %v155, %v171
    %v174 = vmul.f32 %v172, %v172
    %v175 = vmul.f32 %v173, %v173
    %v176 = vsel %vm112, %v174, 0.0
    %177 = vadd.xlane.f32.xlu0 %v176
    %v178 = vpop.xlane.xlu0 %177
    %v179 = vsel %vm112, %v175, 0.0
    %180 = vadd.xlane.f32.xlu0 %v179
    %v181 = vpop.xlane.xlu0 %180
    %v182 = vmul.f32 %v178, %v119
    %v183 = vmul.f32 %v181, %v119
    %v184 = vadd.f32 %v182, 1e-05
    %v185 = vadd.f32 %v183, 1e-05
    %v186 = vrsqrt.pop %v184
    %v187 = vrsqrt.pop %v185
    %v188 = vmul.f32 %v172, %v186
    %v189 = vmul.f32 %v173, %v187
    %v190 = vlaneseq
    %v191 = vshrl.u32 %v190, 7
    %v192 = vsub.s32 0, %v191
    %v193 = vrot.slane %v162, %v192
    %v194 = vmul.f32 %v188, %v193
    %v195 = vmul.f32 %v189, %v193
    %v196 = vlaneseq
    %v197 = vshrl.u32 %v196, 7
    %v198 = vsub.s32 0, %v197
    %v199 = vrot.slane %v163, %v198
    %v200 = vadd.f32 %v194, %v199
    %v201 = vadd.f32 %v195, %v199
    %v202 = vpack.c.bf16 %v201, %v200
    %v203 = vld [vmem:[%s6] sm:$0xf]
    %v204 = vld [vmem:[%s6 + $0x4] sm:$0xf]
    %v205 = vld [vmem:[%s6 + $0x8] sm:$0xf]
    %v206 = vld [vmem:[%s6 + $0xc] sm:$0xf]
    %v207 = vld [vmem:[%s7] sm:$0x1]
    %v208 = vlaneseq
    %v209 = vshrl.u32 %v208, 7
    %v210 = vsub.s32 0, %v209
    %v211 = vrot.slane %v207, %v210
    %v216 = vunpack.c.l.b16 %v203
    %v217 = vunpack.c.l.b16 %v204
    %v218 = vunpack.c.l.b16 %v205
    %v219 = vunpack.c.l.b16 %v206
    %v220 = vpack.c.b16 %v217, %v216
    %v221 = vpack.c.b16 %v219, %v218
    %v225 = vsel %vm112, %v202, 0
    %227 = vmatprep.subr.bf16.mxu0 0
    %228 = vmatpush1.bf16.msra.mxu0 %v220
    %229 = vmatprep.subr.bf16.mxu0 0
    %230 = vmatpush1.bf16.msra.mxu0 %v221
    %231 = vmatprep.subr.bf16.mxu0 0
    %232 = vmatpush1.bf16.msra.mxu0 0
    %233 = vmatprep.subr.bf16.mxu0 0
    %234 = vmatpush1.bf16.msra.mxu0 0
    %235 = vmatprep.subr.bf16.mxu0 0
    %236 = vmatpush1.bf16.msra.mxu0 0
    %237 = vmatprep.subr.bf16.mxu0 0
    %238 = vmatpush1.bf16.msra.mxu0 0
    %239 = vmatprep.subr.bf16.mxu0 0
    %240 = vmatpush1.bf16.msra.mxu0 0
    %241 = vmatprep.subr.bf16.mxu0 0
    %242 = vmatpush1.bf16.msra.mxu0 0
    %243 = vmatprep.subr.bf16.mxu0 0
    %244 = vmatpush1.bf16.msra.mxu0 0
    %245 = vmatprep.subr.bf16.mxu0 0
    %246 = vmatpush1.bf16.msra.mxu0 0
    %247 = vmatprep.subr.bf16.mxu0 0
    %248 = vmatpush1.bf16.msra.mxu0 0
    %249 = vmatprep.subr.bf16.mxu0 0
    %250 = vmatpush1.bf16.msra.mxu0 0
    %251 = vmatprep.subr.bf16.mxu0 0
    %252 = vmatpush1.bf16.msra.mxu0 0
    %253 = vmatprep.subr.bf16.mxu0 0
    %254 = vmatpush1.bf16.msra.mxu0 0
    %255 = vmatprep.subr.bf16.mxu0 0
    %256 = vmatpush1.bf16.msra.mxu0 0
    %257 = vmatprep.subr.bf16.mxu0 0
    %258 = vmatpush1.bf16.msra.mxu0 0
    %259 = vmatprep.mubr.bf16.mxu0 0
    %260 = vmatmul.mubr.bf16.gmra.mrb[0].mxu0 %v225
    %v261 = vpop.f32.mrb[0].mxu0
    %v262 = vadd.f32 %v211, %v261
    %v263 = vpop.f32.mrb[0].mxu0
    %v264 = vpop.f32.mrb[0].mxu0
    %v265 = vadd.f32 %v211, %v264
    %v266 = vpop.f32.mrb[0].mxu0
    %267 = vdwg.mxu0
    %v268 = vmul.f32 %v262, 0.25
    %v269 = vmul.f32 %v265, 0.25
    %v270 = vpack.c.bf16 %v268, %v268
    %v271 = vpack.c.bf16 %v269, %v269
    %v272 = vpack.c.bf16 %v262, %v262
    %v273 = vpack.c.bf16 %v265, %v265
    %275 = vrot.lane.b32.xlu0 %v272, 96
    %v276 = vpop.permute.xlu0 %275
    %vm277 = vcmask 130048
    %v279 = vsel %vm277, %v270, 0
    %v282 = vsel %vm277, %v276, 0
    %284 = vmatprep.subr.bf16.mxu0 0
    %285 = vmatpush1.bf16.xpose.msra.mxu0 %v282
    %286 = vmatprep.subr.bf16.mxu0 0
    %287 = vmatpush1.bf16.xpose.msra.mxu0 0
    %288 = vmatprep.subr.bf16.mxu0 0
    %289 = vmatpush1.bf16.xpose.msra.mxu0 0
    %290 = vmatprep.subr.bf16.mxu0 0
    %291 = vmatpush1.bf16.xpose.msra.mxu0 0
    %292 = vmatprep.subr.bf16.mxu0 0
    %293 = vmatpush1.bf16.xpose.msra.mxu0 0
    %294 = vmatprep.subr.bf16.mxu0 0
    %295 = vmatpush1.bf16.xpose.msra.mxu0 0
    %296 = vmatprep.subr.bf16.mxu0 0
    %297 = vmatpush1.bf16.xpose.msra.mxu0 0
    %298 = vmatprep.subr.bf16.mxu0 0
    %299 = vmatpush1.bf16.xpose.msra.mxu0 0
    %300 = vmatprep.subr.bf16.mxu0 0
    %301 = vmatpush1.bf16.xpose.msra.mxu0 0
    %302 = vmatprep.subr.bf16.mxu0 0
    %303 = vmatpush1.bf16.xpose.msra.mxu0 0
    %304 = vmatprep.subr.bf16.mxu0 0
    %305 = vmatpush1.bf16.xpose.msra.mxu0 0
    %306 = vmatprep.subr.bf16.mxu0 0
    %307 = vmatpush1.bf16.xpose.msra.mxu0 0
    %308 = vmatprep.subr.bf16.mxu0 0
    %309 = vmatpush1.bf16.xpose.msra.mxu0 0
    %310 = vmatprep.subr.bf16.mxu0 0
    %311 = vmatpush1.bf16.xpose.msra.mxu0 0
    %312 = vmatprep.subr.bf16.mxu0 0
    %313 = vmatpush1.bf16.xpose.msra.mxu0 0
    %314 = vmatprep.subr.bf16.mxu0 0
    %315 = vmatpush1.bf16.xpose.msra.mxu0 0
    %316 = vmatprep.mubr.bf16.mxu0 0
    %317 = vmatmul.mubr.bf16.gmra.mrb[0].mxu0 %v279
    %v318 = vpop.f32.mrb[0].mxu0
    %v319 = vadd.f32 %v161, %v318
    %v320 = vpop.f32.mrb[0].mxu0
    %v321 = vpop.f32.mrb[0].mxu0
    %v322 = vpop.f32.mrb[0].mxu0
    %323 = vdwg.mxu0
    %325 = vrot.lane.b32.xlu0 %v273, 96
    %v326 = vpop.permute.xlu0 %325
    %v328 = vsel %vm277, %v271, 0
    %v331 = vsel %vm277, %v326, 0
    %333 = vmatprep.subr.bf16.mxu0 0
    %334 = vmatpush1.bf16.xpose.msra.mxu0 %v331
    %335 = vmatprep.subr.bf16.mxu0 0
    %336 = vmatpush1.bf16.xpose.msra.mxu0 0
    %337 = vmatprep.subr.bf16.mxu0 0
    %338 = vmatpush1.bf16.xpose.msra.mxu0 0
    %339 = vmatprep.subr.bf16.mxu0 0
    %340 = vmatpush1.bf16.xpose.msra.mxu0 0
    %341 = vmatprep.subr.bf16.mxu0 0
    %342 = vmatpush1.bf16.xpose.msra.mxu0 0
    %343 = vmatprep.subr.bf16.mxu0 0
    %344 = vmatpush1.bf16.xpose.msra.mxu0 0
    %345 = vmatprep.subr.bf16.mxu0 0
    %346 = vmatpush1.bf16.xpose.msra.mxu0 0
    %347 = vmatprep.subr.bf16.mxu0 0
    %348 = vmatpush1.bf16.xpose.msra.mxu0 0
    %349 = vmatprep.subr.bf16.mxu0 0
    %350 = vmatpush1.bf16.xpose.msra.mxu0 0
    %351 = vmatprep.subr.bf16.mxu0 0
    %352 = vmatpush1.bf16.xpose.msra.mxu0 0
    %353 = vmatprep.subr.bf16.mxu0 0
    %354 = vmatpush1.bf16.xpose.msra.mxu0 0
    %355 = vmatprep.subr.bf16.mxu0 0
    %356 = vmatpush1.bf16.xpose.msra.mxu0 0
    %357 = vmatprep.subr.bf16.mxu0 0
    %358 = vmatpush1.bf16.xpose.msra.mxu0 0
    %359 = vmatprep.subr.bf16.mxu0 0
    %360 = vmatpush1.bf16.xpose.msra.mxu0 0
    %361 = vmatprep.subr.bf16.mxu0 0
    %362 = vmatpush1.bf16.xpose.msra.mxu0 0
    %363 = vmatprep.subr.bf16.mxu0 0
    %364 = vmatpush1.bf16.xpose.msra.mxu0 0
    %365 = vmatprep.mubr.bf16.mxu0 0
    %366 = vmatmul.mubr.bf16.gmra.mrb[0].mxu0 %v328
    %v367 = vpop.f32.mrb[0].mxu0
    %v368 = vadd.f32 %v161, %v367
    %v369 = vpop.f32.mrb[0].mxu0
    %v370 = vpop.f32.mrb[0].mxu0
    %v371 = vpop.f32.mrb[0].mxu0
    %372 = vdwg.mxu0
    %vm373 = vcmask 64512
    %v374 = vsel %vm373, %v319, -inf
    %375 = vmax.xlane.f32.xlu0 %v374
    %v376 = vpop.xlane.xlu0 %375
    %v377 = vsel %vm373, %v368, -inf
    %378 = vmax.xlane.f32.xlu0 %v377
    %v379 = vpop.xlane.xlu0 %378
    %v380 = vsub.f32 %v319, %v376
    %v381 = vsub.f32 %v368, %v379
    %v382 = vmul.f32 %v380, 1.442695
    %v383 = vpow.pop %v382
    %v384 = vmul.f32 %v381, 1.442695
    %v385 = vpow.pop %v384
    %v386 = vsel %vm373, %v383, 0.0
    %387 = vadd.xlane.f32.xlu0 %v386
    %v388 = vpop.xlane.xlu0 %387
    %v389 = vsel %vm373, %v385, 0.0
    %390 = vadd.xlane.f32.xlu0 %v389
    %v391 = vpop.xlane.xlu0 %390
    %v392 = vrcp.pop %v388
    %v393 = vrcp.pop %v391
    %v394 = vmul.f32 %v383, %v392
    %v395 = vmul.f32 %v385, %v393
    %v396 = vpack.c.bf16 %v394, %v394
    %v397 = vpack.c.bf16 %v395, %v395
    %398 = vrot.lane.b32.xlu0 %v272, 64
    %v399 = vpop.permute.xlu0 %398
    %v401 = vsel %vm373, %v396, 0
    %vm403 = vcmask 1043456
    %v405 = vsel %vm403, %v399, 0
    %407 = vmatprep.subr.bf16.mxu0 0
    %408 = vmatpush1.bf16.msra.mxu0 %v405
    %409 = vmatprep.subr.bf16.mxu0 0
    %410 = vmatpush1.bf16.msra.mxu0 0
    %411 = vmatprep.subr.bf16.mxu0 0
    %412 = vmatpush1.bf16.msra.mxu0 0
    %413 = vmatprep.subr.bf16.mxu0 0
    %414 = vmatpush1.bf16.msra.mxu0 0
    %415 = vmatprep.subr.bf16.mxu0 0
    %416 = vmatpush1.bf16.msra.mxu0 0
    %417 = vmatprep.subr.bf16.mxu0 0
    %418 = vmatpush1.bf16.msra.mxu0 0
    %419 = vmatprep.subr.bf16.mxu0 0
    %420 = vmatpush1.bf16.msra.mxu0 0
    %421 = vmatprep.subr.bf16.mxu0 0
    %422 = vmatpush1.bf16.msra.mxu0 0
    %423 = vmatprep.subr.bf16.mxu0 0
    %424 = vmatpush1.bf16.msra.mxu0 0
    %425 = vmatprep.subr.bf16.mxu0 0
    %426 = vmatpush1.bf16.msra.mxu0 0
    %427 = vmatprep.subr.bf16.mxu0 0
    %428 = vmatpush1.bf16.msra.mxu0 0
    %429 = vmatprep.subr.bf16.mxu0 0
    %430 = vmatpush1.bf16.msra.mxu0 0
    %431 = vmatprep.subr.bf16.mxu0 0
    %432 = vmatpush1.bf16.msra.mxu0 0
    %433 = vmatprep.subr.bf16.mxu0 0
    %434 = vmatpush1.bf16.msra.mxu0 0
    %435 = vmatprep.subr.bf16.mxu0 0
    %436 = vmatpush1.bf16.msra.mxu0 0
    %437 = vmatprep.subr.bf16.mxu0 0
    %438 = vmatpush1.bf16.msra.mxu0 0
    %439 = vmatprep.mubr.bf16.mxu0 0
    %440 = vmatmul.mubr.bf16.gmra.mrb[0].mxu0 %v401
    %v441 = vpop.f32.mrb[0].mxu0
    %v442 = vadd.f32 0.0, %v441
    %v443 = vpop.f32.mrb[0].mxu0
    %v444 = vpop.f32.mrb[0].mxu0
    %v445 = vpop.f32.mrb[0].mxu0
    %446 = vdwg.mxu0
    %447 = vrot.lane.b32.xlu0 %v273, 64
    %v448 = vpop.permute.xlu0 %447
    %v450 = vsel %vm373, %v397, 0
    %v453 = vsel %vm403, %v448, 0
    %455 = vmatprep.subr.bf16.mxu0 0
    %456 = vmatpush1.bf16.msra.mxu0 %v453
    %457 = vmatprep.subr.bf16.mxu0 0
    %458 = vmatpush1.bf16.msra.mxu0 0
    %459 = vmatprep.subr.bf16.mxu0 0
    %460 = vmatpush1.bf16.msra.mxu0 0
    %461 = vmatprep.subr.bf16.mxu0 0
    %462 = vmatpush1.bf16.msra.mxu0 0
    %463 = vmatprep.subr.bf16.mxu0 0
    %464 = vmatpush1.bf16.msra.mxu0 0
    %465 = vmatprep.subr.bf16.mxu0 0
    %466 = vmatpush1.bf16.msra.mxu0 0
    %467 = vmatprep.subr.bf16.mxu0 0
    %468 = vmatpush1.bf16.msra.mxu0 0
    %469 = vmatprep.subr.bf16.mxu0 0
    %470 = vmatpush1.bf16.msra.mxu0 0
    %471 = vmatprep.subr.bf16.mxu0 0
    %472 = vmatpush1.bf16.msra.mxu0 0
    %473 = vmatprep.subr.bf16.mxu0 0
    %474 = vmatpush1.bf16.msra.mxu0 0
    %475 = vmatprep.subr.bf16.mxu0 0
    %476 = vmatpush1.bf16.msra.mxu0 0
    %477 = vmatprep.subr.bf16.mxu0 0
    %478 = vmatpush1.bf16.msra.mxu0 0
    %479 = vmatprep.subr.bf16.mxu0 0
    %480 = vmatpush1.bf16.msra.mxu0 0
    %481 = vmatprep.subr.bf16.mxu0 0
    %482 = vmatpush1.bf16.msra.mxu0 0
    %483 = vmatprep.subr.bf16.mxu0 0
    %484 = vmatpush1.bf16.msra.mxu0 0
    %485 = vmatprep.subr.bf16.mxu0 0
    %486 = vmatpush1.bf16.msra.mxu0 0
    %487 = vmatprep.mubr.bf16.mxu0 0
    %488 = vmatmul.mubr.bf16.gmra.mrb[0].mxu0 %v450
    %v489 = vpop.f32.mrb[0].mxu0
    %v490 = vadd.f32 0.0, %v489
    %v491 = vpop.f32.mrb[0].mxu0
    %v492 = vpop.f32.mrb[0].mxu0
    %v493 = vpop.f32.mrb[0].mxu0
    %494 = vdwg.mxu0
    %496 = vrot.lane.b32.xlu0 %v270, 112
    %v497 = vpop.permute.xlu0 %496
    %498 = vrot.lane.b32.xlu0 %v272, 80
    %v499 = vpop.permute.xlu0 %498
    %v501 = vsel %vm277, %v497, 0
    %v504 = vsel %vm277, %v499, 0
    %506 = vmatprep.subr.bf16.mxu0 0
    %507 = vmatpush1.bf16.xpose.msra.mxu0 %v504
    %508 = vmatprep.subr.bf16.mxu0 0
    %509 = vmatpush1.bf16.xpose.msra.mxu0 0
    %510 = vmatprep.subr.bf16.mxu0 0
    %511 = vmatpush1.bf16.xpose.msra.mxu0 0
    %512 = vmatprep.subr.bf16.mxu0 0
    %513 = vmatpush1.bf16.xpose.msra.mxu0 0
    %514 = vmatprep.subr.bf16.mxu0 0
    %515 = vmatpush1.bf16.xpose.msra.mxu0 0
    %516 = vmatprep.subr.bf16.mxu0 0
    %517 = vmatpush1.bf16.xpose.msra.mxu0 0
    %518 = vmatprep.subr.bf16.mxu0 0
    %519 = vmatpush1.bf16.xpose.msra.mxu0 0
    %520 = vmatprep.subr.bf16.mxu0 0
    %521 = vmatpush1.bf16.xpose.msra.mxu0 0
    %522 = vmatprep.subr.bf16.mxu0 0
    %523 = vmatpush1.bf16.xpose.msra.mxu0 0
    %524 = vmatprep.subr.bf16.mxu0 0
    %525 = vmatpush1.bf16.xpose.msra.mxu0 0
    %526 = vmatprep.subr.bf16.mxu0 0
    %527 = vmatpush1.bf16.xpose.msra.mxu0 0
    %528 = vmatprep.subr.bf16.mxu0 0
    %529 = vmatpush1.bf16.xpose.msra.mxu0 0
    %530 = vmatprep.subr.bf16.mxu0 0
    %531 = vmatpush1.bf16.xpose.msra.mxu0 0
    %532 = vmatprep.subr.bf16.mxu0 0
    %533 = vmatpush1.bf16.xpose.msra.mxu0 0
    %534 = vmatprep.subr.bf16.mxu0 0
    %535 = vmatpush1.bf16.xpose.msra.mxu0 0
    %536 = vmatprep.subr.bf16.mxu0 0
    %537 = vmatpush1.bf16.xpose.msra.mxu0 0
    %538 = vmatprep.mubr.bf16.mxu0 0
    %539 = vmatmul.mubr.bf16.gmra.mrb[0].mxu0 %v501
    %v540 = vpop.f32.mrb[0].mxu0
    %v541 = vadd.f32 %v161, %v540
    %v542 = vpop.f32.mrb[0].mxu0
    %v543 = vpop.f32.mrb[0].mxu0
    %v544 = vpop.f32.mrb[0].mxu0
    %545 = vdwg.mxu0
    %547 = vrot.lane.b32.xlu0 %v271, 112
    %v548 = vpop.permute.xlu0 %547
    %549 = vrot.lane.b32.xlu0 %v273, 80
    %v550 = vpop.permute.xlu0 %549
    %v552 = vsel %vm277, %v548, 0
    %v555 = vsel %vm277, %v550, 0
    %557 = vmatprep.subr.bf16.mxu0 0
    %558 = vmatpush1.bf16.xpose.msra.mxu0 %v555
    %559 = vmatprep.subr.bf16.mxu0 0
    %560 = vmatpush1.bf16.xpose.msra.mxu0 0
    %561 = vmatprep.subr.bf16.mxu0 0
    %562 = vmatpush1.bf16.xpose.msra.mxu0 0
    %563 = vmatprep.subr.bf16.mxu0 0
    %564 = vmatpush1.bf16.xpose.msra.mxu0 0
    %565 = vmatprep.subr.bf16.mxu0 0
    %566 = vmatpush1.bf16.xpose.msra.mxu0 0
    %567 = vmatprep.subr.bf16.mxu0 0
    %568 = vmatpush1.bf16.xpose.msra.mxu0 0
    %569 = vmatprep.subr.bf16.mxu0 0
    %570 = vmatpush1.bf16.xpose.msra.mxu0 0
    %571 = vmatprep.subr.bf16.mxu0 0
    %572 = vmatpush1.bf16.xpose.msra.mxu0 0
    %573 = vmatprep.subr.bf16.mxu0 0
    %574 = vmatpush1.bf16.xpose.msra.mxu0 0
    %575 = vmatprep.subr.bf16.mxu0 0
    %576 = vmatpush1.bf16.xpose.msra.mxu0 0
    %577 = vmatprep.subr.bf16.mxu0 0
    %578 = vmatpush1.bf16.xpose.msra.mxu0 0
    %579 = vmatprep.subr.bf16.mxu0 0
    %580 = vmatpush1.bf16.xpose.msra.mxu0 0
    %581 = vmatprep.subr.bf16.mxu0 0
    %582 = vmatpush1.bf16.xpose.msra.mxu0 0
    %583 = vmatprep.subr.bf16.mxu0 0
    %584 = vmatpush1.bf16.xpose.msra.mxu0 0
    %585 = vmatprep.subr.bf16.mxu0 0
    %586 = vmatpush1.bf16.xpose.msra.mxu0 0
    %587 = vmatprep.subr.bf16.mxu0 0
    %588 = vmatpush1.bf16.xpose.msra.mxu0 0
    %589 = vmatprep.mubr.bf16.mxu0 0
    %590 = vmatmul.mubr.bf16.gmra.mrb[0].mxu0 %v552
    %v591 = vpop.f32.mrb[0].mxu0
    %v592 = vadd.f32 %v161, %v591
    %v593 = vpop.f32.mrb[0].mxu0
    %v594 = vpop.f32.mrb[0].mxu0
    %v595 = vpop.f32.mrb[0].mxu0
    %596 = vdwg.mxu0
    %v597 = vsel %vm373, %v541, -inf
    %598 = vmax.xlane.f32.xlu0 %v597
    %v599 = vpop.xlane.xlu0 %598
    %v600 = vsel %vm373, %v592, -inf
    %601 = vmax.xlane.f32.xlu0 %v600
    %v602 = vpop.xlane.xlu0 %601
    %v603 = vsub.f32 %v541, %v599
    %v604 = vsub.f32 %v592, %v602
    %v605 = vmul.f32 %v603, 1.442695
    %v606 = vpow.pop %v605
    %v607 = vmul.f32 %v604, 1.442695
    %v608 = vpow.pop %v607
    %v609 = vsel %vm373, %v606, 0.0
    %610 = vadd.xlane.f32.xlu0 %v609
    %v611 = vpop.xlane.xlu0 %610
    %v612 = vsel %vm373, %v608, 0.0
    %613 = vadd.xlane.f32.xlu0 %v612
    %v614 = vpop.xlane.xlu0 %613
    %v615 = vrcp.pop %v611
    %v616 = vrcp.pop %v614
    %v617 = vmul.f32 %v606, %v615
    %v618 = vmul.f32 %v608, %v616
    %v619 = vpack.c.bf16 %v617, %v617
    %v620 = vpack.c.bf16 %v618, %v618
    %621 = vrot.lane.b32.xlu0 %v272, 48
    %v622 = vpop.permute.xlu0 %621
    %v624 = vsel %vm373, %v619, 0
    %v627 = vsel %vm403, %v622, 0
    %629 = vmatprep.subr.bf16.mxu0 0
    %630 = vmatpush1.bf16.msra.mxu0 %v627
    %631 = vmatprep.subr.bf16.mxu0 0
    %632 = vmatpush1.bf16.msra.mxu0 0
    %633 = vmatprep.subr.bf16.mxu0 0
    %634 = vmatpush1.bf16.msra.mxu0 0
    %635 = vmatprep.subr.bf16.mxu0 0
    %636 = vmatpush1.bf16.msra.mxu0 0
    %637 = vmatprep.subr.bf16.mxu0 0
    %638 = vmatpush1.bf16.msra.mxu0 0
    %639 = vmatprep.subr.bf16.mxu0 0
    %640 = vmatpush1.bf16.msra.mxu0 0
    %641 = vmatprep.subr.bf16.mxu0 0
    %642 = vmatpush1.bf16.msra.mxu0 0
    %643 = vmatprep.subr.bf16.mxu0 0
    %644 = vmatpush1.bf16.msra.mxu0 0
    %645 = vmatprep.subr.bf16.mxu0 0
    %646 = vmatpush1.bf16.msra.mxu0 0
    %647 = vmatprep.subr.bf16.mxu0 0
    %648 = vmatpush1.bf16.msra.mxu0 0
    %649 = vmatprep.subr.bf16.mxu0 0
    %650 = vmatpush1.bf16.msra.mxu0 0
    %651 = vmatprep.subr.bf16.mxu0 0
    %652 = vmatpush1.bf16.msra.mxu0 0
    %653 = vmatprep.subr.bf16.mxu0 0
    %654 = vmatpush1.bf16.msra.mxu0 0
    %655 = vmatprep.subr.bf16.mxu0 0
    %656 = vmatpush1.bf16.msra.mxu0 0
    %657 = vmatprep.subr.bf16.mxu0 0
    %658 = vmatpush1.bf16.msra.mxu0 0
    %659 = vmatprep.subr.bf16.mxu0 0
    %660 = vmatpush1.bf16.msra.mxu0 0
    %661 = vmatprep.mubr.bf16.mxu0 0
    %662 = vmatmul.mubr.bf16.gmra.mrb[0].mxu0 %v624
    %v663 = vpop.f32.mrb[0].mxu0
    %v664 = vadd.f32 0.0, %v663
    %v665 = vpop.f32.mrb[0].mxu0
    %v666 = vpop.f32.mrb[0].mxu0
    %v667 = vpop.f32.mrb[0].mxu0
    %668 = vdwg.mxu0
    %669 = vrot.lane.b32.xlu0 %v273, 48
    %v670 = vpop.permute.xlu0 %669
    %v672 = vsel %vm373, %v620, 0
    %v675 = vsel %vm403, %v670, 0
    %677 = vmatprep.subr.bf16.mxu0 0
    %678 = vmatpush1.bf16.msra.mxu0 %v675
    %679 = vmatprep.subr.bf16.mxu0 0
    %680 = vmatpush1.bf16.msra.mxu0 0
    %681 = vmatprep.subr.bf16.mxu0 0
    %682 = vmatpush1.bf16.msra.mxu0 0
    %683 = vmatprep.subr.bf16.mxu0 0
    %684 = vmatpush1.bf16.msra.mxu0 0
    %685 = vmatprep.subr.bf16.mxu0 0
    %686 = vmatpush1.bf16.msra.mxu0 0
    %687 = vmatprep.subr.bf16.mxu0 0
    %688 = vmatpush1.bf16.msra.mxu0 0
    %689 = vmatprep.subr.bf16.mxu0 0
    %690 = vmatpush1.bf16.msra.mxu0 0
    %691 = vmatprep.subr.bf16.mxu0 0
    %692 = vmatpush1.bf16.msra.mxu0 0
    %693 = vmatprep.subr.bf16.mxu0 0
    %694 = vmatpush1.bf16.msra.mxu0 0
    %695 = vmatprep.subr.bf16.mxu0 0
    %696 = vmatpush1.bf16.msra.mxu0 0
    %697 = vmatprep.subr.bf16.mxu0 0
    %698 = vmatpush1.bf16.msra.mxu0 0
    %699 = vmatprep.subr.bf16.mxu0 0
    %700 = vmatpush1.bf16.msra.mxu0 0
    %701 = vmatprep.subr.bf16.mxu0 0
    %702 = vmatpush1.bf16.msra.mxu0 0
    %703 = vmatprep.subr.bf16.mxu0 0
    %704 = vmatpush1.bf16.msra.mxu0 0
    %705 = vmatprep.subr.bf16.mxu0 0
    %706 = vmatpush1.bf16.msra.mxu0 0
    %707 = vmatprep.subr.bf16.mxu0 0
    %708 = vmatpush1.bf16.msra.mxu0 0
    %709 = vmatprep.mubr.bf16.mxu0 0
    %710 = vmatmul.mubr.bf16.gmra.mrb[0].mxu0 %v672
    %v711 = vpop.f32.mrb[0].mxu0
    %v712 = vadd.f32 0.0, %v711
    %v713 = vpop.f32.mrb[0].mxu0
    %v714 = vpop.f32.mrb[0].mxu0
    %v715 = vpop.f32.mrb[0].mxu0
    %716 = vdwg.mxu0
    %719 = vrot.lane.b32.xlu0 %v664, 16
    %v720 = vpop.permute.xlu0 %719
    %721 = vrot.lane.b32.xlu0 %v712, 16
    %v722 = vpop.permute.xlu0 %721
    %v725 = vsel %vm277, %v442, %v720
    %v726 = vsel %vm277, %v490, %v722
    %v727 = vpack.c.bf16 %v726, %v725
    %v728 = vld [vmem:[#allocation7] sm:$0xf]
    %v729 = vld [vmem:[#allocation7 + $0x4] sm:$0xf]
    %v730 = vld [vmem:[#allocation7 + $0x8] sm:$0xf]
    %v731 = vld [vmem:[#allocation7 + $0xc] sm:$0xf]
    %v732 = vld [vmem:[%s9] sm:$0x1]
    %v733 = vlaneseq
    %v734 = vshrl.u32 %v733, 7
    %v735 = vsub.s32 0, %v734
    %v736 = vrot.slane %v732, %v735
    %v741 = vunpack.c.l.b16 %v728
    %v742 = vunpack.c.l.b16 %v729
    %v743 = vunpack.c.l.b16 %v730
    %v744 = vunpack.c.l.b16 %v731
    %v745 = vpack.c.b16 %v742, %v741
    %v746 = vpack.c.b16 %v744, %v743
    %v750 = vsel %vm112, %v727, 0
    %752 = vmatprep.subr.bf16.mxu0 0
    %753 = vmatpush1.bf16.msra.mxu0 %v745
    %754 = vmatprep.subr.bf16.mxu0 0
    %755 = vmatpush1.bf16.msra.mxu0 %v746
    %756 = vmatprep.subr.bf16.mxu0 0
    %757 = vmatpush1.bf16.msra.mxu0 0
    %758 = vmatprep.subr.bf16.mxu0 0
    %759 = vmatpush1.bf16.msra.mxu0 0
    %760 = vmatprep.subr.bf16.mxu0 0
    %761 = vmatpush1.bf16.msra.mxu0 0
    %762 = vmatprep.subr.bf16.mxu0 0
    %763 = vmatpush1.bf16.msra.mxu0 0
    %764 = vmatprep.subr.bf16.mxu0 0
    %765 = vmatpush1.bf16.msra.mxu0 0
    %766 = vmatprep.subr.bf16.mxu0 0
    %767 = vmatpush1.bf16.msra.mxu0 0
    %768 = vmatprep.subr.bf16.mxu0 0
    %769 = vmatpush1.bf16.msra.mxu0 0
    %770 = vmatprep.subr.bf16.mxu0 0
    %771 = vmatpush1.bf16.msra.mxu0 0
    %772 = vmatprep.subr.bf16.mxu0 0
    %773 = vmatpush1.bf16.msra.mxu0 0
    %774 = vmatprep.subr.bf16.mxu0 0
    %775 = vmatpush1.bf16.msra.mxu0 0
    %776 = vmatprep.subr.bf16.mxu0 0
    %777 = vmatpush1.bf16.msra.mxu0 0
    %778 = vmatprep.subr.bf16.mxu0 0
    %779 = vmatpush1.bf16.msra.mxu0 0
    %780 = vmatprep.subr.bf16.mxu0 0
    %781 = vmatpush1.bf16.msra.mxu0 0
    %782 = vmatprep.subr.bf16.mxu0 0
    %783 = vmatpush1.bf16.msra.mxu0 0
    %784 = vmatprep.mubr.bf16.mxu0 0
    %785 = vmatmul.mubr.bf16.gmra.mrb[0].mxu0 %v750
    %v786 = vpop.f32.mrb[0].mxu0
    %v787 = vadd.f32 %v736, %v786
    %v788 = vpop.f32.mrb[0].mxu0
    %v789 = vpop.f32.mrb[0].mxu0
    %v790 = vadd.f32 %v736, %v789
    %v791 = vpop.f32.mrb[0].mxu0
    %792 = vdwg.mxu0
    %v793 = vadd.f32 %v154, %v787
    %v794 = vadd.f32 %v155, %v790
    %v795 = vld [vmem:[%s10] sm:$0x1]
    %v796 = vld [vmem:[%s11] sm:$0x1]
    %v797 = vsel %vm112, %v793, 0.0
    %798 = vadd.xlane.f32.xlu0 %v797
    %v799 = vpop.xlane.xlu0 %798
    %v800 = vsel %vm112, %v794, 0.0
    %801 = vadd.xlane.f32.xlu0 %v800
    %v802 = vpop.xlane.xlu0 %801
    %v803 = vmul.f32 %v799, %v119
    %v804 = vmul.f32 %v802, %v119
    %v805 = vsub.f32 %v793, %v803
    %v806 = vsub.f32 %v794, %v804
    %v807 = vmul.f32 %v805, %v805
    %v808 = vmul.f32 %v806, %v806
    %v809 = vsel %vm112, %v807, 0.0
    %810 = vadd.xlane.f32.xlu0 %v809
    %v811 = vpop.xlane.xlu0 %810
    %v812 = vsel %vm112, %v808, 0.0
    %813 = vadd.xlane.f32.xlu0 %v812
    %v814 = vpop.xlane.xlu0 %813
    %v815 = vmul.f32 %v811, %v119
    %v816 = vmul.f32 %v814, %v119
    %v817 = vadd.f32 %v815, 1e-05
    %v818 = vadd.f32 %v816, 1e-05
    %v819 = vrsqrt.pop %v817
    %v820 = vrsqrt.pop %v818
    %v821 = vmul.f32 %v805, %v819
    %v822 = vmul.f32 %v806, %v820
    %v823 = vlaneseq
    %v824 = vshrl.u32 %v823, 7
    %v825 = vsub.s32 0, %v824
    %v826 = vrot.slane %v795, %v825
    %v827 = vmul.f32 %v821, %v826
    %v828 = vmul.f32 %v822, %v826
    %v829 = vlaneseq
    %v830 = vshrl.u32 %v829, 7
    %v831 = vsub.s32 0, %v830
    %v832 = vrot.slane %v796, %v831
    %v833 = vadd.f32 %v827, %v832
    %v834 = vadd.f32 %v828, %v832
    %v835 = vpack.c.bf16 %v834, %v833
    %v836 = vld [vmem:[#allocation8] sm:$0xf]
    %v837 = vld [vmem:[#allocation8 + $0x4] sm:$0xf]
    %v838 = vld [vmem:[#allocation8 + $0x8] sm:$0xf]
    %v839 = vld [vmem:[#allocation8 + $0xc] sm:$0xf]
    %v840 = vld [vmem:[%s13] sm:$0x1]
    %v841 = vlaneseq
    %v842 = vshrl.u32 %v841, 7
    %v843 = vsub.s32 0, %v842
    %v844 = vrot.slane %v840, %v843
    %v849 = vunpack.c.l.b16 %v836
    %v850 = vunpack.c.l.b16 %v837
    %v851 = vunpack.c.l.b16 %v838
    %v852 = vunpack.c.l.b16 %v839
    %v853 = vpack.c.b16 %v850, %v849
    %v854 = vpack.c.b16 %v852, %v851
    %v858 = vsel %vm112, %v835, 0
    %860 = vmatprep.subr.bf16.mxu0 0
    %861 = vmatpush1.bf16.msra.mxu0 %v853
    %862 = vmatprep.subr.bf16.mxu0 0
    %863 = vmatpush1.bf16.msra.mxu0 %v854
    %864 = vmatprep.subr.bf16.mxu0 0
    %865 = vmatpush1.bf16.msra.mxu0 0
    %866 = vmatprep.subr.bf16.mxu0 0
    %867 = vmatpush1.bf16.msra.mxu0 0
    %868 = vmatprep.subr.bf16.mxu0 0
    %869 = vmatpush1.bf16.msra.mxu0 0
    %870 = vmatprep.subr.bf16.mxu0 0
    %871 = vmatpush1.bf16.msra.mxu0 0
    %872 = vmatprep.subr.bf16.mxu0 0
    %873 = vmatpush1.bf16.msra.mxu0 0
    %874 = vmatprep.subr.bf16.mxu0 0
    %875 = vmatpush1.bf16.msra.mxu0 0
    %876 = vmatprep.subr.bf16.mxu0 0
    %877 = vmatpush1.bf16.msra.mxu0 0
    %878 = vmatprep.subr.bf16.mxu0 0
    %879 = vmatpush1.bf16.msra.mxu0 0
    %880 = vmatprep.subr.bf16.mxu0 0
    %881 = vmatpush1.bf16.msra.mxu0 0
    %882 = vmatprep.subr.bf16.mxu0 0
    %883 = vmatpush1.bf16.msra.mxu0 0
    %884 = vmatprep.subr.bf16.mxu0 0
    %885 = vmatpush1.bf16.msra.mxu0 0
    %886 = vmatprep.subr.bf16.mxu0 0
    %887 = vmatpush1.bf16.msra.mxu0 0
    %888 = vmatprep.subr.bf16.mxu0 0
    %889 = vmatpush1.bf16.msra.mxu0 0
    %890 = vmatprep.subr.bf16.mxu0 0
    %891 = vmatpush1.bf16.msra.mxu0 0
    %892 = vmatprep.mubr.bf16.mxu0 0
    %893 = vmatmul.mubr.bf16.gmra.mrb[0].mxu0 %v858
    %v894 = vpop.f32.mrb[0].mxu0
    %v895 = vadd.f32 %v844, %v894
    %v896 = vpop.f32.mrb[0].mxu0
    %v897 = vpop.f32.mrb[0].mxu0
    %v898 = vadd.f32 %v844, %v897
    %v899 = vpop.f32.mrb[0].mxu0
    %900 = vdwg.mxu0
    %v901 = vmul.f32 %v895, 0.5
    %v902 = vmul.f32 %v898, 0.5
    %v903 = vmul.f32 %v895, %v895
    %v904 = vmul.f32 %v898, %v898
    %v905 = vmul.f32 %v903, %v895
    %v906 = vmul.f32 %v904, %v898
    %v907 = vmul.f32 %v905, 0.044715
    %v908 = vmul.f32 %v906, 0.044715
    %v909 = vadd.f32 %v895, %v907
    %v910 = vadd.f32 %v898, %v908
    %v911 = vmul.f32 %v909, 0.7978846
    %v912 = vmul.f32 %v910, 0.7978846
    %v913 = vtanh.pop %v911
    %v914 = vtanh.pop %v912
    %v915 = vadd.f32 %v913, 1.0
    %v916 = vadd.f32 %v914, 1.0
    %v917 = vmul.f32 %v901, %v915
    %v918 = vmul.f32 %v902, %v916
    %v919 = vpack.c.bf16 %v918, %v917
    %v920 = vld [vmem:[%s14] sm:$0xf]
    %v921 = vld [vmem:[%s14 + $0x4] sm:$0xf]
    %v922 = vld [vmem:[%s14 + $0x8] sm:$0xf]
    %v923 = vld [vmem:[%s14 + $0xc] sm:$0xf]
    %v924 = vld [vmem:[%s14 + $0x10] sm:$0xf]
    %v925 = vld [vmem:[%s14 + $0x14] sm:$0xf]
    %v926 = vld [vmem:[%s14 + $0x18] sm:$0xf]
    %v927 = vld [vmem:[%s14 + $0x1c] sm:$0xf]
    %v928 = vld [vmem:[%s14 + $0x20] sm:$0xf]
    %v929 = vld [vmem:[%s14 + $0x24] sm:$0xf]
    %v930 = vld [vmem:[%s14 + $0x28] sm:$0xf]
    %v931 = vld [vmem:[%s14 + $0x2c] sm:$0xf]
    %v932 = vld [vmem:[%s14 + $0x30] sm:$0xf]
    %v933 = vld [vmem:[%s14 + $0x34] sm:$0xf]
    %v934 = vld [vmem:[%s14 + $0x38] sm:$0xf]
    %v935 = vld [vmem:[%s14 + $0x3c] sm:$0xf]
    %v936 = vld [vmem:[%s15] sm:$0x1]
    %v937 = vlaneseq
    %v938 = vshrl.u32 %v937, 7
    %v939 = vsub.s32 0, %v938
    %v940 = vrot.slane %v936, %v939
    %v957 = vunpack.c.l.b16 %v920
    %v958 = vunpack.c.l.b16 %v921
    %v959 = vunpack.c.l.b16 %v922
    %v960 = vunpack.c.l.b16 %v923
    %v961 = vunpack.c.l.b16 %v924
    %v962 = vunpack.c.l.b16 %v925
    %v963 = vunpack.c.l.b16 %v926
    %v964 = vunpack.c.l.b16 %v927
    %v965 = vunpack.c.l.b16 %v928
    %v966 = vunpack.c.l.b16 %v929
    %v967 = vunpack.c.l.b16 %v930
    %v968 = vunpack.c.l.b16 %v931
    %v969 = vunpack.c.l.b16 %v932
    %v970 = vunpack.c.l.b16 %v933
    %v971 = vunpack.c.l.b16 %v934
    %v972 = vunpack.c.l.b16 %v935
    %v973 = vpack.c.b16 %v958, %v957
    %v974 = vpack.c.b16 %v960, %v959
    %v975 = vpack.c.b16 %v962, %v961
    %v976 = vpack.c.b16 %v964, %v963
    %v977 = vpack.c.b16 %v966, %v965
    %v978 = vpack.c.b16 %v968, %v967
    %v979 = vpack.c.b16 %v970, %v969
    %v980 = vpack.c.b16 %v972, %v971
    %989 = vmatprep.subr.bf16.mxu0 0
    %990 = vmatpush1.bf16.msra.mxu0 %v973
    %991 = vmatprep.subr.bf16.mxu0 0
    %992 = vmatpush1.bf16.msra.mxu0 %v974
    %993 = vmatprep.subr.bf16.mxu0 0
    %994 = vmatpush1.bf16.msra.mxu0 %v975
    %995 = vmatprep.subr.bf16.mxu0 0
    %996 = vmatpush1.bf16.msra.mxu0 %v976
    %997 = vmatprep.subr.bf16.mxu0 0
    %998 = vmatpush1.bf16.msra.mxu0 %v977
    %999 = vmatprep.subr.bf16.mxu0 0
    %1000 = vmatpush1.bf16.msra.mxu0 %v978
    %1001 = vmatprep.subr.bf16.mxu0 0
    %1002 = vmatpush1.bf16.msra.mxu0 %v979
    %1003 = vmatprep.subr.bf16.mxu0 0
    %1004 = vmatpush1.bf16.msra.mxu0 %v980
    %1005 = vmatprep.subr.bf16.mxu0 0
    %1006 = vmatpush1.bf16.msra.mxu0 0
    %1007 = vmatprep.subr.bf16.mxu0 0
    %1008 = vmatpush1.bf16.msra.mxu0 0
    %1009 = vmatprep.subr.bf16.mxu0 0
    %1010 = vmatpush1.bf16.msra.mxu0 0
    %1011 = vmatprep.subr.bf16.mxu0 0
    %1012 = vmatpush1.bf16.msra.mxu0 0
    %1013 = vmatprep.subr.bf16.mxu0 0
    %1014 = vmatpush1.bf16.msra.mxu0 0
    %1015 = vmatprep.subr.bf16.mxu0 0
    %1016 = vmatpush1.bf16.msra.mxu0 0
    %1017 = vmatprep.subr.bf16.mxu0 0
    %1018 = vmatpush1.bf16.msra.mxu0 0
    %1019 = vmatprep.subr.bf16.mxu0 0
    %1020 = vmatpush1.bf16.msra.mxu0 0
    %1021 = vmatprep.mubr.bf16.mxu0 0
    %1022 = vmatmul.mubr.bf16.gmra.mrb[0].mxu0 %v919
    %v1023 = vpop.f32.mrb[0].mxu0
    %v1024 = vadd.f32 %v940, %v1023
    %v1025 = vpop.f32.mrb[0].mxu0
    %v1026 = vpop.f32.mrb[0].mxu0
    %v1027 = vadd.f32 %v940, %v1026
    %v1028 = vpop.f32.mrb[0].mxu0
    %1029 = vdwg.mxu0
    %v1030 = vadd.f32 %v793, %v1024
    %v1031 = vadd.f32 %v794, %v1027
    %v1032 = vld [vmem:[%s4 + $0x1] sm:$0x1]
    %v1033 = vld [vmem:[%s5 + $0x1] sm:$0x1]
    %v1034 = vsel %vm112, %v1030, 0.0
    %1035 = vadd.xlane.f32.xlu0 %v1034
    %v1036 = vpop.xlane.xlu0 %1035
    %v1037 = vsel %vm112, %v1031, 0.0
    %1038 = vadd.xlane.f32.xlu0 %v1037
    %v1039 = vpop.xlane.xlu0 %1038
    %v1040 = vmul.f32 %v1036, %v119
    %v1041 = vmul.f32 %v1039, %v119
    %v1042 = vsub.f32 %v1030, %v1040
    %v1043 = vsub.f32 %v1031, %v1041
    %v1044 = vmul.f32 %v1042, %v1042
    %v1045 = vmul.f32 %v1043, %v1043
    %v1046 = vsel %vm112, %v1044, 0.0
    %1047 = vadd.xlane.f32.xlu0 %v1046
    %v1048 = vpop.xlane.xlu0 %1047
    %v1049 = vsel %vm112, %v1045, 0.0
    %1050 = vadd.xlane.f32.xlu0 %v1049
    %v1051 = vpop.xlane.xlu0 %1050
    %v1052 = vmul.f32 %v1048, %v119
    %v1053 = vmul.f32 %v1051, %v119
    %v1054 = vadd.f32 %v1052, 1e-05
    %v1055 = vadd.f32 %v1053, 1e-05
    %v1056 = vrsqrt.pop %v1054
    %v1057 = vrsqrt.pop %v1055
    %v1058 = vmul.f32 %v1042, %v1056
    %v1059 = vmul.f32 %v1043, %v1057
    %v1060 = vlaneseq
    %v1061 = vshrl.u32 %v1060, 7
    %v1062 = vsub.s32 0, %v1061
    %v1063 = vrot.slane %v1032, %v1062
    %v1064 = vmul.f32 %v1058, %v1063
    %v1065 = vmul.f32 %v1059, %v1063
    %v1066 = vlaneseq
    %v1067 = vshrl.u32 %v1066, 7
    %v1068 = vsub.s32 0, %v1067
    %v1069 = vrot.slane %v1033, %v1068
    %v1070 = vadd.f32 %v1064, %v1069
    %v1071 = vadd.f32 %v1065, %v1069
    %v1072 = vpack.c.bf16 %v1071, %v1070
    %s1073 = scalar_lea.vmem %s6, 16
    %v1074 = vld [vmem:[%s1073] sm:$0xf]
    %v1075 = vld [vmem:[%s1073 + $0x4] sm:$0xf]
    %v1076 = vld [vmem:[%s1073 + $0x8] sm:$0xf]
    %v1077 = vld [vmem:[%s1073 + $0xc] sm:$0xf]
    %v1078 = vld [vmem:[%s7 + $0x1] sm:$0x1]
    %v1079 = vlaneseq
    %v1080 = vshrl.u32 %v1079, 7
    %v1081 = vsub.s32 0, %v1080
    %v1082 = vrot.slane %v1078, %v1081
    %v1087 = vunpack.c.l.b16 %v1074
    %v1088 = vunpack.c.l.b16 %v1075
    %v1089 = vunpack.c.l.b16 %v1076
    %v1090 = vunpack.c.l.b16 %v1077
    %v1091 = vpack.c.b16 %v1088, %v1087
    %v1092 = vpack.c.b16 %v1090, %v1089
    %v1096 = vsel %vm112, %v1072, 0
    %1098 = vmatprep.subr.bf16.mxu0 0
    %1099 = vmatpush1.bf16.msra.mxu0 %v1091
    %1100 = vmatprep.subr.bf16.mxu0 0
    %1101 = vmatpush1.bf16.msra.mxu0 %v1092
    %1102 = vmatprep.subr.bf16.mxu0 0
    %1103 = vmatpush1.bf16.msra.mxu0 0
    %1104 = vmatprep.subr.bf16.mxu0 0
    %1105 = vmatpush1.bf16.msra.mxu0 0
    %1106 = vmatprep.subr.bf16.mxu0 0
    %1107 = vmatpush1.bf16.msra.mxu0 0
    %1108 = vmatprep.subr.bf16.mxu0 0
    %1109 = vmatpush1.bf16.msra.mxu0 0
    %1110 = vmatprep.subr.bf16.mxu0 0
    %1111 = vmatpush1.bf16.msra.mxu0 0
    %1112 = vmatprep.subr.bf16.mxu0 0
    %1113 = vmatpush1.bf16.msra.mxu0 0
    %1114 = vmatprep.subr.bf16.mxu0 0
    %1115 = vmatpush1.bf16.msra.mxu0 0
    %1116 = vmatprep.subr.bf16.mxu0 0
    %1117 = vmatpush1.bf16.msra.mxu0 0
    %1118 = vmatprep.subr.bf16.mxu0 0
    %1119 = vmatpush1.bf16.msra.mxu0 0
    %1120 = vmatprep.subr.bf16.mxu0 0
    %1121 = vmatpush1.bf16.msra.mxu0 0
    %1122 = vmatprep.subr.bf16.mxu0 0
    %1123 = vmatpush1.bf16.msra.mxu0 0
    %1124 = vmatprep.subr.bf16.mxu0 0
    %1125 = vmatpush1.bf16.msra.mxu0 0
    %1126 = vmatprep.subr.bf16.mxu0 0
    %1127 = vmatpush1.bf16.msra.mxu0 0
    %1128 = vmatprep.subr.bf16.mxu0 0
    %1129 = vmatpush1.bf16.msra.mxu0 0
    %1130 = vmatprep.mubr.bf16.mxu0 0
    %1131 = vmatmul.mubr.bf16.gmra.mrb[0].mxu0 %v1096
    %v1132 = vpop.f32.mrb[0].mxu0
    %v1133 = vadd.f32 %v1082, %v1132
    %v1134 = vpop.f32.mrb[0].mxu0
    %v1135 = vpop.f32.mrb[0].mxu0
    %v1136 = vadd.f32 %v1082, %v1135
    %v1137 = vpop.f32.mrb[0].mxu0
    %1138 = vdwg.mxu0
    %v1139 = vmul.f32 %v1133, 0.25
    %v1140 = vmul.f32 %v1136, 0.25
    %v1141 = vpack.c.bf16 %v1139, %v1139
    %v1142 = vpack.c.bf16 %v1140, %v1140
    %v1143 = vpack.c.bf16 %v1133, %v1133
    %v1144 = vpack.c.bf16 %v1136, %v1136
    %1146 = vrot.lane.b32.xlu0 %v1143, 96
    %v1147 = vpop.permute.xlu0 %1146
    %v1149 = vsel %vm277, %v1141, 0
    %v1152 = vsel %vm277, %v1147, 0
    %1154 = vmatprep.subr.bf16.mxu0 0
    %1155 = vmatpush1.bf16.xpose.msra.mxu0 %v1152
    %1156 = vmatprep.subr.bf16.mxu0 0
    %1157 = vmatpush1.bf16.xpose.msra.mxu0 0
    %1158 = vmatprep.subr.bf16.mxu0 0
    %1159 = vmatpush1.bf16.xpose.msra.mxu0 0
    %1160 = vmatprep.subr.bf16.mxu0 0
    %1161 = vmatpush1.bf16.xpose.msra.mxu0 0
    %1162 = vmatprep.subr.bf16.mxu0 0
    %1163 = vmatpush1.bf16.xpose.msra.mxu0 0
    %1164 = vmatprep.subr.bf16.mxu0 0
    %1165 = vmatpush1.bf16.xpose.msra.mxu0 0
    %1166 = vmatprep.subr.bf16.mxu0 0
    %1167 = vmatpush1.bf16.xpose.msra.mxu0 0
    %1168 = vmatprep.subr.bf16.mxu0 0
    %1169 = vmatpush1.bf16.xpose.msra.mxu0 0
    %1170 = vmatprep.subr.bf16.mxu0 0
    %1171 = vmatpush1.bf16.xpose.msra.mxu0 0
    %1172 = vmatprep.subr.bf16.mxu0 0
    %1173 = vmatpush1.bf16.xpose.msra.mxu0 0
    %1174 = vmatprep.subr.bf16.mxu0 0
    %1175 = vmatpush1.bf16.xpose.msra.mxu0 0
    %1176 = vmatprep.subr.bf16.mxu0 0
    %1177 = vmatpush1.bf16.xpose.msra.mxu0 0
    %1178 = vmatprep.subr.bf16.mxu0 0
    %1179 = vmatpush1.bf16.xpose.msra.mxu0 0
    %1180 = vmatprep.subr.bf16.mxu0 0
    %1181 = vmatpush1.bf16.xpose.msra.mxu0 0
    %1182 = vmatprep.subr.bf16.mxu0 0
    %1183 = vmatpush1.bf16.xpose.msra.mxu0 0
    %1184 = vmatprep.subr.bf16.mxu0 0
    %1185 = vmatpush1.bf16.xpose.msra.mxu0 0
    %1186 = vmatprep.mubr.bf16.mxu0 0
    %1187 = vmatmul.mubr.bf16.gmra.mrb[0].mxu0 %v1149
    %v1188 = vpop.f32.mrb[0].mxu0
    %v1189 = vadd.f32 %v161, %v1188
    %v1190 = vpop.f32.mrb[0].mxu0
    %v1191 = vpop.f32.mrb[0].mxu0
    %v1192 = vpop.f32.mrb[0].mxu0
    %1193 = vdwg.mxu0
    %1195 = vrot.lane.b32.xlu0 %v1144, 96
    %v1196 = vpop.permute.xlu0 %1195
    %v1198 = vsel %vm277, %v1142, 0
    %v1201 = vsel %vm277, %v1196, 0
    %1203 = vmatprep.subr.bf16.mxu0 0
    %1204 = vmatpush1.bf16.xpose.msra.mxu0 %v1201
    %1205 = vmatprep.subr.bf16.mxu0 0
    %1206 = vmatpush1.bf16.xpose.msra.mxu0 0
    %1207 = vmatprep.subr.bf16.mxu0 0
    %1208 = vmatpush1.bf16.xpose.msra.mxu0 0
    %1209 = vmatprep.subr.bf16.mxu0 0
    %1210 = vmatpush1.bf16.xpose.msra.mxu0 0
    %1211 = vmatprep.subr.bf16.mxu0 0
    %1212 = vmatpush1.bf16.xpose.msra.mxu0 0
    %1213 = vmatprep.subr.bf16.mxu0 0
    %1214 = vmatpush1.bf16.xpose.msra.mxu0 0
    %1215 = vmatprep.subr.bf16.mxu0 0
    %1216 = vmatpush1.bf16.xpose.msra.mxu0 0
    %1217 = vmatprep.subr.bf16.mxu0 0
    %1218 = vmatpush1.bf16.xpose.msra.mxu0 0
    %1219 = vmatprep.subr.bf16.mxu0 0
    %1220 = vmatpush1.bf16.xpose.msra.mxu0 0
    %1221 = vmatprep.subr.bf16.mxu0 0
    %1222 = vmatpush1.bf16.xpose.msra.mxu0 0
    %1223 = vmatprep.subr.bf16.mxu0 0
    %1224 = vmatpush1.bf16.xpose.msra.mxu0 0
    %1225 = vmatprep.subr.bf16.mxu0 0
    %1226 = vmatpush1.bf16.xpose.msra.mxu0 0
    %1227 = vmatprep.subr.bf16.mxu0 0
    %1228 = vmatpush1.bf16.xpose.msra.mxu0 0
    %1229 = vmatprep.subr.bf16.mxu0 0
    %1230 = vmatpush1.bf16.xpose.msra.mxu0 0
    %1231 = vmatprep.subr.bf16.mxu0 0
    %1232 = vmatpush1.bf16.xpose.msra.mxu0 0
    %1233 = vmatprep.subr.bf16.mxu0 0
    %1234 = vmatpush1.bf16.xpose.msra.mxu0 0
    %1235 = vmatprep.mubr.bf16.mxu0 0
    %1236 = vmatmul.mubr.bf16.gmra.mrb[0].mxu0 %v1198
    %v1237 = vpop.f32.mrb[0].mxu0
    %v1238 = vadd.f32 %v161, %v1237
    %v1239 = vpop.f32.mrb[0].mxu0
    %v1240 = vpop.f32.mrb[0].mxu0
    %v1241 = vpop.f32.mrb[0].mxu0
    %1242 = vdwg.mxu0
    %v1243 = vsel %vm373, %v1189, -inf
    %1244 = vmax.xlane.f32.xlu0 %v1243
    %v1245 = vpop.xlane.xlu0 %1244
    %v1246 = vsel %vm373, %v1238, -inf
    %1247 = vmax.xlane.f32.xlu0 %v1246
    %v1248 = vpop.xlane.xlu0 %1247
    %v1249 = vsub.f32 %v1189, %v1245
    %v1250 = vsub.f32 %v1238, %v1248
    %v1251 = vmul.f32 %v1249, 1.442695
    %v1252 = vpow.pop %v1251
    %v1253 = vmul.f32 %v1250, 1.442695
    %v1254 = vpow.pop %v1253
    %v1255 = vsel %vm373, %v1252, 0.0
    %1256 = vadd.xlane.f32.xlu0 %v1255
    %v1257 = vpop.xlane.xlu0 %1256
    %v1258 = vsel %vm373, %v1254, 0.0
    %1259 = vadd.xlane.f32.xlu0 %v1258
    %v1260 = vpop.xlane.xlu0 %1259
    %v1261 = vrcp.pop %v1257
    %v1262 = vrcp.pop %v1260
    %v1263 = vmul.f32 %v1252, %v1261
    %v1264 = vmul.f32 %v1254, %v1262
    %v1265 = vpack.c.bf16 %v1263, %v1263
    %v1266 = vpack.c.bf16 %v1264, %v1264
    %1267 = vrot.lane.b32.xlu0 %v1143, 64
    %v1268 = vpop.permute.xlu0 %1267
    %v1270 = vsel %vm373, %v1265, 0
    %v1273 = vsel %vm403, %v1268, 0
    %1275 = vmatprep.subr.bf16.mxu0 0
    %1276 = vmatpush1.bf16.msra.mxu0 %v1273
    %1277 = vmatprep.subr.bf16.mxu0 0
    %1278 = vmatpush1.bf16.msra.mxu0 0
    %1279 = vmatprep.subr.bf16.mxu0 0
    %1280 = vmatpush1.bf16.msra.mxu0 0
    %1281 = vmatprep.subr.bf16.mxu0 0
    %1282 = vmatpush1.bf16.msra.mxu0 0
    %1283 = vmatprep.subr.bf16.mxu0 0
    %1284 = vmatpush1.bf16.msra.mxu0 0
    %1285 = vmatprep.subr.bf16.mxu0 0
    %1286 = vmatpush1.bf16.msra.mxu0 0
    %1287 = vmatprep.subr.bf16.mxu0 0
    %1288 = vmatpush1.bf16.msra.mxu0 0
    %1289 = vmatprep.subr.bf16.mxu0 0
    %1290 = vmatpush1.bf16.msra.mxu0 0
    %1291 = vmatprep.subr.bf16.mxu0 0
    %1292 = vmatpush1.bf16.msra.mxu0 0
    %1293 = vmatprep.subr.bf16.mxu0 0
    %1294 = vmatpush1.bf16.msra.mxu0 0
    %1295 = vmatprep.subr.bf16.mxu0 0
    %1296 = vmatpush1.bf16.msra.mxu0 0
    %1297 = vmatprep.subr.bf16.mxu0 0
    %1298 = vmatpush1.bf16.msra.mxu0 0
    %1299 = vmatprep.subr.bf16.mxu0 0
    %1300 = vmatpush1.bf16.msra.mxu0 0
    %1301 = vmatprep.subr.bf16.mxu0 0
    %1302 = vmatpush1.bf16.msra.mxu0 0
    %1303 = vmatprep.subr.bf16.mxu0 0
    %1304 = vmatpush1.bf16.msra.mxu0 0
    %1305 = vmatprep.subr.bf16.mxu0 0
    %1306 = vmatpush1.bf16.msra.mxu0 0
    %1307 = vmatprep.mubr.bf16.mxu0 0
    %1308 = vmatmul.mubr.bf16.gmra.mrb[0].mxu0 %v1270
    %v1309 = vpop.f32.mrb[0].mxu0
    %v1310 = vadd.f32 0.0, %v1309
    %v1311 = vpop.f32.mrb[0].mxu0
    %v1312 = vpop.f32.mrb[0].mxu0
    %v1313 = vpop.f32.mrb[0].mxu0
    %1314 = vdwg.mxu0
    %1315 = vrot.lane.b32.xlu0 %v1144, 64
    %v1316 = vpop.permute.xlu0 %1315
    %v1318 = vsel %vm373, %v1266, 0
    %v1321 = vsel %vm403, %v1316, 0
    %1323 = vmatprep.subr.bf16.mxu0 0
    %1324 = vmatpush1.bf16.msra.mxu0 %v1321
    %1325 = vmatprep.subr.bf16.mxu0 0
    %1326 = vmatpush1.bf16.msra.mxu0 0
    %1327 = vmatprep.subr.bf16.mxu0 0
    %1328 = vmatpush1.bf16.msra.mxu0 0
    %1329 = vmatprep.subr.bf16.mxu0 0
    %1330 = vmatpush1.bf16.msra.mxu0 0
    %1331 = vmatprep.subr.bf16.mxu0 0
    %1332 = vmatpush1.bf16.msra.mxu0 0
    %1333 = vmatprep.subr.bf16.mxu0 0
    %1334 = vmatpush1.bf16.msra.mxu0 0
    %1335 = vmatprep.subr.bf16.mxu0 0
    %1336 = vmatpush1.bf16.msra.mxu0 0
    %1337 = vmatprep.subr.bf16.mxu0 0
    %1338 = vmatpush1.bf16.msra.mxu0 0
    %1339 = vmatprep.subr.bf16.mxu0 0
    %1340 = vmatpush1.bf16.msra.mxu0 0
    %1341 = vmatprep.subr.bf16.mxu0 0
    %1342 = vmatpush1.bf16.msra.mxu0 0
    %1343 = vmatprep.subr.bf16.mxu0 0
    %1344 = vmatpush1.bf16.msra.mxu0 0
    %1345 = vmatprep.subr.bf16.mxu0 0
    %1346 = vmatpush1.bf16.msra.mxu0 0
    %1347 = vmatprep.subr.bf16.mxu0 0
    %1348 = vmatpush1.bf16.msra.mxu0 0
    %1349 = vmatprep.subr.bf16.mxu0 0
    %1350 = vmatpush1.bf16.msra.mxu0 0
    %1351 = vmatprep.subr.bf16.mxu0 0
    %1352 = vmatpush1.bf16.msra.mxu0 0
    %1353 = vmatprep.subr.bf16.mxu0 0
    %1354 = vmatpush1.bf16.msra.mxu0 0
    %1355 = vmatprep.mubr.bf16.mxu0 0
    %1356 = vmatmul.mubr.bf16.gmra.mrb[0].mxu0 %v1318
    %v1357 = vpop.f32.mrb[0].mxu0
    %v1358 = vadd.f32 0.0, %v1357
    %v1359 = vpop.f32.mrb[0].mxu0
    %v1360 = vpop.f32.mrb[0].mxu0
    %v1361 = vpop.f32.mrb[0].mxu0
    %1362 = vdwg.mxu0
    %1364 = vrot.lane.b32.xlu0 %v1141, 112
    %v1365 = vpop.permute.xlu0 %1364
    %1366 = vrot.lane.b32.xlu0 %v1143, 80
    %v1367 = vpop.permute.xlu0 %1366
    %v1369 = vsel %vm277, %v1365, 0
    %v1372 = vsel %vm277, %v1367, 0
    %1374 = vmatprep.subr.bf16.mxu0 0
    %1375 = vmatpush1.bf16.xpose.msra.mxu0 %v1372
    %1376 = vmatprep.subr.bf16.mxu0 0
    %1377 = vmatpush1.bf16.xpose.msra.mxu0 0
    %1378 = vmatprep.subr.bf16.mxu0 0
    %1379 = vmatpush1.bf16.xpose.msra.mxu0 0
    %1380 = vmatprep.subr.bf16.mxu0 0
    %1381 = vmatpush1.bf16.xpose.msra.mxu0 0
    %1382 = vmatprep.subr.bf16.mxu0 0
    %1383 = vmatpush1.bf16.xpose.msra.mxu0 0
    %1384 = vmatprep.subr.bf16.mxu0 0
    %1385 = vmatpush1.bf16.xpose.msra.mxu0 0
    %1386 = vmatprep.subr.bf16.mxu0 0
    %1387 = vmatpush1.bf16.xpose.msra.mxu0 0
    %1388 = vmatprep.subr.bf16.mxu0 0
    %1389 = vmatpush1.bf16.xpose.msra.mxu0 0
    %1390 = vmatprep.subr.bf16.mxu0 0
    %1391 = vmatpush1.bf16.xpose.msra.mxu0 0
    %1392 = vmatprep.subr.bf16.mxu0 0
    %1393 = vmatpush1.bf16.xpose.msra.mxu0 0
    %1394 = vmatprep.subr.bf16.mxu0 0
    %1395 = vmatpush1.bf16.xpose.msra.mxu0 0
    %1396 = vmatprep.subr.bf16.mxu0 0
    %1397 = vmatpush1.bf16.xpose.msra.mxu0 0
    %1398 = vmatprep.subr.bf16.mxu0 0
    %1399 = vmatpush1.bf16.xpose.msra.mxu0 0
    %1400 = vmatprep.subr.bf16.mxu0 0
    %1401 = vmatpush1.bf16.xpose.msra.mxu0 0
    %1402 = vmatprep.subr.bf16.mxu0 0
    %1403 = vmatpush1.bf16.xpose.msra.mxu0 0
    %1404 = vmatprep.subr.bf16.mxu0 0
    %1405 = vmatpush1.bf16.xpose.msra.mxu0 0
    %1406 = vmatprep.mubr.bf16.mxu0 0
    %1407 = vmatmul.mubr.bf16.gmra.mrb[0].mxu0 %v1369
    %v1408 = vpop.f32.mrb[0].mxu0
    %v1409 = vadd.f32 %v161, %v1408
    %v1410 = vpop.f32.mrb[0].mxu0
    %v1411 = vpop.f32.mrb[0].mxu0
    %v1412 = vpop.f32.mrb[0].mxu0
    %1413 = vdwg.mxu0
    %1415 = vrot.lane.b32.xlu0 %v1142, 112
    %v1416 = vpop.permute.xlu0 %1415
    %1417 = vrot.lane.b32.xlu0 %v1144, 80
    %v1418 = vpop.permute.xlu0 %1417
    %v1420 = vsel %vm277, %v1416, 0
    %v1423 = vsel %vm277, %v1418, 0
    %1425 = vmatprep.subr.bf16.mxu0 0
    %1426 = vmatpush1.bf16.xpose.msra.mxu0 %v1423
    %1427 = vmatprep.subr.bf16.mxu0 0
    %1428 = vmatpush1.bf16.xpose.msra.mxu0 0
    %1429 = vmatprep.subr.bf16.mxu0 0
    %1430 = vmatpush1.bf16.xpose.msra.mxu0 0
    %1431 = vmatprep.subr.bf16.mxu0 0
    %1432 = vmatpush1.bf16.xpose.msra.mxu0 0
    %1433 = vmatprep.subr.bf16.mxu0 0
    %1434 = vmatpush1.bf16.xpose.msra.mxu0 0
    %1435 = vmatprep.subr.bf16.mxu0 0
    %1436 = vmatpush1.bf16.xpose.msra.mxu0 0
    %1437 = vmatprep.subr.bf16.mxu0 0
    %1438 = vmatpush1.bf16.xpose.msra.mxu0 0
    %1439 = vmatprep.subr.bf16.mxu0 0
    %1440 = vmatpush1.bf16.xpose.msra.mxu0 0
    %1441 = vmatprep.subr.bf16.mxu0 0
    %1442 = vmatpush1.bf16.xpose.msra.mxu0 0
    %1443 = vmatprep.subr.bf16.mxu0 0
    %1444 = vmatpush1.bf16.xpose.msra.mxu0 0
    %1445 = vmatprep.subr.bf16.mxu0 0
    %1446 = vmatpush1.bf16.xpose.msra.mxu0 0
    %1447 = vmatprep.subr.bf16.mxu0 0
    %1448 = vmatpush1.bf16.xpose.msra.mxu0 0
    %1449 = vmatprep.subr.bf16.mxu0 0
    %1450 = vmatpush1.bf16.xpose.msra.mxu0 0
    %1451 = vmatprep.subr.bf16.mxu0 0
    %1452 = vmatpush1.bf16.xpose.msra.mxu0 0
    %1453 = vmatprep.subr.bf16.mxu0 0
    %1454 = vmatpush1.bf16.xpose.msra.mxu0 0
    %1455 = vmatprep.subr.bf16.mxu0 0
    %1456 = vmatpush1.bf16.xpose.msra.mxu0 0
    %1457 = vmatprep.mubr.bf16.mxu0 0
    %1458 = vmatmul.mubr.bf16.gmra.mrb[0].mxu0 %v1420
    %v1459 = vpop.f32.mrb[0].mxu0
    %v1460 = vadd.f32 %v161, %v1459
    %v1461 = vpop.f32.mrb[0].mxu0
    %v1462 = vpop.f32.mrb[0].mxu0
    %v1463 = vpop.f32.mrb[0].mxu0
    %1464 = vdwg.mxu0
    %v1465 = vsel %vm373, %v1409, -inf
    %1466 = vmax.xlane.f32.xlu0 %v1465
    %v1467 = vpop.xlane.xlu0 %1466
    %v1468 = vsel %vm373, %v1460, -inf
    %1469 = vmax.xlane.f32.xlu0 %v1468
    %v1470 = vpop.xlane.xlu0 %1469
    %v1471 = vsub.f32 %v1409, %v1467
    %v1472 = vsub.f32 %v1460, %v1470
    %v1473 = vmul.f32 %v1471, 1.442695
    %v1474 = vpow.pop %v1473
    %v1475 = vmul.f32 %v1472, 1.442695
    %v1476 = vpow.pop %v1475
    %v1477 = vsel %vm373, %v1474, 0.0
    %1478 = vadd.xlane.f32.xlu0 %v1477
    %v1479 = vpop.xlane.xlu0 %1478
    %v1480 = vsel %vm373, %v1476, 0.0
    %1481 = vadd.xlane.f32.xlu0 %v1480
    %v1482 = vpop.xlane.xlu0 %1481
    %v1483 = vrcp.pop %v1479
    %v1484 = vrcp.pop %v1482
    %v1485 = vmul.f32 %v1474, %v1483
    %v1486 = vmul.f32 %v1476, %v1484
    %v1487 = vpack.c.bf16 %v1485, %v1485
    %v1488 = vpack.c.bf16 %v1486, %v1486
    %1489 = vrot.lane.b32.xlu0 %v1143, 48
    %v1490 = vpop.permute.xlu0 %1489
    %v1492 = vsel %vm373, %v1487, 0
    %v1495 = vsel %vm403, %v1490, 0
    %1497 = vmatprep.subr.bf16.mxu0 0
    %1498 = vmatpush1.bf16.msra.mxu0 %v1495
    %1499 = vmatprep.subr.bf16.mxu0 0
    %1500 = vmatpush1.bf16.msra.mxu0 0
    %1501 = vmatprep.subr.bf16.mxu0 0
    %1502 = vmatpush1.bf16.msra.mxu0 0
    %1503 = vmatprep.subr.bf16.mxu0 0
    %1504 = vmatpush1.bf16.msra.mxu0 0
    %1505 = vmatprep.subr.bf16.mxu0 0
    %1506 = vmatpush1.bf16.msra.mxu0 0
    %1507 = vmatprep.subr.bf16.mxu0 0
    %1508 = vmatpush1.bf16.msra.mxu0 0
    %1509 = vmatprep.subr.bf16.mxu0 0
    %1510 = vmatpush1.bf16.msra.mxu0 0
    %1511 = vmatprep.subr.bf16.mxu0 0
    %1512 = vmatpush1.bf16.msra.mxu0 0
    %1513 = vmatprep.subr.bf16.mxu0 0
    %1514 = vmatpush1.bf16.msra.mxu0 0
    %1515 = vmatprep.subr.bf16.mxu0 0
    %1516 = vmatpush1.bf16.msra.mxu0 0
    %1517 = vmatprep.subr.bf16.mxu0 0
    %1518 = vmatpush1.bf16.msra.mxu0 0
    %1519 = vmatprep.subr.bf16.mxu0 0
    %1520 = vmatpush1.bf16.msra.mxu0 0
    %1521 = vmatprep.subr.bf16.mxu0 0
    %1522 = vmatpush1.bf16.msra.mxu0 0
    %1523 = vmatprep.subr.bf16.mxu0 0
    %1524 = vmatpush1.bf16.msra.mxu0 0
    %1525 = vmatprep.subr.bf16.mxu0 0
    %1526 = vmatpush1.bf16.msra.mxu0 0
    %1527 = vmatprep.subr.bf16.mxu0 0
    %1528 = vmatpush1.bf16.msra.mxu0 0
    %1529 = vmatprep.mubr.bf16.mxu0 0
    %1530 = vmatmul.mubr.bf16.gmra.mrb[0].mxu0 %v1492
    %v1531 = vpop.f32.mrb[0].mxu0
    %v1532 = vadd.f32 0.0, %v1531
    %v1533 = vpop.f32.mrb[0].mxu0
    %v1534 = vpop.f32.mrb[0].mxu0
    %v1535 = vpop.f32.mrb[0].mxu0
    %1536 = vdwg.mxu0
    %1537 = vrot.lane.b32.xlu0 %v1144, 48
    %v1538 = vpop.permute.xlu0 %1537
    %v1540 = vsel %vm373, %v1488, 0
    %v1543 = vsel %vm403, %v1538, 0
    %1545 = vmatprep.subr.bf16.mxu0 0
    %1546 = vmatpush1.bf16.msra.mxu0 %v1543
    %1547 = vmatprep.subr.bf16.mxu0 0
    %1548 = vmatpush1.bf16.msra.mxu0 0
    %1549 = vmatprep.subr.bf16.mxu0 0
    %1550 = vmatpush1.bf16.msra.mxu0 0
    %1551 = vmatprep.subr.bf16.mxu0 0
    %1552 = vmatpush1.bf16.msra.mxu0 0
    %1553 = vmatprep.subr.bf16.mxu0 0
    %1554 = vmatpush1.bf16.msra.mxu0 0
    %1555 = vmatprep.subr.bf16.mxu0 0
    %1556 = vmatpush1.bf16.msra.mxu0 0
    %1557 = vmatprep.subr.bf16.mxu0 0
    %1558 = vmatpush1.bf16.msra.mxu0 0
    %1559 = vmatprep.subr.bf16.mxu0 0
    %1560 = vmatpush1.bf16.msra.mxu0 0
    %1561 = vmatprep.subr.bf16.mxu0 0
    %1562 = vmatpush1.bf16.msra.mxu0 0
    %1563 = vmatprep.subr.bf16.mxu0 0
    %1564 = vmatpush1.bf16.msra.mxu0 0
    %1565 = vmatprep.subr.bf16.mxu0 0
    %1566 = vmatpush1.bf16.msra.mxu0 0
    %1567 = vmatprep.subr.bf16.mxu0 0
    %1568 = vmatpush1.bf16.msra.mxu0 0
    %1569 = vmatprep.subr.bf16.mxu0 0
    %1570 = vmatpush1.bf16.msra.mxu0 0
    %1571 = vmatprep.subr.bf16.mxu0 0
    %1572 = vmatpush1.bf16.msra.mxu0 0
    %1573 = vmatprep.subr.bf16.mxu0 0
    %1574 = vmatpush1.bf16.msra.mxu0 0
    %1575 = vmatprep.subr.bf16.mxu0 0
    %1576 = vmatpush1.bf16.msra.mxu0 0
    %1577 = vmatprep.mubr.bf16.mxu0 0
    %1578 = vmatmul.mubr.bf16.gmra.mrb[0].mxu0 %v1540
    %v1579 = vpop.f32.mrb[0].mxu0
    %v1580 = vadd.f32 0.0, %v1579
    %v1581 = vpop.f32.mrb[0].mxu0
    %v1582 = vpop.f32.mrb[0].mxu0
    %v1583 = vpop.f32.mrb[0].mxu0
    %1584 = vdwg.mxu0
    %1587 = vrot.lane.b32.xlu0 %v1532, 16
    %v1588 = vpop.permute.xlu0 %1587
    %1589 = vrot.lane.b32.xlu0 %v1580, 16
    %v1590 = vpop.permute.xlu0 %1589
    %v1593 = vsel %vm277, %v1310, %v1588
    %v1594 = vsel %vm277, %v1358, %v1590
    %v1595 = vpack.c.bf16 %v1594, %v1593
    %s1596 = scalar_lea.vmem [#allocation7], 16
    %v1597 = vld [vmem:[%s1596] sm:$0xf]
    %v1598 = vld [vmem:[%s1596 + $0x4] sm:$0xf]
    %v1599 = vld [vmem:[%s1596 + $0x8] sm:$0xf]
    %v1600 = vld [vmem:[%s1596 + $0xc] sm:$0xf]
    %v1601 = vld [vmem:[%s9 + $0x1] sm:$0x1]
    %v1602 = vlaneseq
    %v1603 = vshrl.u32 %v1602, 7
    %v1604 = vsub.s32 0, %v1603
    %v1605 = vrot.slane %v1601, %v1604
    %v1610 = vunpack.c.l.b16 %v1597
    %v1611 = vunpack.c.l.b16 %v1598
    %v1612 = vunpack.c.l.b16 %v1599
    %v1613 = vunpack.c.l.b16 %v1600
    %v1614 = vpack.c.b16 %v1611, %v1610
    %v1615 = vpack.c.b16 %v1613, %v1612
    %v1619 = vsel %vm112, %v1595, 0
    %1621 = vmatprep.subr.bf16.mxu0 0
    %1622 = vmatpush1.bf16.msra.mxu0 %v1614
    %1623 = vmatprep.subr.bf16.mxu0 0
    %1624 = vmatpush1.bf16.msra.mxu0 %v1615
    %1625 = vmatprep.subr.bf16.mxu0 0
    %1626 = vmatpush1.bf16.msra.mxu0 0
    %1627 = vmatprep.subr.bf16.mxu0 0
    %1628 = vmatpush1.bf16.msra.mxu0 0
    %1629 = vmatprep.subr.bf16.mxu0 0
    %1630 = vmatpush1.bf16.msra.mxu0 0
    %1631 = vmatprep.subr.bf16.mxu0 0
    %1632 = vmatpush1.bf16.msra.mxu0 0
    %1633 = vmatprep.subr.bf16.mxu0 0
    %1634 = vmatpush1.bf16.msra.mxu0 0
    %1635 = vmatprep.subr.bf16.mxu0 0
    %1636 = vmatpush1.bf16.msra.mxu0 0
    %1637 = vmatprep.subr.bf16.mxu0 0
    %1638 = vmatpush1.bf16.msra.mxu0 0
    %1639 = vmatprep.subr.bf16.mxu0 0
    %1640 = vmatpush1.bf16.msra.mxu0 0
    %1641 = vmatprep.subr.bf16.mxu0 0
    %1642 = vmatpush1.bf16.msra.mxu0 0
    %1643 = vmatprep.subr.bf16.mxu0 0
    %1644 = vmatpush1.bf16.msra.mxu0 0
    %1645 = vmatprep.subr.bf16.mxu0 0
    %1646 = vmatpush1.bf16.msra.mxu0 0
    %1647 = vmatprep.subr.bf16.mxu0 0
    %1648 = vmatpush1.bf16.msra.mxu0 0
    %1649 = vmatprep.subr.bf16.mxu0 0
    %1650 = vmatpush1.bf16.msra.mxu0 0
    %1651 = vmatprep.subr.bf16.mxu0 0
    %1652 = vmatpush1.bf16.msra.mxu0 0
    %1653 = vmatprep.mubr.bf16.mxu0 0
    %1654 = vmatmul.mubr.bf16.gmra.mrb[0].mxu0 %v1619
    %v1655 = vpop.f32.mrb[0].mxu0
    %v1656 = vadd.f32 %v1605, %v1655
    %v1657 = vpop.f32.mrb[0].mxu0
    %v1658 = vpop.f32.mrb[0].mxu0
    %v1659 = vadd.f32 %v1605, %v1658
    %v1660 = vpop.f32.mrb[0].mxu0
    %1661 = vdwg.mxu0
    %v1662 = vadd.f32 %v1030, %v1656
    %v1663 = vadd.f32 %v1031, %v1659
    %v1664 = vld [vmem:[%s10 + $0x1] sm:$0x1]
    %v1665 = vld [vmem:[%s11 + $0x1] sm:$0x1]
    %v1666 = vsel %vm112, %v1662, 0.0
    %1667 = vadd.xlane.f32.xlu0 %v1666
    %v1668 = vpop.xlane.xlu0 %1667
    %v1669 = vsel %vm112, %v1663, 0.0
    %1670 = vadd.xlane.f32.xlu0 %v1669
    %v1671 = vpop.xlane.xlu0 %1670
    %v1672 = vmul.f32 %v1668, %v119
    %v1673 = vmul.f32 %v1671, %v119
    %v1674 = vsub.f32 %v1662, %v1672
    %v1675 = vsub.f32 %v1663, %v1673
    %v1676 = vmul.f32 %v1674, %v1674
    %v1677 = vmul.f32 %v1675, %v1675
    %v1678 = vsel %vm112, %v1676, 0.0
    %1679 = vadd.xlane.f32.xlu0 %v1678
    %v1680 = vpop.xlane.xlu0 %1679
    %v1681 = vsel %vm112, %v1677, 0.0
    %1682 = vadd.xlane.f32.xlu0 %v1681
    %v1683 = vpop.xlane.xlu0 %1682
    %v1684 = vmul.f32 %v1680, %v119
    %v1685 = vmul.f32 %v1683, %v119
    %v1686 = vadd.f32 %v1684, 1e-05
    %v1687 = vadd.f32 %v1685, 1e-05
    %v1688 = vrsqrt.pop %v1686
    %v1689 = vrsqrt.pop %v1687
    %v1690 = vmul.f32 %v1674, %v1688
    %v1691 = vmul.f32 %v1675, %v1689
    %v1692 = vlaneseq
    %v1693 = vshrl.u32 %v1692, 7
    %v1694 = vsub.s32 0, %v1693
    %v1695 = vrot.slane %v1664, %v1694
    %v1696 = vmul.f32 %v1690, %v1695
    %v1697 = vmul.f32 %v1691, %v1695
    %v1698 = vlaneseq
    %v1699 = vshrl.u32 %v1698, 7
    %v1700 = vsub.s32 0, %v1699
    %v1701 = vrot.slane %v1665, %v1700
    %v1702 = vadd.f32 %v1696, %v1701
    %v1703 = vadd.f32 %v1697, %v1701
    %v1704 = vpack.c.bf16 %v1703, %v1702
    %s1705 = scalar_lea.vmem [#allocation8], 16
    %v1706 = vld [vmem:[%s1705] sm:$0xf]
    %v1707 = vld [vmem:[%s1705 + $0x4] sm:$0xf]
    %v1708 = vld [vmem:[%s1705 + $0x8] sm:$0xf]
    %v1709 = vld [vmem:[%s1705 + $0xc] sm:$0xf]
    %v1710 = vld [vmem:[%s13 + $0x1] sm:$0x1]
    %v1711 = vlaneseq
    %v1712 = vshrl.u32 %v1711, 7
    %v1713 = vsub.s32 0, %v1712
    %v1714 = vrot.slane %v1710, %v1713
    %v1719 = vunpack.c.l.b16 %v1706
    %v1720 = vunpack.c.l.b16 %v1707
    %v1721 = vunpack.c.l.b16 %v1708
    %v1722 = vunpack.c.l.b16 %v1709
    %v1723 = vpack.c.b16 %v1720, %v1719
    %v1724 = vpack.c.b16 %v1722, %v1721
    %v1728 = vsel %vm112, %v1704, 0
    %1730 = vmatprep.subr.bf16.mxu0 0
    %1731 = vmatpush1.bf16.msra.mxu0 %v1723
    %1732 = vmatprep.subr.bf16.mxu0 0
    %1733 = vmatpush1.bf16.msra.mxu0 %v1724
    %1734 = vmatprep.subr.bf16.mxu0 0
    %1735 = vmatpush1.bf16.msra.mxu0 0
    %1736 = vmatprep.subr.bf16.mxu0 0
    %1737 = vmatpush1.bf16.msra.mxu0 0
    %1738 = vmatprep.subr.bf16.mxu0 0
    %1739 = vmatpush1.bf16.msra.mxu0 0
    %1740 = vmatprep.subr.bf16.mxu0 0
    %1741 = vmatpush1.bf16.msra.mxu0 0
    %1742 = vmatprep.subr.bf16.mxu0 0
    %1743 = vmatpush1.bf16.msra.mxu0 0
    %1744 = vmatprep.subr.bf16.mxu0 0
    %1745 = vmatpush1.bf16.msra.mxu0 0
    %1746 = vmatprep.subr.bf16.mxu0 0
    %1747 = vmatpush1.bf16.msra.mxu0 0
    %1748 = vmatprep.subr.bf16.mxu0 0
    %1749 = vmatpush1.bf16.msra.mxu0 0
    %1750 = vmatprep.subr.bf16.mxu0 0
    %1751 = vmatpush1.bf16.msra.mxu0 0
    %1752 = vmatprep.subr.bf16.mxu0 0
    %1753 = vmatpush1.bf16.msra.mxu0 0
    %1754 = vmatprep.subr.bf16.mxu0 0
    %1755 = vmatpush1.bf16.msra.mxu0 0
    %1756 = vmatprep.subr.bf16.mxu0 0
    %1757 = vmatpush1.bf16.msra.mxu0 0
    %1758 = vmatprep.subr.bf16.mxu0 0
    %1759 = vmatpush1.bf16.msra.mxu0 0
    %1760 = vmatprep.subr.bf16.mxu0 0
    %1761 = vmatpush1.bf16.msra.mxu0 0
    %1762 = vmatprep.mubr.bf16.mxu0 0
    %1763 = vmatmul.mubr.bf16.gmra.mrb[0].mxu0 %v1728
    %v1764 = vpop.f32.mrb[0].mxu0
    %v1765 = vadd.f32 %v1714, %v1764
    %v1766 = vpop.f32.mrb[0].mxu0
    %v1767 = vpop.f32.mrb[0].mxu0
    %v1768 = vadd.f32 %v1714, %v1767
    %v1769 = vpop.f32.mrb[0].mxu0
    %1770 = vdwg.mxu0
    %v1771 = vmul.f32 %v1765, 0.5
    %v1772 = vmul.f32 %v1768, 0.5
    %v1773 = vmul.f32 %v1765, %v1765
    %v1774 = vmul.f32 %v1768, %v1768
    %v1775 = vmul.f32 %v1773, %v1765
    %v1776 = vmul.f32 %v1774, %v1768
    %v1777 = vmul.f32 %v1775, 0.044715
    %v1778 = vmul.f32 %v1776, 0.044715
    %v1779 = vadd.f32 %v1765, %v1777
    %v1780 = vadd.f32 %v1768, %v1778
    %v1781 = vmul.f32 %v1779, 0.7978846
    %v1782 = vmul.f32 %v1780, 0.7978846
    %v1783 = vtanh.pop %v1781
    %v1784 = vtanh.pop %v1782
    %v1785 = vadd.f32 %v1783, 1.0
    %v1786 = vadd.f32 %v1784, 1.0
    %v1787 = vmul.f32 %v1771, %v1785
    %v1788 = vmul.f32 %v1772, %v1786
    %v1789 = vpack.c.bf16 %v1788, %v1787
    %s1790 = scalar_lea.vmem %s14, 64
    %v1791 = vld [vmem:[%s1790] sm:$0xf]
    %v1792 = vld [vmem:[%s1790 + $0x4] sm:$0xf]
    %v1793 = vld [vmem:[%s1790 + $0x8] sm:$0xf]
    %v1794 = vld [vmem:[%s1790 + $0xc] sm:$0xf]
    %v1795 = vld [vmem:[%s1790 + $0x10] sm:$0xf]
    %v1796 = vld [vmem:[%s1790 + $0x14] sm:$0xf]
    %v1797 = vld [vmem:[%s1790 + $0x18] sm:$0xf]
    %v1798 = vld [vmem:[%s1790 + $0x1c] sm:$0xf]
    %v1799 = vld [vmem:[%s1790 + $0x20] sm:$0xf]
    %v1800 = vld [vmem:[%s1790 + $0x24] sm:$0xf]
    %v1801 = vld [vmem:[%s1790 + $0x28] sm:$0xf]
    %v1802 = vld [vmem:[%s1790 + $0x2c] sm:$0xf]
    %v1803 = vld [vmem:[%s1790 + $0x30] sm:$0xf]
    %v1804 = vld [vmem:[%s1790 + $0x34] sm:$0xf]
    %v1805 = vld [vmem:[%s1790 + $0x38] sm:$0xf]
    %v1806 = vld [vmem:[%s1790 + $0x3c] sm:$0xf]
    %v1807 = vld [vmem:[%s15 + $0x1] sm:$0x1]
    %v1808 = vlaneseq
    %v1809 = vshrl.u32 %v1808, 7
    %v1810 = vsub.s32 0, %v1809
    %v1811 = vrot.slane %v1807, %v1810
    %v1828 = vunpack.c.l.b16 %v1791
    %v1829 = vunpack.c.l.b16 %v1792
    %v1830 = vunpack.c.l.b16 %v1793
    %v1831 = vunpack.c.l.b16 %v1794
    %v1832 = vunpack.c.l.b16 %v1795
    %v1833 = vunpack.c.l.b16 %v1796
    %v1834 = vunpack.c.l.b16 %v1797
    %v1835 = vunpack.c.l.b16 %v1798
    %v1836 = vunpack.c.l.b16 %v1799
    %v1837 = vunpack.c.l.b16 %v1800
    %v1838 = vunpack.c.l.b16 %v1801
    %v1839 = vunpack.c.l.b16 %v1802
    %v1840 = vunpack.c.l.b16 %v1803
    %v1841 = vunpack.c.l.b16 %v1804
    %v1842 = vunpack.c.l.b16 %v1805
    %v1843 = vunpack.c.l.b16 %v1806
    %v1844 = vpack.c.b16 %v1829, %v1828
    %v1845 = vpack.c.b16 %v1831, %v1830
    %v1846 = vpack.c.b16 %v1833, %v1832
    %v1847 = vpack.c.b16 %v1835, %v1834
    %v1848 = vpack.c.b16 %v1837, %v1836
    %v1849 = vpack.c.b16 %v1839, %v1838
    %v1850 = vpack.c.b16 %v1841, %v1840
    %v1851 = vpack.c.b16 %v1843, %v1842
    %1860 = vmatprep.subr.bf16.mxu0 0
    %1861 = vmatpush1.bf16.msra.mxu0 %v1844
    %1862 = vmatprep.subr.bf16.mxu0 0
    %1863 = vmatpush1.bf16.msra.mxu0 %v1845
    %1864 = vmatprep.subr.bf16.mxu0 0
    %1865 = vmatpush1.bf16.msra.mxu0 %v1846
    %1866 = vmatprep.subr.bf16.mxu0 0
    %1867 = vmatpush1.bf16.msra.mxu0 %v1847
    %1868 = vmatprep.subr.bf16.mxu0 0
    %1869 = vmatpush1.bf16.msra.mxu0 %v1848
    %1870 = vmatprep.subr.bf16.mxu0 0
    %1871 = vmatpush1.bf16.msra.mxu0 %v1849
    %1872 = vmatprep.subr.bf16.mxu0 0
    %1873 = vmatpush1.bf16.msra.mxu0 %v1850
    %1874 = vmatprep.subr.bf16.mxu0 0
    %1875 = vmatpush1.bf16.msra.mxu0 %v1851
    %1876 = vmatprep.subr.bf16.mxu0 0
    %1877 = vmatpush1.bf16.msra.mxu0 0
    %1878 = vmatprep.subr.bf16.mxu0 0
    %1879 = vmatpush1.bf16.msra.mxu0 0
    %1880 = vmatprep.subr.bf16.mxu0 0
    %1881 = vmatpush1.bf16.msra.mxu0 0
    %1882 = vmatprep.subr.bf16.mxu0 0
    %1883 = vmatpush1.bf16.msra.mxu0 0
    %1884 = vmatprep.subr.bf16.mxu0 0
    %1885 = vmatpush1.bf16.msra.mxu0 0
    %1886 = vmatprep.subr.bf16.mxu0 0
    %1887 = vmatpush1.bf16.msra.mxu0 0
    %1888 = vmatprep.subr.bf16.mxu0 0
    %1889 = vmatpush1.bf16.msra.mxu0 0
    %1890 = vmatprep.subr.bf16.mxu0 0
    %1891 = vmatpush1.bf16.msra.mxu0 0
    %1892 = vmatprep.mubr.bf16.mxu0 0
    %1893 = vmatmul.mubr.bf16.gmra.mrb[0].mxu0 %v1789
    %v1894 = vpop.f32.mrb[0].mxu0
    %v1895 = vadd.f32 %v1811, %v1894
    %v1896 = vpop.f32.mrb[0].mxu0
    %v1897 = vpop.f32.mrb[0].mxu0
    %v1898 = vadd.f32 %v1811, %v1897
    %v1899 = vpop.f32.mrb[0].mxu0
    %1900 = vdwg.mxu0
    %v1901 = vadd.f32 %v1662, %v1895
    %v1902 = vadd.f32 %v1663, %v1898
    %v1903 = vpack.c.bf16 %v1901, %v1901
    %v1904 = vpack.c.bf16 %v1902, %v1902
    %v1905 = vld [vmem:[%s1] sm:$0xf]
    %v1906 = vld [vmem:[%s1 + $0x4] sm:$0xf]
    %v1907 = vld [vmem:[%s1 + $0x8] sm:$0xf]
    %v1908 = vld [vmem:[%s1 + $0xc] sm:$0xf]
    %v1909 = vld [vmem:[%s1 + $0x10] sm:$0xf]
    %v1910 = vld [vmem:[%s1 + $0x14] sm:$0xf]
    %v1911 = vld [vmem:[%s1 + $0x18] sm:$0xf]
    %v1912 = vld [vmem:[%s1 + $0x1c] sm:$0xf]
    %v1913 = vld [vmem:[%s1 + $0x20] sm:$0xf]
    %v1914 = vld [vmem:[%s1 + $0x24] sm:$0xf]
    %v1915 = vld [vmem:[%s1 + $0x28] sm:$0xf]
    %v1916 = vld [vmem:[%s1 + $0x2c] sm:$0xf]
    %v1917 = vld [vmem:[%s1 + $0x30] sm:$0xf]
    %v1918 = vld [vmem:[%s1 + $0x34] sm:$0xf]
    %v1919 = vld [vmem:[%s1 + $0x38] sm:$0xf]
    %v1920 = vld [vmem:[%s1 + $0x3c] sm:$0xf]
    %v1921 = vld [vmem:[%s1 + $0x40] sm:$0xf]
    %v1922 = vld [vmem:[%s1 + $0x44] sm:$0xf]
    %v1923 = vld [vmem:[%s1 + $0x48] sm:$0xf]
    %v1924 = vld [vmem:[%s1 + $0x4c] sm:$0xf]
    %v1925 = vld [vmem:[%s1 + $0x50] sm:$0xf]
    %v1926 = vld [vmem:[%s1 + $0x54] sm:$0xf]
    %v1927 = vld [vmem:[%s1 + $0x58] sm:$0xf]
    %v1928 = vld [vmem:[%s1 + $0x5c] sm:$0xf]
    %v1929 = vld [vmem:[%s1 + $0x60] sm:$0xf]
    %v1930 = vld [vmem:[%s1 + $0x64] sm:$0xf]
    %v1931 = vld [vmem:[%s1 + $0x68] sm:$0xf]
    %v1932 = vld [vmem:[%s1 + $0x6c] sm:$0xf]
    %v1933 = vld [vmem:[%s1 + $0x70] sm:$0xf]
    %v1934 = vld [vmem:[%s1 + $0x74] sm:$0xf]
    %v1935 = vld [vmem:[%s1 + $0x78] sm:$0xf]
    %v1936 = vld [vmem:[%s1 + $0x7c] sm:$0xf]
    %v1953 = vunpack.c.l.b16 %v1905
    %v1954 = vunpack.c.l.b16 %v1906
    %v1955 = vunpack.c.l.b16 %v1907
    %v1956 = vunpack.c.l.b16 %v1908
    %v1957 = vunpack.c.l.b16 %v1909
    %v1958 = vunpack.c.l.b16 %v1910
    %v1959 = vunpack.c.l.b16 %v1911
    %v1960 = vunpack.c.l.b16 %v1912
    %v1961 = vunpack.c.l.b16 %v1913
    %v1962 = vunpack.c.l.b16 %v1914
    %v1963 = vunpack.c.l.b16 %v1915
    %v1964 = vunpack.c.l.b16 %v1916
    %v1965 = vunpack.c.l.b16 %v1917
    %v1966 = vunpack.c.l.b16 %v1918
    %v1967 = vunpack.c.l.b16 %v1919
    %v1968 = vunpack.c.l.b16 %v1920
    %v1969 = vpack.c.b16 %v1954, %v1953
    %v1970 = vpack.c.b16 %v1956, %v1955
    %v1971 = vpack.c.b16 %v1958, %v1957
    %v1972 = vpack.c.b16 %v1960, %v1959
    %v1973 = vpack.c.b16 %v1962, %v1961
    %v1974 = vpack.c.b16 %v1964, %v1963
    %v1975 = vpack.c.b16 %v1966, %v1965
    %v1976 = vpack.c.b16 %v1968, %v1967
    %v1978 = vsel %vm112, %v1903, 0
    %v1981 = vsel %vm112, %v1969, 0
    %v1984 = vsel %vm112, %v1970, 0
    %v1987 = vsel %vm112, %v1971, 0
    %v1990 = vsel %vm112, %v1972, 0
    %v1993 = vsel %vm112, %v1973, 0
    %v1996 = vsel %vm112, %v1974, 0
    %v1999 = vsel %vm112, %v1975, 0
    %v2002 = vsel %vm112, %v1976, 0
    %2004 = vmatprep.subr.bf16.mxu0 0
    %2005 = vmatpush1.bf16.xpose.msra.mxu0 %v1981
    %2006 = vmatprep.subr.bf16.mxu0 0
    %2007 = vmatpush1.bf16.xpose.msra.mxu0 %v1984
    %2008 = vmatprep.subr.bf16.mxu0 0
    %2009 = vmatpush1.bf16.xpose.msra.mxu0 %v1987
    %2010 = vmatprep.subr.bf16.mxu0 0
    %2011 = vmatpush1.bf16.xpose.msra.mxu0 %v1990
    %2012 = vmatprep.subr.bf16.mxu0 0
    %2013 = vmatpush1.bf16.xpose.msra.mxu0 %v1993
    %2014 = vmatprep.subr.bf16.mxu0 0
    %2015 = vmatpush1.bf16.xpose.msra.mxu0 %v1996
    %2016 = vmatprep.subr.bf16.mxu0 0
    %2017 = vmatpush1.bf16.xpose.msra.mxu0 %v1999
    %2018 = vmatprep.subr.bf16.mxu0 0
    %2019 = vmatpush1.bf16.xpose.msra.mxu0 %v2002
    %2020 = vmatprep.subr.bf16.mxu0 0
    %2021 = vmatpush1.bf16.xpose.msra.mxu0 0
    %2022 = vmatprep.subr.bf16.mxu0 0
    %2023 = vmatpush1.bf16.xpose.msra.mxu0 0
    %2024 = vmatprep.subr.bf16.mxu0 0
    %2025 = vmatpush1.bf16.xpose.msra.mxu0 0
    %2026 = vmatprep.subr.bf16.mxu0 0
    %2027 = vmatpush1.bf16.xpose.msra.mxu0 0
    %2028 = vmatprep.subr.bf16.mxu0 0
    %2029 = vmatpush1.bf16.xpose.msra.mxu0 0
    %2030 = vmatprep.subr.bf16.mxu0 0
    %2031 = vmatpush1.bf16.xpose.msra.mxu0 0
    %2032 = vmatprep.subr.bf16.mxu0 0
    %2033 = vmatpush1.bf16.xpose.msra.mxu0 0
    %2034 = vmatprep.subr.bf16.mxu0 0
    %2035 = vmatpush1.bf16.xpose.msra.mxu0 0
    %2036 = vmatprep.mubr.bf16.mxu0 0
    %2037 = vmatmul.mubr.bf16.gmra.mrb[0].mxu0 %v1978
    %v2038 = vpop.f32.mrb[0].mxu0
    %v2039 = vadd.f32 0.0, %v2038
    %v2040 = vpop.f32.mrb[0].mxu0
    %v2041 = vpop.f32.mrb[0].mxu0
    %v2042 = vpop.f32.mrb[0].mxu0
    %2043 = vdwg.mxu0
    %v2060 = vunpack.c.l.b16 %v1921
    %v2061 = vunpack.c.l.b16 %v1922
    %v2062 = vunpack.c.l.b16 %v1923
    %v2063 = vunpack.c.l.b16 %v1924
    %v2064 = vunpack.c.l.b16 %v1925
    %v2065 = vunpack.c.l.b16 %v1926
    %v2066 = vunpack.c.l.b16 %v1927
    %v2067 = vunpack.c.l.b16 %v1928
    %v2068 = vunpack.c.l.b16 %v1929
    %v2069 = vunpack.c.l.b16 %v1930
    %v2070 = vunpack.c.l.b16 %v1931
    %v2071 = vunpack.c.l.b16 %v1932
    %v2072 = vunpack.c.l.b16 %v1933
    %v2073 = vunpack.c.l.b16 %v1934
    %v2074 = vunpack.c.l.b16 %v1935
    %v2075 = vunpack.c.l.b16 %v1936
    %v2076 = vpack.c.b16 %v2061, %v2060
    %v2077 = vpack.c.b16 %v2063, %v2062
    %v2078 = vpack.c.b16 %v2065, %v2064
    %v2079 = vpack.c.b16 %v2067, %v2066
    %v2080 = vpack.c.b16 %v2069, %v2068
    %v2081 = vpack.c.b16 %v2071, %v2070
    %v2082 = vpack.c.b16 %v2073, %v2072
    %v2083 = vpack.c.b16 %v2075, %v2074
    %v2085 = vsel %vm112, %v1904, 0
    %v2088 = vsel %vm112, %v2076, 0
    %v2091 = vsel %vm112, %v2077, 0
    %v2094 = vsel %vm112, %v2078, 0
    %v2097 = vsel %vm112, %v2079, 0
    %v2100 = vsel %vm112, %v2080, 0
    %v2103 = vsel %vm112, %v2081, 0
    %v2106 = vsel %vm112, %v2082, 0
    %v2109 = vsel %vm112, %v2083, 0
    %2111 = vmatprep.subr.bf16.mxu0 0
    %2112 = vmatpush1.bf16.xpose.msra.mxu0 %v2088
    %2113 = vmatprep.subr.bf16.mxu0 0
    %2114 = vmatpush1.bf16.xpose.msra.mxu0 %v2091
    %2115 = vmatprep.subr.bf16.mxu0 0
    %2116 = vmatpush1.bf16.xpose.msra.mxu0 %v2094
    %2117 = vmatprep.subr.bf16.mxu0 0
    %2118 = vmatpush1.bf16.xpose.msra.mxu0 %v2097
    %2119 = vmatprep.subr.bf16.mxu0 0
    %2120 = vmatpush1.bf16.xpose.msra.mxu0 %v2100
    %2121 = vmatprep.subr.bf16.mxu0 0
    %2122 = vmatpush1.bf16.xpose.msra.mxu0 %v2103
    %2123 = vmatprep.subr.bf16.mxu0 0
    %2124 = vmatpush1.bf16.xpose.msra.mxu0 %v2106
    %2125 = vmatprep.subr.bf16.mxu0 0
    %2126 = vmatpush1.bf16.xpose.msra.mxu0 %v2109
    %2127 = vmatprep.subr.bf16.mxu0 0
    %2128 = vmatpush1.bf16.xpose.msra.mxu0 0
    %2129 = vmatprep.subr.bf16.mxu0 0
    %2130 = vmatpush1.bf16.xpose.msra.mxu0 0
    %2131 = vmatprep.subr.bf16.mxu0 0
    %2132 = vmatpush1.bf16.xpose.msra.mxu0 0
    %2133 = vmatprep.subr.bf16.mxu0 0
    %2134 = vmatpush1.bf16.xpose.msra.mxu0 0
    %2135 = vmatprep.subr.bf16.mxu0 0
    %2136 = vmatpush1.bf16.xpose.msra.mxu0 0
    %2137 = vmatprep.subr.bf16.mxu0 0
    %2138 = vmatpush1.bf16.xpose.msra.mxu0 0
    %2139 = vmatprep.subr.bf16.mxu0 0
    %2140 = vmatpush1.bf16.xpose.msra.mxu0 0
    %2141 = vmatprep.subr.bf16.mxu0 0
    %2142 = vmatpush1.bf16.xpose.msra.mxu0 0
    %2143 = vmatprep.mubr.bf16.mxu0 0
    %2144 = vmatmul.mubr.bf16.gmra.mrb[0].mxu0 %v2085
    %v2145 = vpop.f32.mrb[0].mxu0
    %v2146 = vadd.f32 0.0, %v2145
    %v2147 = vpop.f32.mrb[0].mxu0
    %v2148 = vpop.f32.mrb[0].mxu0
    %v2149 = vpop.f32.mrb[0].mxu0
    %2150 = vdwg.mxu0
    %v2151 = vmul.u32 %v157, 16
    %vm2152 = vcmp.ge.s32.totalorder %v159, %v2151
    %v2153 = vadd.s32 %v157, 1
    %v2154 = vmul.u32 %v2153, 16
    %vm2155 = vcmp.lt.s32.totalorder %v159, %v2154
    %vm2156 = vmand %vm2152, %vm2155
    %v2157 = vsel %vm2156, 1, 0
    %vm2158 = vcmp.eq.s32.totalorder %v2157, 1
    %v2159 = vsel %vm2158, %v2039, 0.0
    %v2160 = vsel %vm2158, %v2146, 0.0
    %v2161 = vrot.slane %v2159, 4
    %v2162 = vadd.f32 %v2159, %v2161
    %v2163 = vrot.slane %v2162, 2
    %v2164 = vadd.f32 %v2162, %v2163
    %v2165 = vrot.slane %v2164, 1
    %v2166 = vadd.f32 %v2164, %v2165
    %v2167 = vrot.slane %v2160, 4
    %v2168 = vadd.f32 %v2160, %v2167
    %v2169 = vrot.slane %v2168, 2
    %v2170 = vadd.f32 %v2168, %v2169
    %v2171 = vrot.slane %v2170, 1
    %v2172 = vadd.f32 %v2170, %v2171
    %vm2175 = vcmask 1041409
    %v2176 = vsel %vm2175, %v2172, %v2166
    %2178 = vst [vmem:[#allocation10] sm:$0x3] %v2176
    // Predicated region
    $region82: #{tpu_custom_call.1} parent=1 // pred_check
      _
    $region83: #{tpu_custom_call.1} parent=1 // pred_check_branch
      %2180 = sbr.rel (0) target = $region85
    $region84: #{tpu_custom_call.1} parent=1 // pred_region
      %s2182 = ssub.s32 32, 32
      %2183 = vsyncadd [#allocation4], %s2182
      %s2185 = sshll.u32 [#allocation10], 4
      %s2186 = int_to_ptr.vmem [resolvable:$true] %s2185
      %2188 = dma.vmem_to_hbm [thread:$0]  %s2186, 32, %s16, [#allocation4]
    $region85: #{tpu_custom_call.1} parent=1 // pred_fallthru
      _
    // Predicated region
    $region86: #{tpu_custom_call.1} parent=1 // pred_check
      _
    $region87: #{tpu_custom_call.1} parent=1 // pred_check_branch
      %2190 = sbr.rel (0) target = $region89
    $region88: #{tpu_custom_call.1} parent=1 // pred_region
      %2191 = dma.done [#allocation4], 32
    $region89: #{tpu_custom_call.1} parent=1 // pred_fallthru
      _
    %2192 = vsyncpa [#allocation3], 1
    %2193 = vsyncpa [#allocation6], 1
    %2194 = vsyncpa [#allocation9], 1
    %2195 = vsyncpa [#allocation4], 1

</llo_original>
